<compile_context>
chip_gen: v7x
topology: tpu7x:2x2x1
jax: 0.10.0
libtpu: 0.0.40
codegen_flags: <defaults>
</compile_context>

<pallas_src>
import functools

import jax
import jax.numpy as jnp
from jax.experimental import pallas as pl
from jax.experimental.pallas import tpu as pltpu


CP = 128  # padded output-channel width = one full 128-lane register
KC = 64   # per-vertical-tap K chunk for conv1 (4 horizontal taps * 4*cin channels, zero padded)


# ----------------------------- Pallas kernels ------------------------------ #

def _conv1_pool_kernel(xk_ref, w_ref, b_ref, o_ref, vm_ref):
    """conv1 (single (M,256)x(256,128) MXU dot) + folded-BN bias + ReLU + fused
    3x3/stride-2/pad-1 max pool, writing a halo-padded (zero ring) pooled output.

    xk_ref: (1, Ho+3, Wo, KC) bf16  per-row horizontal-im2col of the space-to-depth'd input
    w_ref : (4*KC, CP) bf16         BN scale folded
    b_ref : (1, CP) f32
    o_ref : (1, Hq+2, Wq+2, CP) bf16
    vm_ref: (Hq, Wo+1, CP) f32 VMEM scratch (vertical 3-tap, stride-2 max)
    """
    ho = xk_ref.shape[1] - 3
    wo = xk_ref.shape[2]
    kc = xk_ref.shape[3]
    hq = o_ref.shape[1] - 2
    wq = o_ref.shape[2] - 2
    cp = o_ref.shape[3]
    m = ho * wo

    # ---- conv1: concatenate the 4 vertical taps along K, one big dot ----
    slab = jnp.concatenate(
        [xk_ref[0, a:a + ho, :, :].reshape(m, kc) for a in range(4)], axis=-1)  # (M, 4*KC)
    y = jnp.dot(slab, w_ref[...], preferred_element_type=jnp.float32)           # (M, CP) f32
    y = jnp.maximum(y + b_ref[...], 0.0).reshape(ho, wo, cp)

    # ---- fused maxpool 3x3 / stride 2 / pad 1 (post-ReLU, so 0-pad is the identity) ----
    # Pad one zero row above/below and one zero column on the left, then split rows even/odd.
    zrow = jnp.zeros((1, wo, cp), jnp.float32)
    zcol = jnp.zeros((ho + 2, 1, cp), jnp.float32)
    yp = jnp.concatenate([zrow, y, zrow], axis=0)           # (Ho+2, Wo, CP)
    yp = jnp.concatenate([zcol, yp], axis=1)                # (Ho+2, Wo+1, CP)
    ypr = yp.reshape(hq + 1, 2, wo + 1, cp)                 # leading-dim even/odd split
    vm_ref[...] = jnp.maximum(jnp.maximum(ypr[0:hq, 0], ypr[0:hq, 1]), ypr[1:hq + 1, 0])
    # Horizontal 3-tap stride-2 max via strided reads of the scratch.
    pool = jnp.maximum(
        jnp.maximum(vm_ref[:, pl.ds(0, wq, stride=2), :],
                    vm_ref[:, pl.ds(1, wq, stride=2), :]),
        vm_ref[:, pl.ds(2, wq, stride=2), :])               # (Hq, Wq, CP) f32

    # ---- halo-padded output: zero ring + pooled interior ----
    zc = jnp.zeros((hq, 1, cp), jnp.float32)
    o_ref[0, 0, :, :] = jnp.zeros((wq + 2, cp), o_ref.dtype)
    o_ref[0, hq + 1, :, :] = jnp.zeros((wq + 2, cp), o_ref.dtype)
    o_ref[0, 1:hq + 1, :, :] = jnp.concatenate([zc, pool, zc], axis=1).astype(o_ref.dtype)


def _basic_block_kernel(xp_ref, wa_ref, ba_ref, wb_ref, bb_ref, o_ref, mid_ref):
    """Fused ResNet BasicBlock (stride 1, no downsample), halo-padded in / halo-padded out:
       conv3x3+bn+relu -> conv3x3+bn -> (+identity) -> relu, in ONE pallas_call.

    xp_ref : (1, H+2, W+2, CP) bf16  halo-padded block input (zero ring)
    wa_ref : (9, CP, CP) bf16        first conv, BN scale folded (tap-major)
    ba_ref : (1, CP) f32
    wb_ref : (9, CP, CP) bf16        second conv, BN scale folded
    bb_ref : (1, CP) f32
    o_ref  : (1, H+2, W+2, CP) bf16  halo-padded block output (zero ring written here)
    mid_ref: (H+2, W+2, CP) bf16 VMEM scratch — conv_a output, halo-padded, kept resident
    """
    h = o_ref.shape[1] - 2
    w = o_ref.shape[2] - 2
    cp = o_ref.shape[3]
    m = h * w

    # ---- conv_a + bn_a + relu -> mid (bf16, VMEM-resident); taps outer, weights loaded 1x/tap
    acc = jnp.zeros((m, cp), jnp.float32)
    for t in range(9):
        a, b = t // 3, t % 3
        slab = xp_ref[0, a:a + h, b:b + w, :].reshape(m, cp)                     # bf16
        acc = acc + jnp.dot(slab, wa_ref[t], preferred_element_type=jnp.float32)
    mid = jnp.maximum(acc + ba_ref[...], 0.0).astype(mid_ref.dtype).reshape(h, w, cp)
    zcol = jnp.zeros((h, 1, cp), mid_ref.dtype)
    mid_ref[0, :, :] = jnp.zeros((w + 2, cp), mid_ref.dtype)     # zero only the halo rows
    mid_ref[h + 1, :, :] = jnp.zeros((w + 2, cp), mid_ref.dtype)
    mid_ref[1:h + 1, :, :] = jnp.concatenate([zcol, mid, zcol], axis=1)

    # ---- conv_b + bn_b + residual + relu -> halo-padded output ----
    acc2 = jnp.zeros((m, cp), jnp.float32)
    for t in range(9):
        a, b = t // 3, t % 3
        slab = mid_ref[a:a + h, b:b + w, :].reshape(m, cp)                       # bf16
        acc2 = acc2 + jnp.dot(slab, wb_ref[t], preferred_element_type=jnp.float32)
    res = xp_ref[0, 1:h + 1, 1:w + 1, :].reshape(m, cp).astype(jnp.float32)
    out = jnp.maximum(acc2 + bb_ref[...] + res, 0.0).astype(o_ref.dtype).reshape(h, w, cp)
    zc = jnp.zeros((h, 1, cp), o_ref.dtype)
    o_ref[0, 0, :, :] = jnp.zeros((w + 2, cp), o_ref.dtype)
    o_ref[0, h + 1, :, :] = jnp.zeros((w + 2, cp), o_ref.dtype)
    o_ref[0, 1:h + 1, :, :] = jnp.concatenate([zc, out, zc], axis=1)


# ------------------------------ kernel wrappers ----------------------------- #

_VMEM_LIMIT = 48 * 1024 * 1024  # fits v7x's 64 MiB physical VMEM with headroom


def _call_conv1_pool(xk, w, b):
    n, hv, wo, kc = xk.shape
    ho = hv - 3
    hq, wq = ho // 2, wo // 2
    cp = w.shape[1]
    cost = pl.CostEstimate(
        flops=2 * n * ho * wo * w.shape[0] * cp,
        transcendentals=0,
        bytes_accessed=int(xk.size * 2 + w.size * 2 + b.size * 4
                           + n * (hq + 2) * (wq + 2) * cp * 2),
    )
    return pl.pallas_call(
        _conv1_pool_kernel,
        out_shape=jax.ShapeDtypeStruct((n, hq + 2, wq + 2, cp), jnp.bfloat16),
        grid=(n,),
        in_specs=[
            pl.BlockSpec((1, hv, wo, kc), lambda i: (i, 0, 0, 0)),
            pl.BlockSpec(w.shape, lambda i: (0, 0)),
            pl.BlockSpec(b.shape, lambda i: (0, 0)),
        ],
        out_specs=pl.BlockSpec((1, hq + 2, wq + 2, cp), lambda i: (i, 0, 0, 0)),
        scratch_shapes=[pltpu.VMEM((hq, wo + 1, cp), jnp.float32)],
        compiler_params=pltpu.CompilerParams(
            dimension_semantics=("parallel",),
            vmem_limit_bytes=_VMEM_LIMIT),
        cost_estimate=cost,
    )(xk, w, b)


def basic_block(yp, blk):
    """yp: (N, H+2, W+2, CP) bf16 halo-padded; returns the halo-padded block output."""
    n, hp2, wp2, cp = yp.shape
    h, w = hp2 - 2, wp2 - 2
    cost = pl.CostEstimate(
        flops=2 * 2 * 9 * n * h * w * cp * cp,
        transcendentals=0,
        bytes_accessed=int(2 * yp.size * 2 + (blk["w1"].size + blk["w2"].size) * 2
                           + (blk["b1"].size + blk["b2"].size) * 4),
    )
    return pl.pallas_call(
        _basic_block_kernel,
        out_shape=jax.ShapeDtypeStruct((n, hp2, wp2, cp), jnp.bfloat16),
        grid=(n,),
        in_specs=[
            pl.BlockSpec((1, hp2, wp2, cp), lambda i: (i, 0, 0, 0)),
            pl.BlockSpec(blk["w1"].shape, lambda i: (0, 0, 0)),
            pl.BlockSpec(blk["b1"].shape, lambda i: (0, 0)),
            pl.BlockSpec(blk["w2"].shape, lambda i: (0, 0, 0)),
            pl.BlockSpec(blk["b2"].shape, lambda i: (0, 0)),
        ],
        out_specs=pl.BlockSpec((1, hp2, wp2, cp), lambda i: (i, 0, 0, 0)),
        scratch_shapes=[pltpu.VMEM((hp2, wp2, cp), jnp.bfloat16)],
        compiler_params=pltpu.CompilerParams(
            dimension_semantics=("parallel",),
            vmem_limit_bytes=_VMEM_LIMIT),
        cost_estimate=cost,
    )(yp, blk["w1"], blk["b1"], blk["w2"], blk["b2"])


# --------------------------------- forward ---------------------------------- #

def feature_extractor_forward(x_nchw, params, *, c_out):
    x = jnp.transpose(x_nchw, (0, 2, 3, 1)).astype(jnp.float32)   # NCHW -> NHWC
    n, h, w, c = x.shape
    assert h % 4 == 0 and w % 4 == 0   # even conv1 and maxpool outputs
    assert 16 * c <= KC

    # conv1 (7x7, stride 2, pad 3, no bias) + bn1 + relu + maxpool 3x3/s2/p1, ONE Pallas call.
    # Wrapper prep touches only the small raw image: pad 3, space-to-depth by 2 (stride-1 4x4
    # conv over 4*c channels), then pack the 4 horizontal taps into the channel dim so the
    # kernel only needs the 4 vertical taps (K chunks of KC, zero-padded).
    xp = jnp.pad(x, ((0, 0), (3, 3), (3, 3), (0, 0)))
    hp, wp = h + 6, w + 6
    xs = xp.reshape(n, hp // 2, 2, wp // 2, 2, c)
    xs = xs.transpose(0, 1, 3, 2, 4, 5).reshape(n, hp // 2, wp // 2, 4 * c)
    ho, wo = h // 2, w // 2
    xk = jnp.concatenate([xs[:, :, bb:bb + wo, :] for bb in range(4)], axis=-1)  # (n,Ho+3,Wo,16c)
    xk = jnp.pad(xk, ((0, 0), (0, 0), (0, 0), (0, KC - 16 * c))).astype(jnp.bfloat16)
    y = _call_conv1_pool(xk, params["conv1_w"], params["conv1_b"])  # halo-padded (n,Hq+2,Wq+2,CP)

    # layer1: two fused BasicBlocks (halo-padded in / halo-padded out -> no wrapper pads)
    for blk in params["layer1"]:
        y = basic_block(y, blk)

    y = y[:, 1:-1, 1:-1, :c_out]                               # drop halo ring + lane padding
    return jnp.transpose(y, (0, 3, 1, 2)).astype(jnp.float32)  # NHWC -> NCHW


# ------------------------- parameter fold / preparation ---------------------- #

def fold_bn(gamma, beta, mean, var, eps=1e-5):
    scale = gamma / jnp.sqrt(var + eps)
    return scale, beta - mean * scale


def _prep_conv1(w7, scale, bias, cp=CP, kc=KC):
    """(7,7,Cin,Cout) HWIO -> (4*KC, CP): space-to-depth 4x4 taps, horizontal taps packed into
    each vertical tap's K chunk, BN scale folded, zero-padded to lane-dense widths."""
    kh, kw, cin, cout = w7.shape
    wf = w7 * scale                                       # fold BN scale into output columns
    wf = jnp.pad(wf, ((0, 1), (0, 1), (0, 0), (0, 0)))    # 7x7 -> 8x8 taps (zeros)
    w4 = wf.reshape(4, 2, 4, 2, cin, cout).transpose(0, 2, 1, 3, 4, 5)  # (a, b, pi, pj, c, o)
    w4 = w4.reshape(4, 16 * cin, cout)                    # k-in-chunk = b*(4*cin)+(2*pi+pj)*cin+c
    wk = jnp.zeros((4, kc, cout), jnp.float32).at[:, :16 * cin, :].set(w4)
    wk = jnp.pad(wk.reshape(4 * kc, cout), ((0, 0), (0, cp - cout)))
    b = jnp.pad(bias, (0, cp - cout)).reshape(1, cp)
    return wk.astype(jnp.bfloat16), b.astype(jnp.float32)


def _prep_conv3x3(w, scale, bias, cp=CP):
    """(3,3,Cin,Cout) HWIO -> (9, CP, CP) tap-major, BN folded, channels zero-padded to CP."""
    kh, kw, cin, cout = w.shape
    wf = (w * scale).reshape(kh * kw, cin, cout)
    wp_full = jnp.zeros((kh * kw, cp, cp), jnp.float32).at[:, :cin, :cout].set(wf)
    b = jnp.pad(bias, (0, cp - cout)).reshape(1, cp)
    return wp_full.astype(jnp.bfloat16), b.astype(jnp.float32)


def prepare_params(raw, cp=CP):
    # One-time constant fold: BN -> (scale, bias); scale folded into conv weight columns;
    # channels zero-padded to the 128-lane width; weights cast to bf16.
    # TODO(synk): real PyTorch weights (OIHW) need a transpose to HWIO before this prep.
    s1, b1 = fold_bn(**raw["bn1"])
    conv1_w, conv1_b = _prep_conv1(raw["conv1_w"], s1, b1, cp)
    layer1 = []
    for blk in raw["layer1"]:
        sa, ba = fold_bn(**blk["bn_a"])
        sb, bb = fold_bn(**blk["bn_b"])
        w1, pb1 = _prep_conv3x3(blk["w1"], sa, ba, cp)
        w2, pb2 = _prep_conv3x3(blk["w2"], sb, bb, cp)
        layer1.append({"w1": w1, "b1": pb1, "w2": w2, "b2": pb2})
    return {"conv1_w": conv1_w, "conv1_b": conv1_b, "layer1": layer1}


def init_raw_params(key, c_in=3, c1=16):
    ks = jax.random.split(key, 11)

    def conv(k, kh, kw, ci, co):
        return jax.random.normal(k, (kh, kw, ci, co), jnp.float32) * 0.05

    def bn(k, c):
        k1, k2, k3, k4 = jax.random.split(k, 4)
        return {
            "gamma": 1.0 + 0.1 * jax.random.normal(k1, (c,), jnp.float32),
            "beta": 0.1 * jax.random.normal(k2, (c,), jnp.float32),
            "mean": 0.1 * jax.random.normal(k3, (c,), jnp.float32),
            "var": jax.random.uniform(k4, (c,), jnp.float32, minval=0.5, maxval=1.5),
        }

    raw = {"conv1_w": conv(ks[0], 7, 7, c_in, c1), "bn1": bn(ks[1], c1), "layer1": []}
    i = 2
    for _ in range(2):  # two BasicBlocks (c1 -> c1)
        raw["layer1"].append({
            "w1": conv(ks[i], 3, 3, c1, c1), "bn_a": bn(ks[i + 1], c1),
            "w2": conv(ks[i + 2], 3, 3, c1, c1), "bn_b": bn(ks[i + 3], c1),
        })
        i += 4
    return raw


# ---------------------------------- main ------------------------------------ #

if __name__ == "__main__":
    key = jax.random.PRNGKey(0)
    kx, kp = jax.random.split(key)
    x = jax.random.normal(kx, (2, 3, 16, 16), jnp.float32)   # NCHW, like PyTorch
    params = prepare_params(init_raw_params(kp, c_in=3, c1=16))

    fwd = jax.jit(functools.partial(feature_extractor_forward, c_out=16))
    out = jax.block_until_ready(fwd(x, params))
    assert out.shape == (2, 16, 4, 4), out.shape
    assert bool(jnp.all(jnp.isfinite(out)))
    print("KERNEL_OK")
</pallas_src>

<mosaic_0001>
module attributes {stable_mosaic.version = 11 : i64} {
  func.func @_conv1_pool_kernel(%arg0: i32, %arg1: memref<1x11x8x64xbf16, #tpu.memory_space<vmem>>, %arg2: memref<256x128xbf16, #tpu.memory_space<vmem>>, %arg3: memref<1x128xf32, #tpu.memory_space<vmem>>, %arg4: memref<1x6x6x128xbf16, #tpu.memory_space<vmem>>, %arg5: memref<4x9x128xf32, #tpu.memory_space<vmem>>) attributes {dimension_semantics = [#tpu.dimension_semantics<parallel>], iteration_bounds = array<i64: 2>, scalar_prefetch = 0 : i64, scratch_operands = 1 : i64, tpu.core_type = #tpu.core_type<tc>, window_params = [{transform_indices = @transform_0, window_bounds = array<i64: 1, 11, 8, 64>}, {pipeline_mode = #tpu.pipeline_mode<synchronous>, transform_indices = @transform_1, window_bounds = array<i64: 256, 128>}, {pipeline_mode = #tpu.pipeline_mode<synchronous>, transform_indices = @transform_2, window_bounds = array<i64: 1, 128>}, {transform_indices = @transform_3, window_bounds = array<i64: 1, 6, 6, 128>}]} {
    %c0 = arith.constant 0 : index
    %c0_0 = arith.constant 0 : index
    %c0_1 = arith.constant 0 : index
    %c0_2 = arith.constant 0 : index
    %0 = vector.load %arg1[%c0, %c0_0, %c0_1, %c0_2] : memref<1x11x8x64xbf16, #tpu.memory_space<vmem>>, vector<1x8x8x64xbf16>
    %1 = vector.shape_cast %0 : vector<1x8x8x64xbf16> to vector<8x8x64xbf16>
    %2 = vector.shape_cast %1 : vector<8x8x64xbf16> to vector<64x64xbf16>
    %c0_3 = arith.constant 0 : index
    %c1 = arith.constant 1 : index
    %c0_4 = arith.constant 0 : index
    %c0_5 = arith.constant 0 : index
    %3 = vector.load %arg1[%c0_3, %c1, %c0_4, %c0_5] : memref<1x11x8x64xbf16, #tpu.memory_space<vmem>>, vector<1x8x8x64xbf16>
    %4 = vector.shape_cast %3 : vector<1x8x8x64xbf16> to vector<8x8x64xbf16>
    %5 = vector.shape_cast %4 : vector<8x8x64xbf16> to vector<64x64xbf16>
    %c0_6 = arith.constant 0 : index
    %c2 = arith.constant 2 : index
    %c0_7 = arith.constant 0 : index
    %c0_8 = arith.constant 0 : index
    %6 = vector.load %arg1[%c0_6, %c2, %c0_7, %c0_8] : memref<1x11x8x64xbf16, #tpu.memory_space<vmem>>, vector<1x8x8x64xbf16>
    %7 = vector.shape_cast %6 : vector<1x8x8x64xbf16> to vector<8x8x64xbf16>
    %8 = vector.shape_cast %7 : vector<8x8x64xbf16> to vector<64x64xbf16>
    %c0_9 = arith.constant 0 : index
    %c3 = arith.constant 3 : index
    %c0_10 = arith.constant 0 : index
    %c0_11 = arith.constant 0 : index
    %9 = vector.load %arg1[%c0_9, %c3, %c0_10, %c0_11] : memref<1x11x8x64xbf16, #tpu.memory_space<vmem>>, vector<1x8x8x64xbf16>
    %10 = vector.shape_cast %9 : vector<1x8x8x64xbf16> to vector<8x8x64xbf16>
    %11 = vector.shape_cast %10 : vector<8x8x64xbf16> to vector<64x64xbf16>
    %12 = tpu.concatenate %2, %5, %8, %11 in 1 : vector<64x64xbf16>, vector<64x64xbf16>, vector<64x64xbf16>, vector<64x64xbf16> -> vector<64x256xbf16>
    %c0_12 = arith.constant 0 : index
    %c0_13 = arith.constant 0 : index
    %13 = vector.load %arg2[%c0_12, %c0_13] : memref<256x128xbf16, #tpu.memory_space<vmem>>, vector<256x128xbf16>
    %cst = arith.constant dense<0.000000e+00> : vector<64x128xf32>
    %14 = tpu.matmul %12, %13, %cst {dimension_numbers = #tpu.dot_dimension_numbers<[1], [0], [0], [1], [0, 0, 1, 1], [], []>} : vector<64x256xbf16>, vector<256x128xbf16>, vector<64x128xf32> -> vector<64x128xf32>
    %c0_14 = arith.constant 0 : index
    %c0_15 = arith.constant 0 : index
    %15 = vector.load %arg3[%c0_14, %c0_15] : memref<1x128xf32, #tpu.memory_space<vmem>>, vector<1x128xf32>
    %16 = vector.broadcast %15 : vector<1x128xf32> to vector<64x128xf32>
    %17 = arith.addf %14, %16 : vector<64x128xf32>
    %cst_16 = arith.constant 0.000000e+00 : f32
    %18 = vector.broadcast %cst_16 : f32 to vector<64x128xf32>
    %19 = arith.maximumf %17, %18 : vector<64x128xf32>
    %20 = vector.shape_cast %19 : vector<64x128xf32> to vector<8x8x128xf32>
    %cst_17 = arith.constant 0.000000e+00 : f32
    %21 = vector.broadcast %cst_17 : f32 to vector<1x8x128xf32>
    %cst_18 = arith.constant 0.000000e+00 : f32
    %22 = vector.broadcast %cst_18 : f32 to vector<10x1x128xf32>
    %23 = tpu.concatenate %21, %20, %21 in 0 : vector<1x8x128xf32>, vector<8x8x128xf32>, vector<1x8x128xf32> -> vector<10x8x128xf32>
    %24 = tpu.concatenate %22, %23 in 1 : vector<10x1x128xf32>, vector<10x8x128xf32> -> vector<10x9x128xf32>
    %25 = vector.shape_cast %24 : vector<10x9x128xf32> to vector<5x2x9x128xf32>
    %26 = vector.extract_strided_slice %25 {offsets = [0, 0, 0, 0], sizes = [4, 1, 9, 128], strides = [1, 1, 1, 1]} : vector<5x2x9x128xf32> to vector<4x1x9x128xf32>
    %27 = vector.shape_cast %26 : vector<4x1x9x128xf32> to vector<4x9x128xf32>
    %28 = vector.extract_strided_slice %25 {offsets = [0, 1, 0, 0], sizes = [4, 1, 9, 128], strides = [1, 1, 1, 1]} : vector<5x2x9x128xf32> to vector<4x1x9x128xf32>
    %29 = vector.shape_cast %28 : vector<4x1x9x128xf32> to vector<4x9x128xf32>
    %30 = arith.maximumf %27, %29 : vector<4x9x128xf32>
    %31 = vector.extract_strided_slice %25 {offsets = [1, 0, 0, 0], sizes = [4, 1, 9, 128], strides = [1, 1, 1, 1]} : vector<5x2x9x128xf32> to vector<4x1x9x128xf32>
    %32 = vector.shape_cast %31 : vector<4x1x9x128xf32> to vector<4x9x128xf32>
    %33 = arith.maximumf %30, %32 : vector<4x9x128xf32>
    %c0_19 = arith.constant 0 : index
    %c0_20 = arith.constant 0 : index
    %c0_21 = arith.constant 0 : index
    %34 = vector.load %arg5[%c0_19, %c0_20, %c0_21] : memref<4x9x128xf32, #tpu.memory_space<vmem>>, vector<4x9x128xf32>
    tpu.vector_store %arg5[%c0_19, %c0_20, %c0_21], %33 {strides = array<i32>} : memref<4x9x128xf32, #tpu.memory_space<vmem>>, vector<4x9x128xf32>,
    %c0_22 = arith.constant 0 : index
    %c0_23 = arith.constant 0 : index
    %c0_24 = arith.constant 0 : index
    %35 = tpu.strided_load %arg5[%c0_22, %c0_23, %c0_24] {strides = array<i32: 1, 2, 1>} : memref<4x9x128xf32, #tpu.memory_space<vmem>>, vector<4x4x128xf32>
    %c0_25 = arith.constant 0 : index
    %c1_26 = arith.constant 1 : index
    %c0_27 = arith.constant 0 : index
    %36 = tpu.strided_load %arg5[%c0_25, %c1_26, %c0_27] {strides = array<i32: 1, 2, 1>} : memref<4x9x128xf32, #tpu.memory_space<vmem>>, vector<4x4x128xf32>
    %37 = arith.maximumf %35, %36 : vector<4x4x128xf32>
    %c0_28 = arith.constant 0 : index
    %c2_29 = arith.constant 2 : index
    %c0_30 = arith.constant 0 : index
    %38 = tpu.strided_load %arg5[%c0_28, %c2_29, %c0_30] {strides = array<i32: 1, 2, 1>} : memref<4x9x128xf32, #tpu.memory_space<vmem>>, vector<4x4x128xf32>
    %39 = arith.maximumf %37, %38 : vector<4x4x128xf32>
    %cst_31 = arith.constant 0.000000e+00 : f32
    %40 = vector.broadcast %cst_31 : f32 to vector<4x1x128xf32>
    %cst_32 = arith.constant 0.000000e+00 : bf16
    %41 = vector.broadcast %cst_32 : bf16 to vector<6x128xbf16>
    %c0_33 = arith.constant 0 : index
    %c0_34 = arith.constant 0 : index
    %c0_35 = arith.constant 0 : index
    %c0_36 = arith.constant 0 : index
    %42 = vector.load %arg4[%c0_33, %c0_34, %c0_35, %c0_36] : memref<1x6x6x128xbf16, #tpu.memory_space<vmem>>, vector<1x1x6x128xbf16>
    %43 = vector.shape_cast %42 : vector<1x1x6x128xbf16> to vector<6x128xbf16>
    %44 = vector.shape_cast %41 : vector<6x128xbf16> to vector<1x1x6x128xbf16>
    tpu.vector_store %arg4[%c0_33, %c0_34, %c0_35, %c0_36], %44 {strides = array<i32>} : memref<1x6x6x128xbf16, #tpu.memory_space<vmem>>, vector<1x1x6x128xbf16>,
    %cst_37 = arith.constant 0.000000e+00 : bf16
    %45 = vector.broadcast %cst_37 : bf16 to vector<6x128xbf16>
    %c0_38 = arith.constant 0 : index
    %c5 = arith.constant 5 : index
    %c0_39 = arith.constant 0 : index
    %c0_40 = arith.constant 0 : index
    %46 = vector.load %arg4[%c0_38, %c5, %c0_39, %c0_40] : memref<1x6x6x128xbf16, #tpu.memory_space<vmem>>, vector<1x1x6x128xbf16>
    %47 = vector.shape_cast %46 : vector<1x1x6x128xbf16> to vector<6x128xbf16>
    %48 = vector.shape_cast %45 : vector<6x128xbf16> to vector<1x1x6x128xbf16>
    tpu.vector_store %arg4[%c0_38, %c5, %c0_39, %c0_40], %48 {strides = array<i32>} : memref<1x6x6x128xbf16, #tpu.memory_space<vmem>>, vector<1x1x6x128xbf16>,
    %49 = tpu.concatenate %40, %39, %40 in 1 : vector<4x1x128xf32>, vector<4x4x128xf32>, vector<4x1x128xf32> -> vector<4x6x128xf32>
    %50 = arith.truncf %49 : vector<4x6x128xf32> to vector<4x6x128xbf16>
    %c0_41 = arith.constant 0 : index
    %c1_42 = arith.constant 1 : index
    %c0_43 = arith.constant 0 : index
    %c0_44 = arith.constant 0 : index
    %51 = vector.load %arg4[%c0_41, %c1_42, %c0_43, %c0_44] : memref<1x6x6x128xbf16, #tpu.memory_space<vmem>>, vector<1x4x6x128xbf16>
    %52 = vector.shape_cast %51 : vector<1x4x6x128xbf16> to vector<4x6x128xbf16>
    %53 = vector.shape_cast %50 : vector<4x6x128xbf16> to vector<1x4x6x128xbf16>
    tpu.vector_store %arg4[%c0_41, %c1_42, %c0_43, %c0_44], %53 {strides = array<i32>} : memref<1x6x6x128xbf16, #tpu.memory_space<vmem>>, vector<1x4x6x128xbf16>,
    return
  }
  func.func @transform_0(%arg0: i32) -> (i32, i32, i32, i32) {
    %c0_i32 = arith.constant 0 : i32
    %c0_i32_0 = arith.constant 0 : i32
    %c0_i32_1 = arith.constant 0 : i32
    %c0_i32_2 = arith.constant 0 : i32
    return %arg0, %c0_i32, %c0_i32_0, %c0_i32_1 : i32, i32, i32, i32
  }
  func.func @transform_1(%arg0: i32) -> (i32, i32) {
    %c0_i32 = arith.constant 0 : i32
    %c0_i32_0 = arith.constant 0 : i32
    %c0_i32_1 = arith.constant 0 : i32
    return %c0_i32, %c0_i32_0 : i32, i32
  }
  func.func @transform_2(%arg0: i32) -> (i32, i32) {
    %c0_i32 = arith.constant 0 : i32
    %c0_i32_0 = arith.constant 0 : i32
    %c0_i32_1 = arith.constant 0 : i32
    return %c0_i32, %c0_i32_0 : i32, i32
  }
  func.func @transform_3(%arg0: i32) -> (i32, i32, i32, i32) {
    %c0_i32 = arith.constant 0 : i32
    %c0_i32_0 = arith.constant 0 : i32
    %c0_i32_1 = arith.constant 0 : i32
    %c0_i32_2 = arith.constant 0 : i32
    return %arg0, %c0_i32, %c0_i32_0, %c0_i32_1 : i32, i32, i32, i32
  }
}

module attributes {stable_mosaic.version = 11 : i64} {
  func.func @_basic_block_kernel(%arg0: i32, %arg1: memref<1x6x6x128xbf16, #tpu.memory_space<vmem>>, %arg2: memref<9x128x128xbf16, #tpu.memory_space<vmem>>, %arg3: memref<1x128xf32, #tpu.memory_space<vmem>>, %arg4: memref<9x128x128xbf16, #tpu.memory_space<vmem>>, %arg5: memref<1x128xf32, #tpu.memory_space<vmem>>, %arg6: memref<1x6x6x128xbf16, #tpu.memory_space<vmem>>, %arg7: memref<6x6x128xbf16, #tpu.memory_space<vmem>>) attributes {dimension_semantics = [#tpu.dimension_semantics<parallel>], iteration_bounds = array<i64: 2>, scalar_prefetch = 0 : i64, scratch_operands = 1 : i64, tpu.core_type = #tpu.core_type<tc>, window_params = [{transform_indices = @transform_0, window_bounds = array<i64: 1, 6, 6, 128>}, {pipeline_mode = #tpu.pipeline_mode<synchronous>, transform_indices = @transform_1, window_bounds = array<i64: 9, 128, 128>}, {pipeline_mode = #tpu.pipeline_mode<synchronous>, transform_indices = @transform_2, window_bounds = array<i64: 1, 128>}, {pipeline_mode = #tpu.pipeline_mode<synchronous>, transform_indices = @transform_3, window_bounds = array<i64: 9, 128, 128>}, {pipeline_mode = #tpu.pipeline_mode<synchronous>, transform_indices = @transform_4, window_bounds = array<i64: 1, 128>}, {transform_indices = @transform_5, window_bounds = array<i64: 1, 6, 6, 128>}]} {
    %cst = arith.constant 0.000000e+00 : f32
    %0 = vector.broadcast %cst : f32 to vector<16x128xf32>
    %c0 = arith.constant 0 : index
    %c0_0 = arith.constant 0 : index
    %c0_1 = arith.constant 0 : index
    %c0_2 = arith.constant 0 : index
    %1 = vector.load %arg1[%c0, %c0_0, %c0_1, %c0_2] : memref<1x6x6x128xbf16, #tpu.memory_space<vmem>>, vector<1x4x4x128xbf16>
    %2 = vector.shape_cast %1 : vector<1x4x4x128xbf16> to vector<4x4x128xbf16>
    %3 = vector.shape_cast %2 : vector<4x4x128xbf16> to vector<16x128xbf16>
    %c0_3 = arith.constant 0 : index
    %c0_4 = arith.constant 0 : index
    %c0_5 = arith.constant 0 : index
    %4 = vector.load %arg2[%c0_3, %c0_4, %c0_5] : memref<9x128x128xbf16, #tpu.memory_space<vmem>>, vector<1x128x128xbf16>
    %5 = vector.shape_cast %4 : vector<1x128x128xbf16> to vector<128x128xbf16>
    %cst_6 = arith.constant dense<0.000000e+00> : vector<16x128xf32>
    %6 = tpu.matmul %3, %5, %cst_6 {dimension_numbers = #tpu.dot_dimension_numbers<[1], [0], [0], [1], [0, 0, 1, 1], [], []>} : vector<16x128xbf16>, vector<128x128xbf16>, vector<16x128xf32> -> vector<16x128xf32>
    %7 = arith.addf %0, %6 : vector<16x128xf32>
    %c0_7 = arith.constant 0 : index
    %c0_8 = arith.constant 0 : index
    %c1 = arith.constant 1 : index
    %c0_9 = arith.constant 0 : index
    %8 = vector.load %arg1[%c0_7, %c0_8, %c1, %c0_9] : memref<1x6x6x128xbf16, #tpu.memory_space<vmem>>, vector<1x4x4x128xbf16>
    %9 = vector.shape_cast %8 : vector<1x4x4x128xbf16> to vector<4x4x128xbf16>
    %10 = vector.shape_cast %9 : vector<4x4x128xbf16> to vector<16x128xbf16>
    %c1_10 = arith.constant 1 : index
    %c0_11 = arith.constant 0 : index
    %c0_12 = arith.constant 0 : index
    %11 = vector.load %arg2[%c1_10, %c0_11, %c0_12] : memref<9x128x128xbf16, #tpu.memory_space<vmem>>, vector<1x128x128xbf16>
    %12 = vector.shape_cast %11 : vector<1x128x128xbf16> to vector<128x128xbf16>
    %cst_13 = arith.constant dense<0.000000e+00> : vector<16x128xf32>
    %13 = tpu.matmul %10, %12, %cst_13 {dimension_numbers = #tpu.dot_dimension_numbers<[1], [0], [0], [1], [0, 0, 1, 1], [], []>} : vector<16x128xbf16>, vector<128x128xbf16>, vector<16x128xf32> -> vector<16x128xf32>
    %14 = arith.addf %7, %13 : vector<16x128xf32>
    %c0_14 = arith.constant 0 : index
    %c0_15 = arith.constant 0 : index
    %c2 = arith.constant 2 : index
    %c0_16 = arith.constant 0 : index
    %15 = vector.load %arg1[%c0_14, %c0_15, %c2, %c0_16] : memref<1x6x6x128xbf16, #tpu.memory_space<vmem>>, vector<1x4x4x128xbf16>
    %16 = vector.shape_cast %15 : vector<1x4x4x128xbf16> to vector<4x4x128xbf16>
    %17 = vector.shape_cast %16 : vector<4x4x128xbf16> to vector<16x128xbf16>
    %c2_17 = arith.constant 2 : index
    %c0_18 = arith.constant 0 : index
    %c0_19 = arith.constant 0 : index
    %18 = vector.load %arg2[%c2_17, %c0_18, %c0_19] : memref<9x128x128xbf16, #tpu.memory_space<vmem>>, vector<1x128x128xbf16>
    %19 = vector.shape_cast %18 : vector<1x128x128xbf16> to vector<128x128xbf16>
    %cst_20 = arith.constant dense<0.000000e+00> : vector<16x128xf32>
    %20 = tpu.matmul %17, %19, %cst_20 {dimension_numbers = #tpu.dot_dimension_numbers<[1], [0], [0], [1], [0, 0, 1, 1], [], []>} : vector<16x128xbf16>, vector<128x128xbf16>, vector<16x128xf32> -> vector<16x128xf32>
    %21 = arith.addf %14, %20 : vector<16x128xf32>
    %c0_21 = arith.constant 0 : index
    %c1_22 = arith.constant 1 : index
    %c0_23 = arith.constant 0 : index
    %c0_24 = arith.constant 0 : index
    %22 = vector.load %arg1[%c0_21, %c1_22, %c0_23, %c0_24] : memref<1x6x6x128xbf16, #tpu.memory_space<vmem>>, vector<1x4x4x128xbf16>
    %23 = vector.shape_cast %22 : vector<1x4x4x128xbf16> to vector<4x4x128xbf16>
    %24 = vector.shape_cast %23 : vector<4x4x128xbf16> to vector<16x128xbf16>
    %c3 = arith.constant 3 : index
    %c0_25 = arith.constant 0 : index
    %c0_26 = arith.constant 0 : index
    %25 = vector.load %arg2[%c3, %c0_25, %c0_26] : memref<9x128x128xbf16, #tpu.memory_space<vmem>>, vector<1x128x128xbf16>
    %26 = vector.shape_cast %25 : vector<1x128x128xbf16> to vector<128x128xbf16>
    %cst_27 = arith.constant dense<0.000000e+00> : vector<16x128xf32>
    %27 = tpu.matmul %24, %26, %cst_27 {dimension_numbers = #tpu.dot_dimension_numbers<[1], [0], [0], [1], [0, 0, 1, 1], [], []>} : vector<16x128xbf16>, vector<128x128xbf16>, vector<16x128xf32> -> vector<16x128xf32>
    %28 = arith.addf %21, %27 : vector<16x128xf32>
    %c0_28 = arith.constant 0 : index
    %c1_29 = arith.constant 1 : index
    %c1_30 = arith.constant 1 : index
    %c0_31 = arith.constant 0 : index
    %29 = vector.load %arg1[%c0_28, %c1_29, %c1_30, %c0_31] : memref<1x6x6x128xbf16, #tpu.memory_space<vmem>>, vector<1x4x4x128xbf16>
    %30 = vector.shape_cast %29 : vector<1x4x4x128xbf16> to vector<4x4x128xbf16>
    %31 = vector.shape_cast %30 : vector<4x4x128xbf16> to vector<16x128xbf16>
    %c4 = arith.constant 4 : index
    %c0_32 = arith.constant 0 : index
    %c0_33 = arith.constant 0 : index
    %32 = vector.load %arg2[%c4, %c0_32, %c0_33] : memref<9x128x128xbf16, #tpu.memory_space<vmem>>, vector<1x128x128xbf16>
    %33 = vector.shape_cast %32 : vector<1x128x128xbf16> to vector<128x128xbf16>
    %cst_34 = arith.constant dense<0.000000e+00> : vector<16x128xf32>
    %34 = tpu.matmul %31, %33, %cst_34 {dimension_numbers = #tpu.dot_dimension_numbers<[1], [0], [0], [1], [0, 0, 1, 1], [], []>} : vector<16x128xbf16>, vector<128x128xbf16>, vector<16x128xf32> -> vector<16x128xf32>
    %35 = arith.addf %28, %34 : vector<16x128xf32>
    %c0_35 = arith.constant 0 : index
    %c1_36 = arith.constant 1 : index
    %c2_37 = arith.constant 2 : index
    %c0_38 = arith.constant 0 : index
    %36 = vector.load %arg1[%c0_35, %c1_36, %c2_37, %c0_38] : memref<1x6x6x128xbf16, #tpu.memory_space<vmem>>, vector<1x4x4x128xbf16>
    %37 = vector.shape_cast %36 : vector<1x4x4x128xbf16> to vector<4x4x128xbf16>
    %38 = vector.shape_cast %37 : vector<4x4x128xbf16> to vector<16x128xbf16>
    %c5 = arith.constant 5 : index
    %c0_39 = arith.constant 0 : index
    %c0_40 = arith.constant 0 : index
    %39 = vector.load %arg2[%c5, %c0_39, %c0_40] : memref<9x128x128xbf16, #tpu.memory_space<vmem>>, vector<1x128x128xbf16>
    %40 = vector.shape_cast %39 : vector<1x128x128xbf16> to vector<128x128xbf16>
    %cst_41 = arith.constant dense<0.000000e+00> : vector<16x128xf32>
    %41 = tpu.matmul %38, %40, %cst_41 {dimension_numbers = #tpu.dot_dimension_numbers<[1], [0], [0], [1], [0, 0, 1, 1], [], []>} : vector<16x128xbf16>, vector<128x128xbf16>, vector<16x128xf32> -> vector<16x128xf32>
    %42 = arith.addf %35, %41 : vector<16x128xf32>
    %c0_42 = arith.constant 0 : index
    %c2_43 = arith.constant 2 : index
    %c0_44 = arith.constant 0 : index
    %c0_45 = arith.constant 0 : index
    %43 = vector.load %arg1[%c0_42, %c2_43, %c0_44, %c0_45] : memref<1x6x6x128xbf16, #tpu.memory_space<vmem>>, vector<1x4x4x128xbf16>
    %44 = vector.shape_cast %43 : vector<1x4x4x128xbf16> to vector<4x4x128xbf16>
    %45 = vector.shape_cast %44 : vector<4x4x128xbf16> to vector<16x128xbf16>
    %c6 = arith.constant 6 : index
    %c0_46 = arith.constant 0 : index
    %c0_47 = arith.constant 0 : index
    %46 = vector.load %arg2[%c6, %c0_46, %c0_47] : memref<9x128x128xbf16, #tpu.memory_space<vmem>>, vector<1x128x128xbf16>
    %47 = vector.shape_cast %46 : vector<1x128x128xbf16> to vector<128x128xbf16>
    %cst_48 = arith.constant dense<0.000000e+00> : vector<16x128xf32>
    %48 = tpu.matmul %45, %47, %cst_48 {dimension_numbers = #tpu.dot_dimension_numbers<[1], [0], [0], [1], [0, 0, 1, 1], [], []>} : vector<16x128xbf16>, vector<128x128xbf16>, vector<16x128xf32> -> vector<16x128xf32>
    %49 = arith.addf %42, %48 : vector<16x128xf32>
    %c0_49 = arith.constant 0 : index
    %c2_50 = arith.constant 2 : index
    %c1_51 = arith.constant 1 : index
    %c0_52 = arith.constant 0 : index
    %50 = vector.load %arg1[%c0_49, %c2_50, %c1_51, %c0_52] : memref<1x6x6x128xbf16, #tpu.memory_space<vmem>>, vector<1x4x4x128xbf16>
    %51 = vector.shape_cast %50 : vector<1x4x4x128xbf16> to vector<4x4x128xbf16>
    %52 = vector.shape_cast %51 : vector<4x4x128xbf16> to vector<16x128xbf16>
    %c7 = arith.constant 7 : index
    %c0_53 = arith.constant 0 : index
    %c0_54 = arith.constant 0 : index
    %53 = vector.load %arg2[%c7, %c0_53, %c0_54] : memref<9x128x128xbf16, #tpu.memory_space<vmem>>, vector<1x128x128xbf16>
    %54 = vector.shape_cast %53 : vector<1x128x128xbf16> to vector<128x128xbf16>
    %cst_55 = arith.constant dense<0.000000e+00> : vector<16x128xf32>
    %55 = tpu.matmul %52, %54, %cst_55 {dimension_numbers = #tpu.dot_dimension_numbers<[1], [0], [0], [1], [0, 0, 1, 1], [], []>} : vector<16x128xbf16>, vector<128x128xbf16>, vector<16x128xf32> -> vector<16x128xf32>
    %56 = arith.addf %49, %55 : vector<16x128xf32>
    %c0_56 = arith.constant 0 : index
    %c2_57 = arith.constant 2 : index
    %c2_58 = arith.constant 2 : index
    %c0_59 = arith.constant 0 : index
    %57 = vector.load %arg1[%c0_56, %c2_57, %c2_58, %c0_59] : memref<1x6x6x128xbf16, #tpu.memory_space<vmem>>, vector<1x4x4x128xbf16>
    %58 = vector.shape_cast %57 : vector<1x4x4x128xbf16> to vector<4x4x128xbf16>
    %59 = vector.shape_cast %58 : vector<4x4x128xbf16> to vector<16x128xbf16>
    %c8 = arith.constant 8 : index
    %c0_60 = arith.constant 0 : index
    %c0_61 = arith.constant 0 : index
    %60 = vector.load %arg2[%c8, %c0_60, %c0_61] : memref<9x128x128xbf16, #tpu.memory_space<vmem>>, vector<1x128x128xbf16>
    %61 = vector.shape_cast %60 : vector<1x128x128xbf16> to vector<128x128xbf16>
    %cst_62 = arith.constant dense<0.000000e+00> : vector<16x128xf32>
    %62 = tpu.matmul %59, %61, %cst_62 {dimension_numbers = #tpu.dot_dimension_numbers<[1], [0], [0], [1], [0, 0, 1, 1], [], []>} : vector<16x128xbf16>, vector<128x128xbf16>, vector<16x128xf32> -> vector<16x128xf32>
    %63 = arith.addf %56, %62 : vector<16x128xf32>
    %c0_63 = arith.constant 0 : index
    %c0_64 = arith.constant 0 : index
    %64 = vector.load %arg3[%c0_63, %c0_64] : memref<1x128xf32, #tpu.memory_space<vmem>>, vector<1x128xf32>
    %65 = vector.broadcast %64 : vector<1x128xf32> to vector<16x128xf32>
    %66 = arith.addf %63, %65 : vector<16x128xf32>
    %cst_65 = arith.constant 0.000000e+00 : f32
    %67 = vector.broadcast %cst_65 : f32 to vector<16x128xf32>
    %68 = arith.maximumf %66, %67 : vector<16x128xf32>
    %69 = arith.truncf %68 : vector<16x128xf32> to vector<16x128xbf16>
    %70 = vector.shape_cast %69 : vector<16x128xbf16> to vector<4x4x128xbf16>
    %cst_66 = arith.constant 0.000000e+00 : bf16
    %71 = vector.broadcast %cst_66 : bf16 to vector<4x1x128xbf16>
    %cst_67 = arith.constant 0.000000e+00 : bf16
    %72 = vector.broadcast %cst_67 : bf16 to vector<6x128xbf16>
    %c0_68 = arith.constant 0 : index
    %c0_69 = arith.constant 0 : index
    %c0_70 = arith.constant 0 : index
    %73 = vector.load %arg7[%c0_68, %c0_69, %c0_70] : memref<6x6x128xbf16, #tpu.memory_space<vmem>>, vector<1x6x128xbf16>
    %74 = vector.shape_cast %73 : vector<1x6x128xbf16> to vector<6x128xbf16>
    %75 = vector.shape_cast %72 : vector<6x128xbf16> to vector<1x6x128xbf16>
    tpu.vector_store %arg7[%c0_68, %c0_69, %c0_70], %75 {strides = array<i32>} : memref<6x6x128xbf16, #tpu.memory_space<vmem>>, vector<1x6x128xbf16>,
    %cst_71 = arith.constant 0.000000e+00 : bf16
    %76 = vector.broadcast %cst_71 : bf16 to vector<6x128xbf16>
    %c5_72 = arith.constant 5 : index
    %c0_73 = arith.constant 0 : index
    %c0_74 = arith.constant 0 : index
    %77 = vector.load %arg7[%c5_72, %c0_73, %c0_74] : memref<6x6x128xbf16, #tpu.memory_space<vmem>>, vector<1x6x128xbf16>
    %78 = vector.shape_cast %77 : vector<1x6x128xbf16> to vector<6x128xbf16>
    %79 = vector.shape_cast %76 : vector<6x128xbf16> to vector<1x6x128xbf16>
    tpu.vector_store %arg7[%c5_72, %c0_73, %c0_74], %79 {strides = array<i32>} : memref<6x6x128xbf16, #tpu.memory_space<vmem>>, vector<1x6x128xbf16>,
    %80 = tpu.concatenate %71, %70, %71 in 1 : vector<4x1x128xbf16>, vector<4x4x128xbf16>, vector<4x1x128xbf16> -> vector<4x6x128xbf16>
    %c1_75 = arith.constant 1 : index
    %c0_76 = arith.constant 0 : index
    %c0_77 = arith.constant 0 : index
    %81 = vector.load %arg7[%c1_75, %c0_76, %c0_77] : memref<6x6x128xbf16, #tpu.memory_space<vmem>>, vector<4x6x128xbf16>
    tpu.vector_store %arg7[%c1_75, %c0_76, %c0_77], %80 {strides = array<i32>} : memref<6x6x128xbf16, #tpu.memory_space<vmem>>, vector<4x6x128xbf16>,
    %cst_78 = arith.constant 0.000000e+00 : f32
    %82 = vector.broadcast %cst_78 : f32 to vector<16x128xf32>
    %c0_79 = arith.constant 0 : index
    %c0_80 = arith.constant 0 : index
    %c0_81 = arith.constant 0 : index
    %83 = vector.load %arg7[%c0_79, %c0_80, %c0_81] : memref<6x6x128xbf16, #tpu.memory_space<vmem>>, vector<4x4x128xbf16>
    %84 = vector.shape_cast %83 : vector<4x4x128xbf16> to vector<16x128xbf16>
    %c0_82 = arith.constant 0 : index
    %c0_83 = arith.constant 0 : index
    %c0_84 = arith.constant 0 : index
    %85 = vector.load %arg4[%c0_82, %c0_83, %c0_84] : memref<9x128x128xbf16, #tpu.memory_space<vmem>>, vector<1x128x128xbf16>
    %86 = vector.shape_cast %85 : vector<1x128x128xbf16> to vector<128x128xbf16>
    %cst_85 = arith.constant dense<0.000000e+00> : vector<16x128xf32>
    %87 = tpu.matmul %84, %86, %cst_85 {dimension_numbers = #tpu.dot_dimension_numbers<[1], [0], [0], [1], [0, 0, 1, 1], [], []>} : vector<16x128xbf16>, vector<128x128xbf16>, vector<16x128xf32> -> vector<16x128xf32>
    %88 = arith.addf %82, %87 : vector<16x128xf32>
    %c0_86 = arith.constant 0 : index
    %c1_87 = arith.constant 1 : index
    %c0_88 = arith.constant 0 : index
    %89 = vector.load %arg7[%c0_86, %c1_87, %c0_88] : memref<6x6x128xbf16, #tpu.memory_space<vmem>>, vector<4x4x128xbf16>
    %90 = vector.shape_cast %89 : vector<4x4x128xbf16> to vector<16x128xbf16>
    %c1_89 = arith.constant 1 : index
    %c0_90 = arith.constant 0 : index
    %c0_91 = arith.constant 0 : index
    %91 = vector.load %arg4[%c1_89, %c0_90, %c0_91] : memref<9x128x128xbf16, #tpu.memory_space<vmem>>, vector<1x128x128xbf16>
    %92 = vector.shape_cast %91 : vector<1x128x128xbf16> to vector<128x128xbf16>
    %cst_92 = arith.constant dense<0.000000e+00> : vector<16x128xf32>
    %93 = tpu.matmul %90, %92, %cst_92 {dimension_numbers = #tpu.dot_dimension_numbers<[1], [0], [0], [1], [0, 0, 1, 1], [], []>} : vector<16x128xbf16>, vector<128x128xbf16>, vector<16x128xf32> -> vector<16x128xf32>
    %94 = arith.addf %88, %93 : vector<16x128xf32>
    %c0_93 = arith.constant 0 : index
    %c2_94 = arith.constant 2 : index
    %c0_95 = arith.constant 0 : index
    %95 = vector.load %arg7[%c0_93, %c2_94, %c0_95] : memref<6x6x128xbf16, #tpu.memory_space<vmem>>, vector<4x4x128xbf16>
    %96 = vector.shape_cast %95 : vector<4x4x128xbf16> to vector<16x128xbf16>
    %c2_96 = arith.constant 2 : index
    %c0_97 = arith.constant 0 : index
    %c0_98 = arith.constant 0 : index
    %97 = vector.load %arg4[%c2_96, %c0_97, %c0_98] : memref<9x128x128xbf16, #tpu.memory_space<vmem>>, vector<1x128x128xbf16>
    %98 = vector.shape_cast %97 : vector<1x128x128xbf16> to vector<128x128xbf16>
    %cst_99 = arith.constant dense<0.000000e+00> : vector<16x128xf32>
    %99 = tpu.matmul %96, %98, %cst_99 {dimension_numbers = #tpu.dot_dimension_numbers<[1], [0], [0], [1], [0, 0, 1, 1], [], []>} : vector<16x128xbf16>, vector<128x128xbf16>, vector<16x128xf32> -> vector<16x128xf32>
    %100 = arith.addf %94, %99 : vector<16x128xf32>
    %c1_100 = arith.constant 1 : index
    %c0_101 = arith.constant 0 : index
    %c0_102 = arith.constant 0 : index
    %101 = vector.load %arg7[%c1_100, %c0_101, %c0_102] : memref<6x6x128xbf16, #tpu.memory_space<vmem>>, vector<4x4x128xbf16>
    %102 = vector.shape_cast %101 : vector<4x4x128xbf16> to vector<16x128xbf16>
    %c3_103 = arith.constant 3 : index
    %c0_104 = arith.constant 0 : index
    %c0_105 = arith.constant 0 : index
    %103 = vector.load %arg4[%c3_103, %c0_104, %c0_105] : memref<9x128x128xbf16, #tpu.memory_space<vmem>>, vector<1x128x128xbf16>
    %104 = vector.shape_cast %103 : vector<1x128x128xbf16> to vector<128x128xbf16>
    %cst_106 = arith.constant dense<0.000000e+00> : vector<16x128xf32>
    %105 = tpu.matmul %102, %104, %cst_106 {dimension_numbers = #tpu.dot_dimension_numbers<[1], [0], [0], [1], [0, 0, 1, 1], [], []>} : vector<16x128xbf16>, vector<128x128xbf16>, vector<16x128xf32> -> vector<16x128xf32>
    %106 = arith.addf %100, %105 : vector<16x128xf32>
    %c1_107 = arith.constant 1 : index
    %c1_108 = arith.constant 1 : index
    %c0_109 = arith.constant 0 : index
    %107 = vector.load %arg7[%c1_107, %c1_108, %c0_109] : memref<6x6x128xbf16, #tpu.memory_space<vmem>>, vector<4x4x128xbf16>
    %108 = vector.shape_cast %107 : vector<4x4x128xbf16> to vector<16x128xbf16>
    %c4_110 = arith.constant 4 : index
    %c0_111 = arith.constant 0 : index
    %c0_112 = arith.constant 0 : index
    %109 = vector.load %arg4[%c4_110, %c0_111, %c0_112] : memref<9x128x128xbf16, #tpu.memory_space<vmem>>, vector<1x128x128xbf16>
    %110 = vector.shape_cast %109 : vector<1x128x128xbf16> to vector<128x128xbf16>
    %cst_113 = arith.constant dense<0.000000e+00> : vector<16x128xf32>
    %111 = tpu.matmul %108, %110, %cst_113 {dimension_numbers = #tpu.dot_dimension_numbers<[1], [0], [0], [1], [0, 0, 1, 1], [], []>} : vector<16x128xbf16>, vector<128x128xbf16>, vector<16x128xf32> -> vector<16x128xf32>
    %112 = arith.addf %106, %111 : vector<16x128xf32>
    %c1_114 = arith.constant 1 : index
    %c2_115 = arith.constant 2 : index
    %c0_116 = arith.constant 0 : index
    %113 = vector.load %arg7[%c1_114, %c2_115, %c0_116] : memref<6x6x128xbf16, #tpu.memory_space<vmem>>, vector<4x4x128xbf16>
    %114 = vector.shape_cast %113 : vector<4x4x128xbf16> to vector<16x128xbf16>
    %c5_117 = arith.constant 5 : index
    %c0_118 = arith.constant 0 : index
    %c0_119 = arith.constant 0 : index
    %115 = vector.load %arg4[%c5_117, %c0_118, %c0_119] : memref<9x128x128xbf16, #tpu.memory_space<vmem>>, vector<1x128x128xbf16>
    %116 = vector.shape_cast %115 : vector<1x128x128xbf16> to vector<128x128xbf16>
    %cst_120 = arith.constant dense<0.000000e+00> : vector<16x128xf32>
    %117 = tpu.matmul %114, %116, %cst_120 {dimension_numbers = #tpu.dot_dimension_numbers<[1], [0], [0], [1], [0, 0, 1, 1], [], []>} : vector<16x128xbf16>, vector<128x128xbf16>, vector<16x128xf32> -> vector<16x128xf32>
    %118 = arith.addf %112, %117 : vector<16x128xf32>
    %c2_121 = arith.constant 2 : index
    %c0_122 = arith.constant 0 : index
    %c0_123 = arith.constant 0 : index
    %119 = vector.load %arg7[%c2_121, %c0_122, %c0_123] : memref<6x6x128xbf16, #tpu.memory_space<vmem>>, vector<4x4x128xbf16>
    %120 = vector.shape_cast %119 : vector<4x4x128xbf16> to vector<16x128xbf16>
    %c6_124 = arith.constant 6 : index
    %c0_125 = arith.constant 0 : index
    %c0_126 = arith.constant 0 : index
    %121 = vector.load %arg4[%c6_124, %c0_125, %c0_126] : memref<9x128x128xbf16, #tpu.memory_space<vmem>>, vector<1x128x128xbf16>
    %122 = vector.shape_cast %121 : vector<1x128x128xbf16> to vector<128x128xbf16>
    %cst_127 = arith.constant dense<0.000000e+00> : vector<16x128xf32>
    %123 = tpu.matmul %120, %122, %cst_127 {dimension_numbers = #tpu.dot_dimension_numbers<[1], [0], [0], [1], [0, 0, 1, 1], [], []>} : vector<16x128xbf16>, vector<128x128xbf16>, vector<16x128xf32> -> vector<16x128xf32>
    %124 = arith.addf %118, %123 : vector<16x128xf32>
    %c2_128 = arith.constant 2 : index
    %c1_129 = arith.constant 1 : index
    %c0_130 = arith.constant 0 : index
    %125 = vector.load %arg7[%c2_128, %c1_129, %c0_130] : memref<6x6x128xbf16, #tpu.memory_space<vmem>>, vector<4x4x128xbf16>
    %126 = vector.shape_cast %125 : vector<4x4x128xbf16> to vector<16x128xbf16>
    %c7_131 = arith.constant 7 : index
    %c0_132 = arith.constant 0 : index
    %c0_133 = arith.constant 0 : index
    %127 = vector.load %arg4[%c7_131, %c0_132, %c0_133] : memref<9x128x128xbf16, #tpu.memory_space<vmem>>, vector<1x128x128xbf16>
    %128 = vector.shape_cast %127 : vector<1x128x128xbf16> to vector<128x128xbf16>
    %cst_134 = arith.constant dense<0.000000e+00> : vector<16x128xf32>
    %129 = tpu.matmul %126, %128, %cst_134 {dimension_numbers = #tpu.dot_dimension_numbers<[1], [0], [0], [1], [0, 0, 1, 1], [], []>} : vector<16x128xbf16>, vector<128x128xbf16>, vector<16x128xf32> -> vector<16x128xf32>
    %130 = arith.addf %124, %129 : vector<16x128xf32>
    %c2_135 = arith.constant 2 : index
    %c2_136 = arith.constant 2 : index
    %c0_137 = arith.constant 0 : index
    %131 = vector.load %arg7[%c2_135, %c2_136, %c0_137] : memref<6x6x128xbf16, #tpu.memory_space<vmem>>, vector<4x4x128xbf16>
    %132 = vector.shape_cast %131 : vector<4x4x128xbf16> to vector<16x128xbf16>
    %c8_138 = arith.constant 8 : index
    %c0_139 = arith.constant 0 : index
    %c0_140 = arith.constant 0 : index
    %133 = vector.load %arg4[%c8_138, %c0_139, %c0_140] : memref<9x128x128xbf16, #tpu.memory_space<vmem>>, vector<1x128x128xbf16>
    %134 = vector.shape_cast %133 : vector<1x128x128xbf16> to vector<128x128xbf16>
    %cst_141 = arith.constant dense<0.000000e+00> : vector<16x128xf32>
    %135 = tpu.matmul %132, %134, %cst_141 {dimension_numbers = #tpu.dot_dimension_numbers<[1], [0], [0], [1], [0, 0, 1, 1], [], []>} : vector<16x128xbf16>, vector<128x128xbf16>, vector<16x128xf32> -> vector<16x128xf32>
    %136 = arith.addf %130, %135 : vector<16x128xf32>
    %c0_142 = arith.constant 0 : index
    %c1_143 = arith.constant 1 : index
    %c1_144 = arith.constant 1 : index
    %c0_145 = arith.constant 0 : index
    %137 = vector.load %arg1[%c0_142, %c1_143, %c1_144, %c0_145] : memref<1x6x6x128xbf16, #tpu.memory_space<vmem>>, vector<1x4x4x128xbf16>
    %138 = vector.shape_cast %137 : vector<1x4x4x128xbf16> to vector<4x4x128xbf16>
    %139 = vector.shape_cast %138 : vector<4x4x128xbf16> to vector<16x128xbf16>
    %140 = arith.extf %139 : vector<16x128xbf16> to vector<16x128xf32>
    %c0_146 = arith.constant 0 : index
    %c0_147 = arith.constant 0 : index
    %141 = vector.load %arg5[%c0_146, %c0_147] : memref<1x128xf32, #tpu.memory_space<vmem>>, vector<1x128xf32>
    %142 = vector.broadcast %141 : vector<1x128xf32> to vector<16x128xf32>
    %143 = arith.addf %136, %142 : vector<16x128xf32>
    %144 = arith.addf %143, %140 : vector<16x128xf32>
    %cst_148 = arith.constant 0.000000e+00 : f32
    %145 = vector.broadcast %cst_148 : f32 to vector<16x128xf32>
    %146 = arith.maximumf %144, %145 : vector<16x128xf32>
    %147 = arith.truncf %146 : vector<16x128xf32> to vector<16x128xbf16>
    %148 = vector.shape_cast %147 : vector<16x128xbf16> to vector<4x4x128xbf16>
    %cst_149 = arith.constant 0.000000e+00 : bf16
    %149 = vector.broadcast %cst_149 : bf16 to vector<4x1x128xbf16>
    %cst_150 = arith.constant 0.000000e+00 : bf16
    %150 = vector.broadcast %cst_150 : bf16 to vector<6x128xbf16>
    %c0_151 = arith.constant 0 : index
    %c0_152 = arith.constant 0 : index
    %c0_153 = arith.constant 0 : index
    %c0_154 = arith.constant 0 : index
    %151 = vector.load %arg6[%c0_151, %c0_152, %c0_153, %c0_154] : memref<1x6x6x128xbf16, #tpu.memory_space<vmem>>, vector<1x1x6x128xbf16>
    %152 = vector.shape_cast %151 : vector<1x1x6x128xbf16> to vector<6x128xbf16>
    %153 = vector.shape_cast %150 : vector<6x128xbf16> to vector<1x1x6x128xbf16>
    tpu.vector_store %arg6[%c0_151, %c0_152, %c0_153, %c0_154], %153 {strides = array<i32>} : memref<1x6x6x128xbf16, #tpu.memory_space<vmem>>, vector<1x1x6x128xbf16>,
    %cst_155 = arith.constant 0.000000e+00 : bf16
    %154 = vector.broadcast %cst_155 : bf16 to vector<6x128xbf16>
    %c0_156 = arith.constant 0 : index
    %c5_157 = arith.constant 5 : index
    %c0_158 = arith.constant 0 : index
    %c0_159 = arith.constant 0 : index
    %155 = vector.load %arg6[%c0_156, %c5_157, %c0_158, %c0_159] : memref<1x6x6x128xbf16, #tpu.memory_space<vmem>>, vector<1x1x6x128xbf16>
    %156 = vector.shape_cast %155 : vector<1x1x6x128xbf16> to vector<6x128xbf16>
    %157 = vector.shape_cast %154 : vector<6x128xbf16> to vector<1x1x6x128xbf16>
    tpu.vector_store %arg6[%c0_156, %c5_157, %c0_158, %c0_159], %157 {strides = array<i32>} : memref<1x6x6x128xbf16, #tpu.memory_space<vmem>>, vector<1x1x6x128xbf16>,
    %158 = tpu.concatenate %149, %148, %149 in 1 : vector<4x1x128xbf16>, vector<4x4x128xbf16>, vector<4x1x128xbf16> -> vector<4x6x128xbf16>
    %c0_160 = arith.constant 0 : index
    %c1_161 = arith.constant 1 : index
    %c0_162 = arith.constant 0 : index
    %c0_163 = arith.constant 0 : index
    %159 = vector.load %arg6[%c0_160, %c1_161, %c0_162, %c0_163] : memref<1x6x6x128xbf16, #tpu.memory_space<vmem>>, vector<1x4x6x128xbf16>
    %160 = vector.shape_cast %159 : vector<1x4x6x128xbf16> to vector<4x6x128xbf16>
    %161 = vector.shape_cast %158 : vector<4x6x128xbf16> to vector<1x4x6x128xbf16>
    tpu.vector_store %arg6[%c0_160, %c1_161, %c0_162, %c0_163], %161 {strides = array<i32>} : memref<1x6x6x128xbf16, #tpu.memory_space<vmem>>, vector<1x4x6x128xbf16>,
    return
  }
  func.func @transform_0(%arg0: i32) -> (i32, i32, i32, i32) {
    %c0_i32 = arith.constant 0 : i32
    %c0_i32_0 = arith.constant 0 : i32
    %c0_i32_1 = arith.constant 0 : i32
    %c0_i32_2 = arith.constant 0 : i32
    return %arg0, %c0_i32, %c0_i32_0, %c0_i32_1 : i32, i32, i32, i32
  }
  func.func @transform_1(%arg0: i32) -> (i32, i32, i32) {
    %c0_i32 = arith.constant 0 : i32
    %c0_i32_0 = arith.constant 0 : i32
    %c0_i32_1 = arith.constant 0 : i32
    %c0_i32_2 = arith.constant 0 : i32
    return %c0_i32, %c0_i32_0, %c0_i32_1 : i32, i32, i32
  }
  func.func @transform_2(%arg0: i32) -> (i32, i32) {
    %c0_i32 = arith.constant 0 : i32
    %c0_i32_0 = arith.constant 0 : i32
    %c0_i32_1 = arith.constant 0 : i32
    return %c0_i32, %c0_i32_0 : i32, i32
  }
  func.func @transform_3(%arg0: i32) -> (i32, i32, i32) {
    %c0_i32 = arith.constant 0 : i32
    %c0_i32_0 = arith.constant 0 : i32
    %c0_i32_1 = arith.constant 0 : i32
    %c0_i32_2 = arith.constant 0 : i32
    return %c0_i32, %c0_i32_0, %c0_i32_1 : i32, i32, i32
  }
  func.func @transform_4(%arg0: i32) -> (i32, i32) {
    %c0_i32 = arith.constant 0 : i32
    %c0_i32_0 = arith.constant 0 : i32
    %c0_i32_1 = arith.constant 0 : i32
    return %c0_i32, %c0_i32_0 : i32, i32
  }
  func.func @transform_5(%arg0: i32) -> (i32, i32, i32, i32) {
    %c0_i32 = arith.constant 0 : i32
    %c0_i32_0 = arith.constant 0 : i32
    %c0_i32_1 = arith.constant 0 : i32
    %c0_i32_2 = arith.constant 0 : i32
    return %arg0, %c0_i32, %c0_i32_0, %c0_i32_1 : i32, i32, i32, i32
  }
}

</mosaic_0001>

<llo_original>
// kernel: feature_extractor_forward.3
$region0: #{feature_extractor_forward.3}
  #allocation0 [shape = 'u32[]', space=smem, size = 0x4, offset = 0x4, fixed_abs, tag = 'smem constant byte address 0x4 - core index']
  #allocation1 [shape = 'u32[144,128]{1,0:T(1,128)}', space=vmem, size = 0x12000, scoped, tag = 'internal scratch']
  #allocation2 [shape = 'f32[4,9,128]{2,1,0:T(8,128)}', space=vmem, size = 0x8000, scoped, tag = 'scratch operand']
  %s0 = inlined_call_operand.vmem [shape: bf16[2,11,8,64], index: 0, kind: input, shape index: {}]
  %s1 = inlined_call_operand.vmem [shape: bf16[256,128], index: 1, kind: input, shape index: {}]
  %s2 = inlined_call_operand.vmem [shape: f32[1,128], index: 2, kind: input, shape index: {}]
  %s3 = inlined_call_operand.vmem [shape: bf16[2,6,6,128], index: 3, kind: output, shape index: {}]
  %s4 = sld [smem:[#allocation0]]
  $region45: #{feature_extractor_forward.3} parent=0
    _
  %s6 = ssub.s32 1, %s4
  %s7 = scalar_select 0, %s6, %s4
  loop: start=0, step=1, limit=4
  $region2: #{feature_extractor_forward.3} parent=0 // loop_pre_header
    _
  $region3: #{feature_extractor_forward.3} parent=0 // loop_header
    %s9 = sphi 0, %s13
    %p10 = scmp.ge.s32.totalorder %s9, 4
    %s19 = sphi 0, %s21
    %s22 = sphi 0, %s19
    %s23 = sphi 0, %s22
    %s39 = sphi 0, %s23
    %s43 = sphi 0, %s43
    %s45 = sphi 0, %s43
    %s46 = sphi 0, %s45
    %s60 = sphi 0, %s46
    %s64 = sphi 0, %s64
    %s66 = sphi 0, %s64
    %s67 = sphi 0, %s66
    %s81 = sphi 0, %s67
    %s87 = sphi 0, %s89
    %s90 = sphi 0, %s87
    %s91 = sphi 0, %s90
    %s107 = sphi 0, %s91
  $region4: #{feature_extractor_forward.3} parent=0 // loop_header_branch
    %12 = sbr.rel (%p10) target = $region8
  $region5: #{feature_extractor_forward.3} parent=0 // loop_body
    %s14 = ssub.s32 %s9, 1
    %s15 = ssub.s32 %s9, 2
    %s16 = sadd.s32 %s9, 1
    %s17 = ssub.s32 %s9, %s16
    %p18 = scmp.eq.s32.totalorder %s17, 0
    %s20 = sadd.s32 %s19, 1
    %s21 = scalar_select %p18, %s19, %s20
    %p24 = pneg %p18
    %p25 = scmp.eq.s32.totalorder %s9, 1
    %p26 = por %p24, %p25
    %p27 = scmp.ne.s32.totalorder %s19, %s22
    %p28 = scmp.eq.s32.totalorder %s9, 0
    %p29 = por %p27, %p28
    %p30 = scmp.ne.s32.totalorder %s19, %s22
    %p31 = scmp.eq.s32.totalorder %s14, 1
    %p32 = por %p30, %p31
    %p33 = scmp.ne.s32.totalorder %s22, %s23
    %p34 = scmp.eq.s32.totalorder %s14, 0
    %p35 = por %p33, %p34
    %p36 = scmp.ne.s32.totalorder %s22, %s23
    %p37 = scmp.eq.s32.totalorder %s15, 1
    %p38 = por %p36, %p37
    %p40 = scmp.ne.s32.totalorder %s23, %s39
    %p41 = scmp.eq.s32.totalorder %s15, 0
    %p42 = por %p40, %p41
    %s44 = sadd.s32 %s43, 1
    %p47 = scmp.eq.s32.totalorder %s9, 1
    %p48 = scmp.ne.s32.totalorder %s43, %s45
    %p49 = scmp.eq.s32.totalorder %s9, 0
    %p50 = por %p48, %p49
    %p51 = scmp.ne.s32.totalorder %s43, %s45
    %p52 = scmp.eq.s32.totalorder %s14, 1
    %p53 = por %p51, %p52
    %p54 = scmp.ne.s32.totalorder %s45, %s46
    %p55 = scmp.eq.s32.totalorder %s14, 0
    %p56 = por %p54, %p55
    %p57 = scmp.ne.s32.totalorder %s45, %s46
    %p58 = scmp.eq.s32.totalorder %s15, 1
    %p59 = por %p57, %p58
    %p61 = scmp.ne.s32.totalorder %s46, %s60
    %p62 = scmp.eq.s32.totalorder %s15, 0
    %p63 = por %p61, %p62
    %s65 = sadd.s32 %s64, 1
    %p68 = scmp.eq.s32.totalorder %s9, 1
    %p69 = scmp.ne.s32.totalorder %s64, %s66
    %p70 = scmp.eq.s32.totalorder %s9, 0
    %p71 = por %p69, %p70
    %p72 = scmp.ne.s32.totalorder %s64, %s66
    %p73 = scmp.eq.s32.totalorder %s14, 1
    %p74 = por %p72, %p73
    %p75 = scmp.ne.s32.totalorder %s66, %s67
    %p76 = scmp.eq.s32.totalorder %s14, 0
    %p77 = por %p75, %p76
    %p78 = scmp.ne.s32.totalorder %s66, %s67
    %p79 = scmp.eq.s32.totalorder %s15, 1
    %p80 = por %p78, %p79
    %p82 = scmp.ne.s32.totalorder %s67, %s81
    %p83 = scmp.eq.s32.totalorder %s15, 0
    %p84 = por %p82, %p83
    %s85 = ssub.s32 %s9, %s16
    %p86 = scmp.eq.s32.totalorder %s85, 0
    %s88 = sadd.s32 %s87, 1
    %s89 = scalar_select %p86, %s87, %s88
    %p92 = pneg %p86
    %p93 = scmp.eq.s32.totalorder %s9, 1
    %p94 = por %p92, %p93
    %p95 = scmp.ne.s32.totalorder %s87, %s90
    %p96 = scmp.eq.s32.totalorder %s9, 0
    %p97 = por %p95, %p96
    %p98 = scmp.ne.s32.totalorder %s87, %s90
    %p99 = scmp.eq.s32.totalorder %s14, 1
    %p100 = por %p98, %p99
    %p101 = scmp.ne.s32.totalorder %s90, %s91
    %p102 = scmp.eq.s32.totalorder %s14, 0
    %p103 = por %p101, %p102
    %p104 = scmp.ne.s32.totalorder %s90, %s91
    %p105 = scmp.eq.s32.totalorder %s15, 1
    %p106 = por %p104, %p105
    %p108 = scmp.ne.s32.totalorder %s91, %s107
    %p109 = scmp.eq.s32.totalorder %s15, 0
    %p110 = por %p108, %p109
    %p111 = scmp.le.s32.totalorder 1, %s9
    %p112 = scmp.lt.s32.totalorder %s9, 3
    %p113 = pnand %p111, %p112
    %p114 = pneg %p113
    // Predicated region
    $region9: #{feature_extractor_forward.3} parent=5 // pred_check
      _
    $region10: #{feature_extractor_forward.3} parent=5 // pred_check_branch
      %116 = sbr.rel (%p113) target = $region12
    $region11: #{feature_extractor_forward.3} parent=5 // pred_region
      %s117 = ssub.s32 %s9, 1
      // Predicated region
      $region13: #{feature_extractor_forward.3} parent=11 // pred_check
        %p118 = pneg %p56
      $region14: #{feature_extractor_forward.3} parent=11 // pred_check_branch
        %120 = sbr.rel (%p118) target = $region16
      $region15: #{feature_extractor_forward.3} parent=11 // pred_region
        _
      $region16: #{feature_extractor_forward.3} parent=11 // pred_fallthru
        _
      // Predicated region
      $region17: #{feature_extractor_forward.3} parent=11 // pred_check
        %p121 = pneg %p77
      $region18: #{feature_extractor_forward.3} parent=11 // pred_check_branch
        %123 = sbr.rel (%p121) target = $region20
      $region19: #{feature_extractor_forward.3} parent=11 // pred_region
        _
      $region20: #{feature_extractor_forward.3} parent=11 // pred_fallthru
        _
    $region12: #{feature_extractor_forward.3} parent=5 // pred_fallthru
      _
    %p124 = scmp.lt.s32.totalorder %s9, 2
    // Predicated region
    $region21: #{feature_extractor_forward.3} parent=5 // pred_check
      %p125 = pneg %p124
    $region22: #{feature_extractor_forward.3} parent=5 // pred_check_branch
      %127 = sbr.rel (%p125) target = $region24
    $region23: #{feature_extractor_forward.3} parent=5 // pred_region
      // Predicated region
      $region25: #{feature_extractor_forward.3} parent=23 // pred_check
        %p128 = pneg %p29
      $region26: #{feature_extractor_forward.3} parent=23 // pred_check_branch
        %130 = sbr.rel (%p128) target = $region28
      $region27: #{feature_extractor_forward.3} parent=23 // pred_region
        %p131 = scmp.lt.s32.totalorder %s9, 1
        %s132 = scalar_select %p131, %s9, 1
        %s133 = smul.addr %s132, 11
        %s134 = smul.addr %s133, 4
        %s135 = scalar_lea.vmem %s0, %s134
      $region28: #{feature_extractor_forward.3} parent=23 // pred_fallthru
        _
    $region24: #{feature_extractor_forward.3} parent=5 // pred_fallthru
      _
    %p136 = scmp.le.s32.totalorder 1, %s9
    %p137 = scmp.lt.s32.totalorder %s9, 3
    %p138 = pnand %p136, %p137
    %p139 = pneg %p138
    // Predicated region
    $region29: #{feature_extractor_forward.3} parent=5 // pred_check
      _
    $region30: #{feature_extractor_forward.3} parent=5 // pred_check_branch
      %141 = sbr.rel (%p138) target = $region32
    $region31: #{feature_extractor_forward.3} parent=5 // pred_region
      %s142 = ssub.s32 %s9, 1
      %p143 = scmp.lt.s32.totalorder %s14, 1
      %s144 = scalar_select %p143, %s14, 1
      %s145 = smul.addr %s144, 11
      %s146 = smul.addr %s145, 4
      %s147 = scalar_lea.vmem %s0, %s146
      %p148 = pneg %p35
      %p149 = pneg %p32
      %p150 = pneg %p56
      %p151 = pneg %p53
      %p152 = pneg %p77
      %p153 = pneg %p74
      %p154 = pneg %p103
      %p155 = pneg %p100
      %p156 = scmp.lt.s32.totalorder %s14, 1
      %s157 = scalar_select %p156, %s14, 1
      %s158 = smul.addr %s157, 6
      %s159 = smul.addr %s158, 4
      %s160 = scalar_lea.vmem %s3, %s159
      %p161 = scmp.lt.s32.totalorder %s14, 1
      %s162 = scalar_select %p161, %s14, 1
      %s163 = smul.addr %s162, 11
      %s164 = smul.addr %s163, 4
      %s165 = scalar_lea.vmem %s0, %s164
      %p166 = scmp.lt.s32.totalorder %s14, 1
      %s167 = scalar_select %p166, %s14, 1
      %s168 = smul.addr %s167, 6
      %s169 = smul.addr %s168, 4
      %s170 = scalar_lea.vmem %s3, %s169
      %v172 = vld [vmem:[%s165] sm:$0xf]
      %v173 = vld [vmem:[%s165 + $0x4] sm:$0xf]
      %v174 = vld [vmem:[%s165 + $0x8] sm:$0xf]
      %v175 = vld [vmem:[%s165 + $0xc] sm:$0xf]
      %v176 = vld [vmem:[%s165 + $0x10] sm:$0xf]
      %v177 = vld [vmem:[%s165 + $0x14] sm:$0xf]
      %v178 = vld [vmem:[%s165 + $0x18] sm:$0xf]
      %v179 = vld [vmem:[%s165 + $0x1c] sm:$0xf]
      %s180 = scalar_lea.vmem %s165, 4
      %v181 = vld [vmem:[%s180] sm:$0xf]
      %v182 = vld [vmem:[%s180 + $0x4] sm:$0xf]
      %v183 = vld [vmem:[%s180 + $0x8] sm:$0xf]
      %v184 = vld [vmem:[%s180 + $0xc] sm:$0xf]
      %v185 = vld [vmem:[%s180 + $0x10] sm:$0xf]
      %v186 = vld [vmem:[%s180 + $0x14] sm:$0xf]
      %v187 = vld [vmem:[%s180 + $0x18] sm:$0xf]
      %v188 = vld [vmem:[%s180 + $0x1c] sm:$0xf]
      %s189 = scalar_lea.vmem %s165, 8
      %v190 = vld [vmem:[%s189] sm:$0xf]
      %v191 = vld [vmem:[%s189 + $0x4] sm:$0xf]
      %v192 = vld [vmem:[%s189 + $0x8] sm:$0xf]
      %v193 = vld [vmem:[%s189 + $0xc] sm:$0xf]
      %v194 = vld [vmem:[%s189 + $0x10] sm:$0xf]
      %v195 = vld [vmem:[%s189 + $0x14] sm:$0xf]
      %v196 = vld [vmem:[%s189 + $0x18] sm:$0xf]
      %v197 = vld [vmem:[%s189 + $0x1c] sm:$0xf]
      %s198 = scalar_lea.vmem %s165, 12
      %v199 = vld [vmem:[%s198] sm:$0xf]
      %v200 = vld [vmem:[%s198 + $0x4] sm:$0xf]
      %v201 = vld [vmem:[%s198 + $0x8] sm:$0xf]
      %v202 = vld [vmem:[%s198 + $0xc] sm:$0xf]
      %v203 = vld [vmem:[%s198 + $0x10] sm:$0xf]
      %v204 = vld [vmem:[%s198 + $0x14] sm:$0xf]
      %v205 = vld [vmem:[%s198 + $0x18] sm:$0xf]
      %v206 = vld [vmem:[%s198 + $0x1c] sm:$0xf]
      %v215 = vunpack.c.l.b16 %v172
      %v216 = vunpack.c.l.b16 %v173
      %v217 = vunpack.c.l.b16 %v174
      %v218 = vunpack.c.l.b16 %v175
      %v219 = vunpack.c.l.b16 %v176
      %v220 = vunpack.c.l.b16 %v177
      %v221 = vunpack.c.l.b16 %v178
      %v222 = vunpack.c.l.b16 %v179
      %v223 = vpack.c.b16 %v216, %v215
      %v224 = vpack.c.b16 %v218, %v217
      %v225 = vpack.c.b16 %v220, %v219
      %v226 = vpack.c.b16 %v222, %v221
      %v235 = vunpack.c.l.b16 %v181
      %v236 = vunpack.c.l.b16 %v182
      %v237 = vunpack.c.l.b16 %v183
      %v238 = vunpack.c.l.b16 %v184
      %v239 = vunpack.c.l.b16 %v185
      %v240 = vunpack.c.l.b16 %v186
      %v241 = vunpack.c.l.b16 %v187
      %v242 = vunpack.c.l.b16 %v188
      %v243 = vpack.c.b16 %v236, %v235
      %v244 = vpack.c.b16 %v238, %v237
      %v245 = vpack.c.b16 %v240, %v239
      %v246 = vpack.c.b16 %v242, %v241
      %247 = vrot.lane.b32.xlu0 %v243, 64
      %v248 = vpop.permute.xlu0 %247
      %249 = vrot.lane.b32.xlu0 %v244, 64
      %v250 = vpop.permute.xlu0 %249
      %251 = vrot.lane.b32.xlu0 %v245, 64
      %v252 = vpop.permute.xlu0 %251
      %253 = vrot.lane.b32.xlu0 %v246, 64
      %v254 = vpop.permute.xlu0 %253
      %v263 = vunpack.c.l.b16 %v190
      %v264 = vunpack.c.l.b16 %v191
      %v265 = vunpack.c.l.b16 %v192
      %v266 = vunpack.c.l.b16 %v193
      %v267 = vunpack.c.l.b16 %v194
      %v268 = vunpack.c.l.b16 %v195
      %v269 = vunpack.c.l.b16 %v196
      %v270 = vunpack.c.l.b16 %v197
      %v271 = vpack.c.b16 %v264, %v263
      %v272 = vpack.c.b16 %v266, %v265
      %v273 = vpack.c.b16 %v268, %v267
      %v274 = vpack.c.b16 %v270, %v269
      %v283 = vunpack.c.l.b16 %v199
      %v284 = vunpack.c.l.b16 %v200
      %v285 = vunpack.c.l.b16 %v201
      %v286 = vunpack.c.l.b16 %v202
      %v287 = vunpack.c.l.b16 %v203
      %v288 = vunpack.c.l.b16 %v204
      %v289 = vunpack.c.l.b16 %v205
      %v290 = vunpack.c.l.b16 %v206
      %v291 = vpack.c.b16 %v284, %v283
      %v292 = vpack.c.b16 %v286, %v285
      %v293 = vpack.c.b16 %v288, %v287
      %v294 = vpack.c.b16 %v290, %v289
      %295 = vrot.lane.b32.xlu0 %v291, 64
      %v296 = vpop.permute.xlu0 %295
      %297 = vrot.lane.b32.xlu0 %v292, 64
      %v298 = vpop.permute.xlu0 %297
      %299 = vrot.lane.b32.xlu0 %v293, 64
      %v300 = vpop.permute.xlu0 %299
      %301 = vrot.lane.b32.xlu0 %v294, 64
      %v302 = vpop.permute.xlu0 %301
      %vm303 = vcmask 523264
      %v306 = vsel %vm303, %v223, %v248
      %v310 = vsel %vm303, %v224, %v250
      %v314 = vsel %vm303, %v225, %v252
      %v318 = vsel %vm303, %v226, %v254
      %v322 = vsel %vm303, %v271, %v296
      %v326 = vsel %vm303, %v272, %v298
      %v330 = vsel %vm303, %v273, %v300
      %v334 = vsel %vm303, %v274, %v302
      %v336 = vld [vmem:[%s1] sm:$0xf]
      %v337 = vld [vmem:[%s1 + $0x4] sm:$0xf]
      %v338 = vld [vmem:[%s1 + $0x8] sm:$0xf]
      %v339 = vld [vmem:[%s1 + $0xc] sm:$0xf]
      %v340 = vld [vmem:[%s1 + $0x10] sm:$0xf]
      %v341 = vld [vmem:[%s1 + $0x14] sm:$0xf]
      %v342 = vld [vmem:[%s1 + $0x18] sm:$0xf]
      %v343 = vld [vmem:[%s1 + $0x1c] sm:$0xf]
      %v344 = vld [vmem:[%s1 + $0x20] sm:$0xf]
      %v345 = vld [vmem:[%s1 + $0x24] sm:$0xf]
      %v346 = vld [vmem:[%s1 + $0x28] sm:$0xf]
      %v347 = vld [vmem:[%s1 + $0x2c] sm:$0xf]
      %v348 = vld [vmem:[%s1 + $0x30] sm:$0xf]
      %v349 = vld [vmem:[%s1 + $0x34] sm:$0xf]
      %v350 = vld [vmem:[%s1 + $0x38] sm:$0xf]
      %v351 = vld [vmem:[%s1 + $0x3c] sm:$0xf]
      %v352 = vld [vmem:[%s1 + $0x40] sm:$0xf]
      %v353 = vld [vmem:[%s1 + $0x44] sm:$0xf]
      %v354 = vld [vmem:[%s1 + $0x48] sm:$0xf]
      %v355 = vld [vmem:[%s1 + $0x4c] sm:$0xf]
      %v356 = vld [vmem:[%s1 + $0x50] sm:$0xf]
      %v357 = vld [vmem:[%s1 + $0x54] sm:$0xf]
      %v358 = vld [vmem:[%s1 + $0x58] sm:$0xf]
      %v359 = vld [vmem:[%s1 + $0x5c] sm:$0xf]
      %v360 = vld [vmem:[%s1 + $0x60] sm:$0xf]
      %v361 = vld [vmem:[%s1 + $0x64] sm:$0xf]
      %v362 = vld [vmem:[%s1 + $0x68] sm:$0xf]
      %v363 = vld [vmem:[%s1 + $0x6c] sm:$0xf]
      %v364 = vld [vmem:[%s1 + $0x70] sm:$0xf]
      %v365 = vld [vmem:[%s1 + $0x74] sm:$0xf]
      %v366 = vld [vmem:[%s1 + $0x78] sm:$0xf]
      %v367 = vld [vmem:[%s1 + $0x7c] sm:$0xf]
      %v368 = vld [vmem:[%s2] sm:$0x1]
      %v370 = vlaneseq
      %v371 = vshrl.u32 %v370, 7
      %v372 = vsub.s32 0, %v371
      %v373 = vrot.slane %v368, %v372
      %v407 = vunpack.c.l.b16 %v336
      %v408 = vunpack.c.l.b16 %v337
      %v409 = vunpack.c.l.b16 %v338
      %v410 = vunpack.c.l.b16 %v339
      %v411 = vunpack.c.l.b16 %v340
      %v412 = vunpack.c.l.b16 %v341
      %v413 = vunpack.c.l.b16 %v342
      %v414 = vunpack.c.l.b16 %v343
      %v415 = vunpack.c.l.b16 %v344
      %v416 = vunpack.c.l.b16 %v345
      %v417 = vunpack.c.l.b16 %v346
      %v418 = vunpack.c.l.b16 %v347
      %v419 = vunpack.c.l.b16 %v348
      %v420 = vunpack.c.l.b16 %v349
      %v421 = vunpack.c.l.b16 %v350
      %v422 = vunpack.c.l.b16 %v351
      %v423 = vunpack.c.l.b16 %v352
      %v424 = vunpack.c.l.b16 %v353
      %v425 = vunpack.c.l.b16 %v354
      %v426 = vunpack.c.l.b16 %v355
      %v427 = vunpack.c.l.b16 %v356
      %v428 = vunpack.c.l.b16 %v357
      %v429 = vunpack.c.l.b16 %v358
      %v430 = vunpack.c.l.b16 %v359
      %v431 = vunpack.c.l.b16 %v360
      %v432 = vunpack.c.l.b16 %v361
      %v433 = vunpack.c.l.b16 %v362
      %v434 = vunpack.c.l.b16 %v363
      %v435 = vunpack.c.l.b16 %v364
      %v436 = vunpack.c.l.b16 %v365
      %v437 = vunpack.c.l.b16 %v366
      %v438 = vunpack.c.l.b16 %v367
      %v439 = vpack.c.b16 %v408, %v407
      %v440 = vpack.c.b16 %v410, %v409
      %v441 = vpack.c.b16 %v412, %v411
      %v442 = vpack.c.b16 %v414, %v413
      %v443 = vpack.c.b16 %v416, %v415
      %v444 = vpack.c.b16 %v418, %v417
      %v445 = vpack.c.b16 %v420, %v419
      %v446 = vpack.c.b16 %v422, %v421
      %v447 = vpack.c.b16 %v424, %v423
      %v448 = vpack.c.b16 %v426, %v425
      %v449 = vpack.c.b16 %v428, %v427
      %v450 = vpack.c.b16 %v430, %v429
      %v451 = vpack.c.b16 %v432, %v431
      %v452 = vpack.c.b16 %v434, %v433
      %v453 = vpack.c.b16 %v436, %v435
      %v454 = vpack.c.b16 %v438, %v437
      %471 = vmatprep.subr.bf16.mxu0 0
      %472 = vmatpush1.bf16.msra.mxu0 %v439
      %473 = vmatprep.subr.bf16.mxu0 0
      %474 = vmatpush1.bf16.msra.mxu0 %v440
      %475 = vmatprep.subr.bf16.mxu0 0
      %476 = vmatpush1.bf16.msra.mxu0 %v441
      %477 = vmatprep.subr.bf16.mxu0 0
      %478 = vmatpush1.bf16.msra.mxu0 %v442
      %479 = vmatprep.subr.bf16.mxu0 0
      %480 = vmatpush1.bf16.msra.mxu0 %v443
      %481 = vmatprep.subr.bf16.mxu0 0
      %482 = vmatpush1.bf16.msra.mxu0 %v444
      %483 = vmatprep.subr.bf16.mxu0 0
      %484 = vmatpush1.bf16.msra.mxu0 %v445
      %485 = vmatprep.subr.bf16.mxu0 0
      %486 = vmatpush1.bf16.msra.mxu0 %v446
      %487 = vmatprep.subr.bf16.mxu0 0
      %488 = vmatpush1.bf16.msra.mxu0 %v447
      %489 = vmatprep.subr.bf16.mxu0 0
      %490 = vmatpush1.bf16.msra.mxu0 %v448
      %491 = vmatprep.subr.bf16.mxu0 0
      %492 = vmatpush1.bf16.msra.mxu0 %v449
      %493 = vmatprep.subr.bf16.mxu0 0
      %494 = vmatpush1.bf16.msra.mxu0 %v450
      %495 = vmatprep.subr.bf16.mxu0 0
      %496 = vmatpush1.bf16.msra.mxu0 %v451
      %497 = vmatprep.subr.bf16.mxu0 0
      %498 = vmatpush1.bf16.msra.mxu0 %v452
      %499 = vmatprep.subr.bf16.mxu0 0
      %500 = vmatpush1.bf16.msra.mxu0 %v453
      %501 = vmatprep.subr.bf16.mxu0 0
      %502 = vmatpush1.bf16.msra.mxu0 %v454
      %503 = vmatprep.mubr.bf16.mxu0 %v322
      %504 = vmatmul.mubr.bf16.gmra.mrb[0].mxu0 %v306
      %v505 = vpop.f32.mrb[0].mxu0
      %v506 = vadd.f32 %v373, %v505
      %v507 = vpop.f32.mrb[0].mxu0
      %v508 = vpop.f32.mrb[0].mxu0
      %v509 = vadd.f32 %v373, %v508
      %v510 = vpop.f32.mrb[0].mxu0
      %511 = vmatprep.mubr.bf16.mxu0 %v326
      %512 = vmatmul.mubr.bf16.gmra.mrb[0].mxu0 %v310
      %v513 = vpop.f32.mrb[0].mxu0
      %v514 = vadd.f32 %v373, %v513
      %v515 = vpop.f32.mrb[0].mxu0
      %v516 = vpop.f32.mrb[0].mxu0
      %v517 = vadd.f32 %v373, %v516
      %v518 = vpop.f32.mrb[0].mxu0
      %519 = vmatprep.mubr.bf16.mxu0 %v330
      %520 = vmatmul.mubr.bf16.gmra.mrb[0].mxu0 %v314
      %v521 = vpop.f32.mrb[0].mxu0
      %v522 = vadd.f32 %v373, %v521
      %v523 = vpop.f32.mrb[0].mxu0
      %v524 = vpop.f32.mrb[0].mxu0
      %v525 = vadd.f32 %v373, %v524
      %v526 = vpop.f32.mrb[0].mxu0
      %527 = vmatprep.mubr.bf16.mxu0 %v334
      %528 = vmatmul.mubr.bf16.gmra.mrb[0].mxu0 %v318
      %v529 = vpop.f32.mrb[0].mxu0
      %v530 = vadd.f32 %v373, %v529
      %v531 = vpop.f32.mrb[0].mxu0
      %v532 = vpop.f32.mrb[0].mxu0
      %v533 = vadd.f32 %v373, %v532
      %v534 = vpop.f32.mrb[0].mxu0
      %535 = vdwg.mxu0
      %v536 = vmax.f32 %v506, 0.0
      %v537 = vmax.f32 %v509, 0.0
      %v538 = vmax.f32 %v514, 0.0
      %v539 = vmax.f32 %v517, 0.0
      %v540 = vmax.f32 %v522, 0.0
      %v541 = vmax.f32 %v525, 0.0
      %v542 = vmax.f32 %v530, 0.0
      %v543 = vmax.f32 %v533, 0.0
      %v553 = vrot.slane 0.0, 7
      %v554 = vrot.slane %v536, 7
      %v555 = vrot.slane %v537, 7
      %v556 = vrot.slane %v538, 7
      %v557 = vrot.slane %v539, 7
      %v558 = vrot.slane %v540, 7
      %v559 = vrot.slane %v541, 7
      %v560 = vrot.slane %v542, 7
      %v561 = vrot.slane %v543, 7
      %vm571 = vcmask 1040384
      %v572 = vsel %vm571, 0.0, %v553
      %v573 = vsel %vm571, 0.0, %v554
      %v574 = vsel %vm571, 0.0, %v555
      %v575 = vsel %vm571, 0.0, %v556
      %v576 = vsel %vm571, 0.0, %v557
      %v577 = vsel %vm571, 0.0, %v558
      %v578 = vsel %vm571, 0.0, %v559
      %v579 = vsel %vm571, 0.0, %v560
      %v580 = vsel %vm571, 0.0, %v561
      %v581 = vmax.f32 %v572, %v573
      %v582 = vmax.f32 %v553, %v554
      %v583 = vmax.f32 %v574, %v575
      %v584 = vmax.f32 %v555, %v556
      %v585 = vmax.f32 %v576, %v577
      %v586 = vmax.f32 %v557, %v558
      %v587 = vmax.f32 %v578, %v579
      %v588 = vmax.f32 %v559, %v560
      %v589 = vmax.f32 %v581, %v574
      %v590 = vmax.f32 %v582, %v555
      %v591 = vmax.f32 %v583, %v576
      %v592 = vmax.f32 %v584, %v557
      %v593 = vmax.f32 %v585, %v578
      %v594 = vmax.f32 %v586, %v559
      %v595 = vmax.f32 %v587, %v580
      %v596 = vmax.f32 %v588, %v561
      %597 = vst [vmem:[#allocation2] sm:$0xff] %v589
      %598 = vst [vmem:[#allocation2 + $0x8] sm:$0x1] %v590
      %599 = vst [vmem:[#allocation2 + $0x10] sm:$0xff] %v591
      %600 = vst [vmem:[#allocation2 + $0x18] sm:$0x1] %v592
      %601 = vst [vmem:[#allocation2 + $0x20] sm:$0xff] %v593
      %602 = vst [vmem:[#allocation2 + $0x28] sm:$0x1] %v594
      %603 = vst [vmem:[#allocation2 + $0x30] sm:$0xff] %v595
      %604 = vst [vmem:[#allocation2 + $0x38] sm:$0x1] %v596
      %v605 = vld [vmem:[#allocation2] ss:$2 sm:$0xf]
      %s606 = scalar_lea.vmem [#allocation2], 16
      %v607 = vld [vmem:[%s606] ss:$2 sm:$0xf]
      %s608 = scalar_lea.vmem [#allocation2], 32
      %v609 = vld [vmem:[%s608] ss:$2 sm:$0xf]
      %s610 = scalar_lea.vmem [#allocation2], 48
      %v611 = vld [vmem:[%s610] ss:$2 sm:$0xf]
      %s612 = scalar_lea.vmem [#allocation2], 1
      %v613 = vld [vmem:[%s612] ss:$2 sm:$0xf]
      %s614 = scalar_lea.vmem [#allocation2], 17
      %v615 = vld [vmem:[%s614] ss:$2 sm:$0xf]
      %s616 = scalar_lea.vmem [#allocation2], 33
      %v617 = vld [vmem:[%s616] ss:$2 sm:$0xf]
      %s618 = scalar_lea.vmem [#allocation2], 49
      %v619 = vld [vmem:[%s618] ss:$2 sm:$0xf]
      %v620 = vmax.f32 %v605, %v613
      %v621 = vmax.f32 %v607, %v615
      %v622 = vmax.f32 %v609, %v617
      %v623 = vmax.f32 %v611, %v619
      %s624 = scalar_lea.vmem [#allocation2], 2
      %v625 = vld [vmem:[%s624] ss:$2 sm:$0xf]
      %s626 = scalar_lea.vmem [#allocation2], 18
      %v627 = vld [vmem:[%s626] ss:$2 sm:$0xf]
      %s628 = scalar_lea.vmem [#allocation2], 34
      %v629 = vld [vmem:[%s628] ss:$2 sm:$0xf]
      %s630 = scalar_lea.vmem [#allocation2], 50
      %v631 = vld [vmem:[%s630] ss:$2 sm:$0xf]
      %v632 = vmax.f32 %v620, %v625
      %v633 = vmax.f32 %v621, %v627
      %v634 = vmax.f32 %v622, %v629
      %v635 = vmax.f32 %v623, %v631
      %636 = vst [vmem:[%s170] sm:$0x7] 0
      %s637 = scalar_lea.vmem %s170, 20
      %638 = vst [vmem:[%s637] sm:$0x7] 0
      %v643 = vrot.slane %v632, 7
      %v644 = vrot.slane %v633, 7
      %v645 = vrot.slane %v634, 7
      %v646 = vrot.slane %v635, 7
      %v651 = vsel %vm571, 0.0, %v643
      %v652 = vsel %vm571, 0.0, %v644
      %v653 = vsel %vm571, 0.0, %v645
      %v654 = vsel %vm571, 0.0, %v646
      %vm655 = vcmask 1044480
      %v656 = vsel %vm655, %v651, 0.0
      %v657 = vsel %vm655, %v652, 0.0
      %v658 = vsel %vm655, %v653, 0.0
      %v659 = vsel %vm655, %v654, 0.0
      %v660 = vpack.c.bf16 %v656, %v656
      %v661 = vpack.c.bf16 %v657, %v657
      %v662 = vpack.c.bf16 %v658, %v658
      %v663 = vpack.c.bf16 %v659, %v659
      %s664 = scalar_lea.vmem %s170, 4
      %665 = vst [vmem:[%s664] sm:$0x7] %v660
      %666 = vst [vmem:[%s664 + $0x4] sm:$0x7] %v661
      %667 = vst [vmem:[%s664 + $0x8] sm:$0x7] %v662
      %668 = vst [vmem:[%s664 + $0xc] sm:$0x7] %v663
      %p669 = scmp.lt.s32.totalorder %s14, 1
      %s670 = scalar_select %p669, %s14, 1
      %s671 = smul.addr %s670, 6
      %s672 = smul.addr %s671, 4
      %s673 = scalar_lea.vmem %s3, %s672
      // Predicated region
      $region33: #{feature_extractor_forward.3} parent=31 // pred_check
        %p674 = pneg %p100
      $region34: #{feature_extractor_forward.3} parent=31 // pred_check_branch
        %676 = sbr.rel (%p674) target = $region36
      $region35: #{feature_extractor_forward.3} parent=31 // pred_region
        _
      $region36: #{feature_extractor_forward.3} parent=31 // pred_fallthru
        _
    $region32: #{feature_extractor_forward.3} parent=5 // pred_fallthru
      _
    %p677 = scmp.le.s32.totalorder 2, %s9
    // Predicated region
    $region37: #{feature_extractor_forward.3} parent=5 // pred_check
      %p678 = pneg %p677
    $region38: #{feature_extractor_forward.3} parent=5 // pred_check_branch
      %680 = sbr.rel (%p678) target = $region40
    $region39: #{feature_extractor_forward.3} parent=5 // pred_region
      %s681 = ssub.s32 %s9, 2
      // Predicated region
      $region41: #{feature_extractor_forward.3} parent=39 // pred_check
        %p682 = pneg %p106
      $region42: #{feature_extractor_forward.3} parent=39 // pred_check_branch
        %684 = sbr.rel (%p682) target = $region44
      $region43: #{feature_extractor_forward.3} parent=39 // pred_region
        %p685 = scmp.lt.s32.totalorder %s15, 1
        %s686 = scalar_select %p685, %s15, 1
        %s687 = smul.addr %s686, 6
        %s688 = smul.addr %s687, 4
        %s689 = scalar_lea.vmem %s3, %s688
      $region44: #{feature_extractor_forward.3} parent=39 // pred_fallthru
        _
    $region40: #{feature_extractor_forward.3} parent=5 // pred_fallthru
      _
  $region6: #{feature_extractor_forward.3} parent=0 // loop_footer
    %s13 = sadd.s32 1, %s9
  $region7: #{feature_extractor_forward.3} parent=0 // loop_footer_branch
    %8 = sbr.rel target = $region3
  $region8: #{feature_extractor_forward.3} parent=0 // loop_exit
    _

// kernel: feature_extractor_forward.4
$region0: #{feature_extractor_forward.4}
  #allocation0 [shape = 'u32[]', space=smem, size = 0x4, offset = 0x4, fixed_abs, tag = 'smem constant byte address 0x4 - core index']
  #allocation1 [shape = 'u32[144,128]{1,0:T(1,128)}', space=vmem, size = 0x12000, scoped, tag = 'internal scratch']
  #allocation2 [shape = 'bf16[6,6,128]{2,1,0:T(8,128)(2,1)}', space=vmem, size = 0x3000, scoped, tag = 'scratch operand']
  %s0 = inlined_call_operand.vmem [shape: bf16[2,6,6,128], index: 0, kind: input, shape index: {}]
  %s1 = inlined_call_operand.vmem [shape: bf16[9,128,128], index: 1, kind: input, shape index: {}]
  %s2 = inlined_call_operand.vmem [shape: f32[1,128], index: 2, kind: input, shape index: {}]
  %s3 = inlined_call_operand.vmem [shape: bf16[9,128,128], index: 3, kind: input, shape index: {}]
  %s4 = inlined_call_operand.vmem [shape: f32[1,128], index: 4, kind: input, shape index: {}]
  %s5 = inlined_call_operand.vmem [shape: bf16[2,6,6,128], index: 5, kind: output, shape index: {}]
  %s6 = sld [smem:[#allocation0]]
  $region53: #{feature_extractor_forward.4} parent=0
    _
  %s8 = ssub.s32 1, %s6
  %s9 = scalar_select 0, %s8, %s6
  loop: start=0, step=1, limit=4
  $region2: #{feature_extractor_forward.4} parent=0 // loop_pre_header
    _
  $region3: #{feature_extractor_forward.4} parent=0 // loop_header
    %s11 = sphi 0, %s15
    %p12 = scmp.ge.s32.totalorder %s11, 4
    %s21 = sphi 0, %s23
    %s24 = sphi 0, %s21
    %s25 = sphi 0, %s24
    %s41 = sphi 0, %s25
    %s45 = sphi 0, %s45
    %s47 = sphi 0, %s45
    %s48 = sphi 0, %s47
    %s62 = sphi 0, %s48
    %s66 = sphi 0, %s66
    %s68 = sphi 0, %s66
    %s69 = sphi 0, %s68
    %s83 = sphi 0, %s69
    %s87 = sphi 0, %s87
    %s89 = sphi 0, %s87
    %s90 = sphi 0, %s89
    %s104 = sphi 0, %s90
    %s108 = sphi 0, %s108
    %s110 = sphi 0, %s108
    %s111 = sphi 0, %s110
    %s125 = sphi 0, %s111
    %s131 = sphi 0, %s133
    %s134 = sphi 0, %s131
    %s135 = sphi 0, %s134
    %s151 = sphi 0, %s135
  $region4: #{feature_extractor_forward.4} parent=0 // loop_header_branch
    %14 = sbr.rel (%p12) target = $region8
  $region5: #{feature_extractor_forward.4} parent=0 // loop_body
    %s16 = ssub.s32 %s11, 1
    %s17 = ssub.s32 %s11, 2
    %s18 = sadd.s32 %s11, 1
    %s19 = ssub.s32 %s11, %s18
    %p20 = scmp.eq.s32.totalorder %s19, 0
    %s22 = sadd.s32 %s21, 1
    %s23 = scalar_select %p20, %s21, %s22
    %p26 = pneg %p20
    %p27 = scmp.eq.s32.totalorder %s11, 1
    %p28 = por %p26, %p27
    %p29 = scmp.ne.s32.totalorder %s21, %s24
    %p30 = scmp.eq.s32.totalorder %s11, 0
    %p31 = por %p29, %p30
    %p32 = scmp.ne.s32.totalorder %s21, %s24
    %p33 = scmp.eq.s32.totalorder %s16, 1
    %p34 = por %p32, %p33
    %p35 = scmp.ne.s32.totalorder %s24, %s25
    %p36 = scmp.eq.s32.totalorder %s16, 0
    %p37 = por %p35, %p36
    %p38 = scmp.ne.s32.totalorder %s24, %s25
    %p39 = scmp.eq.s32.totalorder %s17, 1
    %p40 = por %p38, %p39
    %p42 = scmp.ne.s32.totalorder %s25, %s41
    %p43 = scmp.eq.s32.totalorder %s17, 0
    %p44 = por %p42, %p43
    %s46 = sadd.s32 %s45, 1
    %p49 = scmp.eq.s32.totalorder %s11, 1
    %p50 = scmp.ne.s32.totalorder %s45, %s47
    %p51 = scmp.eq.s32.totalorder %s11, 0
    %p52 = por %p50, %p51
    %p53 = scmp.ne.s32.totalorder %s45, %s47
    %p54 = scmp.eq.s32.totalorder %s16, 1
    %p55 = por %p53, %p54
    %p56 = scmp.ne.s32.totalorder %s47, %s48
    %p57 = scmp.eq.s32.totalorder %s16, 0
    %p58 = por %p56, %p57
    %p59 = scmp.ne.s32.totalorder %s47, %s48
    %p60 = scmp.eq.s32.totalorder %s17, 1
    %p61 = por %p59, %p60
    %p63 = scmp.ne.s32.totalorder %s48, %s62
    %p64 = scmp.eq.s32.totalorder %s17, 0
    %p65 = por %p63, %p64
    %s67 = sadd.s32 %s66, 1
    %p70 = scmp.eq.s32.totalorder %s11, 1
    %p71 = scmp.ne.s32.totalorder %s66, %s68
    %p72 = scmp.eq.s32.totalorder %s11, 0
    %p73 = por %p71, %p72
    %p74 = scmp.ne.s32.totalorder %s66, %s68
    %p75 = scmp.eq.s32.totalorder %s16, 1
    %p76 = por %p74, %p75
    %p77 = scmp.ne.s32.totalorder %s68, %s69
    %p78 = scmp.eq.s32.totalorder %s16, 0
    %p79 = por %p77, %p78
    %p80 = scmp.ne.s32.totalorder %s68, %s69
    %p81 = scmp.eq.s32.totalorder %s17, 1
    %p82 = por %p80, %p81
    %p84 = scmp.ne.s32.totalorder %s69, %s83
    %p85 = scmp.eq.s32.totalorder %s17, 0
    %p86 = por %p84, %p85
    %s88 = sadd.s32 %s87, 1
    %p91 = scmp.eq.s32.totalorder %s11, 1
    %p92 = scmp.ne.s32.totalorder %s87, %s89
    %p93 = scmp.eq.s32.totalorder %s11, 0
    %p94 = por %p92, %p93
    %p95 = scmp.ne.s32.totalorder %s87, %s89
    %p96 = scmp.eq.s32.totalorder %s16, 1
    %p97 = por %p95, %p96
    %p98 = scmp.ne.s32.totalorder %s89, %s90
    %p99 = scmp.eq.s32.totalorder %s16, 0
    %p100 = por %p98, %p99
    %p101 = scmp.ne.s32.totalorder %s89, %s90
    %p102 = scmp.eq.s32.totalorder %s17, 1
    %p103 = por %p101, %p102
    %p105 = scmp.ne.s32.totalorder %s90, %s104
    %p106 = scmp.eq.s32.totalorder %s17, 0
    %p107 = por %p105, %p106
    %s109 = sadd.s32 %s108, 1
    %p112 = scmp.eq.s32.totalorder %s11, 1
    %p113 = scmp.ne.s32.totalorder %s108, %s110
    %p114 = scmp.eq.s32.totalorder %s11, 0
    %p115 = por %p113, %p114
    %p116 = scmp.ne.s32.totalorder %s108, %s110
    %p117 = scmp.eq.s32.totalorder %s16, 1
    %p118 = por %p116, %p117
    %p119 = scmp.ne.s32.totalorder %s110, %s111
    %p120 = scmp.eq.s32.totalorder %s16, 0
    %p121 = por %p119, %p120
    %p122 = scmp.ne.s32.totalorder %s110, %s111
    %p123 = scmp.eq.s32.totalorder %s17, 1
    %p124 = por %p122, %p123
    %p126 = scmp.ne.s32.totalorder %s111, %s125
    %p127 = scmp.eq.s32.totalorder %s17, 0
    %p128 = por %p126, %p127
    %s129 = ssub.s32 %s11, %s18
    %p130 = scmp.eq.s32.totalorder %s129, 0
    %s132 = sadd.s32 %s131, 1
    %s133 = scalar_select %p130, %s131, %s132
    %p136 = pneg %p130
    %p137 = scmp.eq.s32.totalorder %s11, 1
    %p138 = por %p136, %p137
    %p139 = scmp.ne.s32.totalorder %s131, %s134
    %p140 = scmp.eq.s32.totalorder %s11, 0
    %p141 = por %p139, %p140
    %p142 = scmp.ne.s32.totalorder %s131, %s134
    %p143 = scmp.eq.s32.totalorder %s16, 1
    %p144 = por %p142, %p143
    %p145 = scmp.ne.s32.totalorder %s134, %s135
    %p146 = scmp.eq.s32.totalorder %s16, 0
    %p147 = por %p145, %p146
    %p148 = scmp.ne.s32.totalorder %s134, %s135
    %p149 = scmp.eq.s32.totalorder %s17, 1
    %p150 = por %p148, %p149
    %p152 = scmp.ne.s32.totalorder %s135, %s151
    %p153 = scmp.eq.s32.totalorder %s17, 0
    %p154 = por %p152, %p153
    %p155 = scmp.le.s32.totalorder 1, %s11
    %p156 = scmp.lt.s32.totalorder %s11, 3
    %p157 = pnand %p155, %p156
    %p158 = pneg %p157
    // Predicated region
    $region9: #{feature_extractor_forward.4} parent=5 // pred_check
      _
    $region10: #{feature_extractor_forward.4} parent=5 // pred_check_branch
      %160 = sbr.rel (%p157) target = $region12
    $region11: #{feature_extractor_forward.4} parent=5 // pred_region
      %s161 = ssub.s32 %s11, 1
      // Predicated region
      $region13: #{feature_extractor_forward.4} parent=11 // pred_check
        %p162 = pneg %p58
      $region14: #{feature_extractor_forward.4} parent=11 // pred_check_branch
        %164 = sbr.rel (%p162) target = $region16
      $region15: #{feature_extractor_forward.4} parent=11 // pred_region
        _
      $region16: #{feature_extractor_forward.4} parent=11 // pred_fallthru
        _
      // Predicated region
      $region17: #{feature_extractor_forward.4} parent=11 // pred_check
        %p165 = pneg %p79
      $region18: #{feature_extractor_forward.4} parent=11 // pred_check_branch
        %167 = sbr.rel (%p165) target = $region20
      $region19: #{feature_extractor_forward.4} parent=11 // pred_region
        _
      $region20: #{feature_extractor_forward.4} parent=11 // pred_fallthru
        _
      // Predicated region
      $region21: #{feature_extractor_forward.4} parent=11 // pred_check
        %p168 = pneg %p100
      $region22: #{feature_extractor_forward.4} parent=11 // pred_check_branch
        %170 = sbr.rel (%p168) target = $region24
      $region23: #{feature_extractor_forward.4} parent=11 // pred_region
        _
      $region24: #{feature_extractor_forward.4} parent=11 // pred_fallthru
        _
      // Predicated region
      $region25: #{feature_extractor_forward.4} parent=11 // pred_check
        %p171 = pneg %p121
      $region26: #{feature_extractor_forward.4} parent=11 // pred_check_branch
        %173 = sbr.rel (%p171) target = $region28
      $region27: #{feature_extractor_forward.4} parent=11 // pred_region
        _
      $region28: #{feature_extractor_forward.4} parent=11 // pred_fallthru
        _
    $region12: #{feature_extractor_forward.4} parent=5 // pred_fallthru
      _
    %p174 = scmp.lt.s32.totalorder %s11, 2
    // Predicated region
    $region29: #{feature_extractor_forward.4} parent=5 // pred_check
      %p175 = pneg %p174
    $region30: #{feature_extractor_forward.4} parent=5 // pred_check_branch
      %177 = sbr.rel (%p175) target = $region32
    $region31: #{feature_extractor_forward.4} parent=5 // pred_region
      // Predicated region
      $region33: #{feature_extractor_forward.4} parent=31 // pred_check
        %p178 = pneg %p31
      $region34: #{feature_extractor_forward.4} parent=31 // pred_check_branch
        %180 = sbr.rel (%p178) target = $region36
      $region35: #{feature_extractor_forward.4} parent=31 // pred_region
        %p181 = scmp.lt.s32.totalorder %s11, 1
        %s182 = scalar_select %p181, %s11, 1
        %s183 = smul.addr %s182, 6
        %s184 = smul.addr %s183, 4
        %s185 = scalar_lea.vmem %s0, %s184
      $region36: #{feature_extractor_forward.4} parent=31 // pred_fallthru
        _
    $region32: #{feature_extractor_forward.4} parent=5 // pred_fallthru
      _
    %p186 = scmp.le.s32.totalorder 1, %s11
    %p187 = scmp.lt.s32.totalorder %s11, 3
    %p188 = pnand %p186, %p187
    %p189 = pneg %p188
    // Predicated region
    $region37: #{feature_extractor_forward.4} parent=5 // pred_check
      _
    $region38: #{feature_extractor_forward.4} parent=5 // pred_check_branch
      %191 = sbr.rel (%p188) target = $region40
    $region39: #{feature_extractor_forward.4} parent=5 // pred_region
      %s192 = ssub.s32 %s11, 1
      %p193 = scmp.lt.s32.totalorder %s16, 1
      %s194 = scalar_select %p193, %s16, 1
      %s195 = smul.addr %s194, 6
      %s196 = smul.addr %s195, 4
      %s197 = scalar_lea.vmem %s0, %s196
      %p198 = pneg %p37
      %p199 = pneg %p34
      %p200 = pneg %p58
      %p201 = pneg %p55
      %p202 = pneg %p79
      %p203 = pneg %p76
      %p204 = pneg %p100
      %p205 = pneg %p97
      %p206 = pneg %p121
      %p207 = pneg %p118
      %p208 = pneg %p147
      %p209 = pneg %p144
      %p210 = scmp.lt.s32.totalorder %s16, 1
      %s211 = scalar_select %p210, %s16, 1
      %s212 = smul.addr %s211, 6
      %s213 = smul.addr %s212, 4
      %s214 = scalar_lea.vmem %s5, %s213
      %p215 = scmp.lt.s32.totalorder %s16, 1
      %s216 = scalar_select %p215, %s16, 1
      %s217 = smul.addr %s216, 6
      %s218 = smul.addr %s217, 4
      %s219 = scalar_lea.vmem %s0, %s218
      %p220 = scmp.lt.s32.totalorder %s16, 1
      %s221 = scalar_select %p220, %s16, 1
      %s222 = smul.addr %s221, 6
      %s223 = smul.addr %s222, 4
      %s224 = scalar_lea.vmem %s5, %s223
      %v226 = vld [vmem:[%s219] sm:$0x3]
      %v227 = vld [vmem:[%s219 + $0x4] sm:$0x3]
      %v228 = vld [vmem:[%s219 + $0x8] sm:$0x3]
      %v229 = vld [vmem:[%s219 + $0xc] sm:$0x3]
      %v230 = vld [vmem:[%s1] sm:$0xf]
      %v231 = vld [vmem:[%s1 + $0x4] sm:$0xf]
      %v232 = vld [vmem:[%s1 + $0x8] sm:$0xf]
      %v233 = vld [vmem:[%s1 + $0xc] sm:$0xf]
      %v234 = vld [vmem:[%s1 + $0x10] sm:$0xf]
      %v235 = vld [vmem:[%s1 + $0x14] sm:$0xf]
      %v236 = vld [vmem:[%s1 + $0x18] sm:$0xf]
      %v237 = vld [vmem:[%s1 + $0x1c] sm:$0xf]
      %v238 = vld [vmem:[%s1 + $0x20] sm:$0xf]
      %v239 = vld [vmem:[%s1 + $0x24] sm:$0xf]
      %v240 = vld [vmem:[%s1 + $0x28] sm:$0xf]
      %v241 = vld [vmem:[%s1 + $0x2c] sm:$0xf]
      %v242 = vld [vmem:[%s1 + $0x30] sm:$0xf]
      %v243 = vld [vmem:[%s1 + $0x34] sm:$0xf]
      %v244 = vld [vmem:[%s1 + $0x38] sm:$0xf]
      %v245 = vld [vmem:[%s1 + $0x3c] sm:$0xf]
      %v246 = vld [vmem:[%s219] sm:$0x7]
      %v247 = vld [vmem:[%s219 + $0x4] sm:$0x7]
      %v248 = vld [vmem:[%s219 + $0x8] sm:$0x7]
      %v249 = vld [vmem:[%s219 + $0xc] sm:$0x7]
      %v255 = vunpack.c.l.s4 1983009808
      %v256 = vunpack.c.0.s8 %v255
      %v257 = vlaneseq
      %v258 = vshrl.u32 %v257, 7
      %v259 = vsub.s32 %v256, %v258
      %v260 = vrot.slane %v246, %v259
      %v261 = vcombine.high %v260, %v260
      %v263 = vunpack.c.l.s4 1983009808
      %v264 = vunpack.c.0.s8 %v263
      %v265 = vlaneseq
      %v266 = vshrl.u32 %v265, 7
      %v267 = vsub.s32 %v264, %v266
      %v268 = vrot.slane %v247, %v267
      %v269 = vcombine.high %v268, %v268
      %v271 = vunpack.c.l.s4 1983009808
      %v272 = vunpack.c.0.s8 %v271
      %v273 = vlaneseq
      %v274 = vshrl.u32 %v273, 7
      %v275 = vsub.s32 %v272, %v274
      %v276 = vrot.slane %v248, %v275
      %v277 = vcombine.high %v276, %v276
      %v279 = vunpack.c.l.s4 1983009808
      %v280 = vunpack.c.0.s8 %v279
      %v281 = vlaneseq
      %v282 = vshrl.u32 %v281, 7
      %v283 = vsub.s32 %v280, %v282
      %v284 = vrot.slane %v249, %v283
      %v285 = vcombine.high %v284, %v284
      %vm286 = vsmask.f32 1280
      %vm287 = vsmask.f32 3336
      %vm288 = vmor %vm286, %vm287
      %vm289 = vsmask.f32 5392
      %vm290 = vmor %vm288, %vm289
      %vm291 = vsmask.f32 7448
      %vm292 = vmor %vm290, %vm291
      %v294 = vshrl.u32 %v260, 16
      %v296 = vrot.slane %v294, 6
      %v297 = vshll.u32 %v260, 16
      %v299 = vrot.slane %v297, 7
      %v300 = vor.u32 %v296, %v299
      %v301 = vrot.slane %v300, 2
      %v303 = vshll.u32 %v261, 16
      %v305 = vrot.slane %v303, 7
      %v306 = vsel %vm292, %v301, %v305
      %v308 = vshrl.u32 %v268, 16
      %v310 = vrot.slane %v308, 6
      %v311 = vshll.u32 %v268, 16
      %v313 = vrot.slane %v311, 7
      %v314 = vor.u32 %v310, %v313
      %v315 = vrot.slane %v314, 2
      %v317 = vshll.u32 %v269, 16
      %v319 = vrot.slane %v317, 7
      %v320 = vsel %vm292, %v315, %v319
      %v322 = vshrl.u32 %v276, 16
      %v324 = vrot.slane %v322, 6
      %v325 = vshll.u32 %v276, 16
      %v327 = vrot.slane %v325, 7
      %v328 = vor.u32 %v324, %v327
      %v329 = vrot.slane %v328, 2
      %v331 = vshll.u32 %v277, 16
      %v333 = vrot.slane %v331, 7
      %v334 = vsel %vm292, %v329, %v333
      %v336 = vshrl.u32 %v284, 16
      %v338 = vrot.slane %v336, 6
      %v339 = vshll.u32 %v284, 16
      %v341 = vrot.slane %v339, 7
      %v342 = vor.u32 %v338, %v341
      %v343 = vrot.slane %v342, 2
      %v345 = vshll.u32 %v285, 16
      %v347 = vrot.slane %v345, 7
      %v348 = vsel %vm292, %v343, %v347
      %s349 = scalar_lea.vmem %s1, 64
      %v350 = vld [vmem:[%s349] sm:$0xf]
      %v351 = vld [vmem:[%s349 + $0x4] sm:$0xf]
      %v352 = vld [vmem:[%s349 + $0x8] sm:$0xf]
      %v353 = vld [vmem:[%s349 + $0xc] sm:$0xf]
      %v354 = vld [vmem:[%s349 + $0x10] sm:$0xf]
      %v355 = vld [vmem:[%s349 + $0x14] sm:$0xf]
      %v356 = vld [vmem:[%s349 + $0x18] sm:$0xf]
      %v357 = vld [vmem:[%s349 + $0x1c] sm:$0xf]
      %v358 = vld [vmem:[%s349 + $0x20] sm:$0xf]
      %v359 = vld [vmem:[%s349 + $0x24] sm:$0xf]
      %v360 = vld [vmem:[%s349 + $0x28] sm:$0xf]
      %v361 = vld [vmem:[%s349 + $0x2c] sm:$0xf]
      %v362 = vld [vmem:[%s349 + $0x30] sm:$0xf]
      %v363 = vld [vmem:[%s349 + $0x34] sm:$0xf]
      %v364 = vld [vmem:[%s349 + $0x38] sm:$0xf]
      %v365 = vld [vmem:[%s349 + $0x3c] sm:$0xf]
      %v366 = vcombine.low %v306, %v320
      %v367 = vcombine.low %v334, %v348
      %v369 = vunpack.c.l.s4 1983009808
      %v370 = vunpack.c.0.s8 %v369
      %v371 = vlaneseq
      %v372 = vshrl.u32 %v371, 7
      %v373 = vsub.s32 %v370, %v372
      %v374 = vrot.slane %v366, %v373
      %v376 = vunpack.c.l.s4 1983009808
      %v377 = vunpack.c.0.s8 %v376
      %v378 = vlaneseq
      %v379 = vshrl.u32 %v378, 7
      %v380 = vsub.s32 %v377, %v379
      %v381 = vrot.slane %v367, %v380
      %v382 = vcombine.low %v374, %v381
      %v400 = vunpack.c.l.b16 %v350
      %v401 = vunpack.c.l.b16 %v351
      %v402 = vunpack.c.l.b16 %v352
      %v403 = vunpack.c.l.b16 %v353
      %v404 = vunpack.c.l.b16 %v354
      %v405 = vunpack.c.l.b16 %v355
      %v406 = vunpack.c.l.b16 %v356
      %v407 = vunpack.c.l.b16 %v357
      %v408 = vunpack.c.l.b16 %v358
      %v409 = vunpack.c.l.b16 %v359
      %v410 = vunpack.c.l.b16 %v360
      %v411 = vunpack.c.l.b16 %v361
      %v412 = vunpack.c.l.b16 %v362
      %v413 = vunpack.c.l.b16 %v363
      %v414 = vunpack.c.l.b16 %v364
      %v415 = vunpack.c.l.b16 %v365
      %v416 = vpack.c.b16 %v401, %v400
      %v417 = vpack.c.b16 %v403, %v402
      %v418 = vpack.c.b16 %v405, %v404
      %v419 = vpack.c.b16 %v407, %v406
      %v420 = vpack.c.b16 %v409, %v408
      %v421 = vpack.c.b16 %v411, %v410
      %v422 = vpack.c.b16 %v413, %v412
      %v423 = vpack.c.b16 %v415, %v414
      %432 = vmatprep.subr.bf16.mxu0 0
      %433 = vmatpush1.bf16.msra.mxu0 %v416
      %434 = vmatprep.subr.bf16.mxu0 0
      %435 = vmatpush1.bf16.msra.mxu0 %v417
      %436 = vmatprep.subr.bf16.mxu0 0
      %437 = vmatpush1.bf16.msra.mxu0 %v418
      %438 = vmatprep.subr.bf16.mxu0 0
      %439 = vmatpush1.bf16.msra.mxu0 %v419
      %440 = vmatprep.subr.bf16.mxu0 0
      %441 = vmatpush1.bf16.msra.mxu0 %v420
      %442 = vmatprep.subr.bf16.mxu0 0
      %443 = vmatpush1.bf16.msra.mxu0 %v421
      %444 = vmatprep.subr.bf16.mxu0 0
      %445 = vmatpush1.bf16.msra.mxu0 %v422
      %446 = vmatprep.subr.bf16.mxu0 0
      %447 = vmatpush1.bf16.msra.mxu0 %v423
      %448 = vmatprep.subr.bf16.mxu0 0
      %449 = vmatpush1.bf16.msra.mxu0 0
      %450 = vmatprep.subr.bf16.mxu0 0
      %451 = vmatpush1.bf16.msra.mxu0 0
      %452 = vmatprep.subr.bf16.mxu0 0
      %453 = vmatpush1.bf16.msra.mxu0 0
      %454 = vmatprep.subr.bf16.mxu0 0
      %455 = vmatpush1.bf16.msra.mxu0 0
      %456 = vmatprep.subr.bf16.mxu0 0
      %457 = vmatpush1.bf16.msra.mxu0 0
      %458 = vmatprep.subr.bf16.mxu0 0
      %459 = vmatpush1.bf16.msra.mxu0 0
      %460 = vmatprep.subr.bf16.mxu0 0
      %461 = vmatpush1.bf16.msra.mxu0 0
      %462 = vmatprep.subr.bf16.mxu0 0
      %463 = vmatpush1.bf16.msra.mxu0 0
      %464 = vmatprep.mubr.bf16.mxu0 0
      %465 = vmatmul.mubr.bf16.gmra.mrb[0].mxu0 %v382
      %v466 = vpop.f32.mrb[0].mxu0
      %v467 = vadd.f32 0.0, %v466
      %v468 = vpop.f32.mrb[0].mxu0
      %v469 = vpop.f32.mrb[0].mxu0
      %v470 = vadd.f32 0.0, %v469
      %v471 = vpop.f32.mrb[0].mxu0
      %472 = vdwg.mxu0
      %v477 = vcombine.low %v226, %v227
      %v478 = vcombine.low %v228, %v229
      %v480 = vunpack.c.l.s4 1983009808
      %v481 = vunpack.c.0.s8 %v480
      %v482 = vlaneseq
      %v483 = vshrl.u32 %v482, 7
      %v484 = vsub.s32 %v481, %v483
      %v485 = vrot.slane %v477, %v484
      %v487 = vunpack.c.l.s4 1983009808
      %v488 = vunpack.c.0.s8 %v487
      %v489 = vlaneseq
      %v490 = vshrl.u32 %v489, 7
      %v491 = vsub.s32 %v488, %v490
      %v492 = vrot.slane %v478, %v491
      %v493 = vcombine.low %v485, %v492
      %v511 = vunpack.c.l.b16 %v230
      %v512 = vunpack.c.l.b16 %v231
      %v513 = vunpack.c.l.b16 %v232
      %v514 = vunpack.c.l.b16 %v233
      %v515 = vunpack.c.l.b16 %v234
      %v516 = vunpack.c.l.b16 %v235
      %v517 = vunpack.c.l.b16 %v236
      %v518 = vunpack.c.l.b16 %v237
      %v519 = vunpack.c.l.b16 %v238
      %v520 = vunpack.c.l.b16 %v239
      %v521 = vunpack.c.l.b16 %v240
      %v522 = vunpack.c.l.b16 %v241
      %v523 = vunpack.c.l.b16 %v242
      %v524 = vunpack.c.l.b16 %v243
      %v525 = vunpack.c.l.b16 %v244
      %v526 = vunpack.c.l.b16 %v245
      %v527 = vpack.c.b16 %v512, %v511
      %v528 = vpack.c.b16 %v514, %v513
      %v529 = vpack.c.b16 %v516, %v515
      %v530 = vpack.c.b16 %v518, %v517
      %v531 = vpack.c.b16 %v520, %v519
      %v532 = vpack.c.b16 %v522, %v521
      %v533 = vpack.c.b16 %v524, %v523
      %v534 = vpack.c.b16 %v526, %v525
      %543 = vmatprep.subr.bf16.mxu0 0
      %544 = vmatpush1.bf16.msra.mxu0 %v527
      %545 = vmatprep.subr.bf16.mxu0 0
      %546 = vmatpush1.bf16.msra.mxu0 %v528
      %547 = vmatprep.subr.bf16.mxu0 0
      %548 = vmatpush1.bf16.msra.mxu0 %v529
      %549 = vmatprep.subr.bf16.mxu0 0
      %550 = vmatpush1.bf16.msra.mxu0 %v530
      %551 = vmatprep.subr.bf16.mxu0 0
      %552 = vmatpush1.bf16.msra.mxu0 %v531
      %553 = vmatprep.subr.bf16.mxu0 0
      %554 = vmatpush1.bf16.msra.mxu0 %v532
      %555 = vmatprep.subr.bf16.mxu0 0
      %556 = vmatpush1.bf16.msra.mxu0 %v533
      %557 = vmatprep.subr.bf16.mxu0 0
      %558 = vmatpush1.bf16.msra.mxu0 %v534
      %559 = vmatprep.subr.bf16.mxu0 0
      %560 = vmatpush1.bf16.msra.mxu0 0
      %561 = vmatprep.subr.bf16.mxu0 0
      %562 = vmatpush1.bf16.msra.mxu0 0
      %563 = vmatprep.subr.bf16.mxu0 0
      %564 = vmatpush1.bf16.msra.mxu0 0
      %565 = vmatprep.subr.bf16.mxu0 0
      %566 = vmatpush1.bf16.msra.mxu0 0
      %567 = vmatprep.subr.bf16.mxu0 0
      %568 = vmatpush1.bf16.msra.mxu0 0
      %569 = vmatprep.subr.bf16.mxu0 0
      %570 = vmatpush1.bf16.msra.mxu0 0
      %571 = vmatprep.subr.bf16.mxu0 0
      %572 = vmatpush1.bf16.msra.mxu0 0
      %573 = vmatprep.subr.bf16.mxu0 0
      %574 = vmatpush1.bf16.msra.mxu0 0
      %575 = vmatprep.mubr.bf16.mxu0 0
      %576 = vmatmul.mubr.bf16.gmra.mrb[0].mxu0 %v493
      %v577 = vpop.f32.mrb[0].mxu0
      %v578 = vadd.f32 %v467, %v577
      %v579 = vpop.f32.mrb[0].mxu0
      %v580 = vpop.f32.mrb[0].mxu0
      %v581 = vadd.f32 %v470, %v580
      %v582 = vpop.f32.mrb[0].mxu0
      %583 = vdwg.mxu0
      %v584 = vld [vmem:[%s219] sm:$0x6]
      %v585 = vld [vmem:[%s219 + $0x4] sm:$0x6]
      %v586 = vld [vmem:[%s219 + $0x8] sm:$0x6]
      %v587 = vld [vmem:[%s219 + $0xc] sm:$0x6]
      %v593 = vunpack.c.l.s4 1983009808
      %v594 = vunpack.c.0.s8 %v593
      %v595 = vlaneseq
      %v596 = vshrl.u32 %v595, 7
      %v597 = vsub.s32 %v594, %v596
      %v598 = vrot.slane %v584, %v597
      %v599 = vcombine.high %v598, %v598
      %v601 = vunpack.c.l.s4 1983009808
      %v602 = vunpack.c.0.s8 %v601
      %v603 = vlaneseq
      %v604 = vshrl.u32 %v603, 7
      %v605 = vsub.s32 %v602, %v604
      %v606 = vrot.slane %v585, %v605
      %v607 = vcombine.high %v606, %v606
      %v609 = vunpack.c.l.s4 1983009808
      %v610 = vunpack.c.0.s8 %v609
      %v611 = vlaneseq
      %v612 = vshrl.u32 %v611, 7
      %v613 = vsub.s32 %v610, %v612
      %v614 = vrot.slane %v586, %v613
      %v615 = vcombine.high %v614, %v614
      %v617 = vunpack.c.l.s4 1983009808
      %v618 = vunpack.c.0.s8 %v617
      %v619 = vlaneseq
      %v620 = vshrl.u32 %v619, 7
      %v621 = vsub.s32 %v618, %v620
      %v622 = vrot.slane %v587, %v621
      %v623 = vcombine.high %v622, %v622
      %vm624 = vcmask 1040384
      %vm625 = vcmask 1042434
      %vm626 = vmor %vm624, %vm625
      %vm627 = vcmask 1044484
      %vm628 = vmor %vm626, %vm627
      %vm629 = vcmask 1046534
      %vm630 = vmor %vm628, %vm629
      %v631 = vrot.slane %v598, 7
      %v632 = vrot.slane %v631, 2
      %v633 = vrot.slane %v599, 7
      %v634 = vsel %vm630, %v632, %v633
      %v635 = vrot.slane %v606, 7
      %v636 = vrot.slane %v635, 2
      %v637 = vrot.slane %v607, 7
      %v638 = vsel %vm630, %v636, %v637
      %v639 = vrot.slane %v614, 7
      %v640 = vrot.slane %v639, 2
      %v641 = vrot.slane %v615, 7
      %v642 = vsel %vm630, %v640, %v641
      %v643 = vrot.slane %v622, 7
      %v644 = vrot.slane %v643, 2
      %v645 = vrot.slane %v623, 7
      %v646 = vsel %vm630, %v644, %v645
      %s647 = scalar_lea.vmem %s1, 128
      %v648 = vld [vmem:[%s647] sm:$0xf]
      %v649 = vld [vmem:[%s647 + $0x4] sm:$0xf]
      %v650 = vld [vmem:[%s647 + $0x8] sm:$0xf]
      %v651 = vld [vmem:[%s647 + $0xc] sm:$0xf]
      %v652 = vld [vmem:[%s647 + $0x10] sm:$0xf]
      %v653 = vld [vmem:[%s647 + $0x14] sm:$0xf]
      %v654 = vld [vmem:[%s647 + $0x18] sm:$0xf]
      %v655 = vld [vmem:[%s647 + $0x1c] sm:$0xf]
      %v656 = vld [vmem:[%s647 + $0x20] sm:$0xf]
      %v657 = vld [vmem:[%s647 + $0x24] sm:$0xf]
      %v658 = vld [vmem:[%s647 + $0x28] sm:$0xf]
      %v659 = vld [vmem:[%s647 + $0x2c] sm:$0xf]
      %v660 = vld [vmem:[%s647 + $0x30] sm:$0xf]
      %v661 = vld [vmem:[%s647 + $0x34] sm:$0xf]
      %v662 = vld [vmem:[%s647 + $0x38] sm:$0xf]
      %v663 = vld [vmem:[%s647 + $0x3c] sm:$0xf]
      %v664 = vcombine.low %v634, %v638
      %v665 = vcombine.low %v642, %v646
      %v667 = vunpack.c.l.s4 1983009808
      %v668 = vunpack.c.0.s8 %v667
      %v669 = vlaneseq
      %v670 = vshrl.u32 %v669, 7
      %v671 = vsub.s32 %v668, %v670
      %v672 = vrot.slane %v664, %v671
      %v674 = vunpack.c.l.s4 1983009808
      %v675 = vunpack.c.0.s8 %v674
      %v676 = vlaneseq
      %v677 = vshrl.u32 %v676, 7
      %v678 = vsub.s32 %v675, %v677
      %v679 = vrot.slane %v665, %v678
      %v680 = vcombine.low %v672, %v679
      %v698 = vunpack.c.l.b16 %v648
      %v699 = vunpack.c.l.b16 %v649
      %v700 = vunpack.c.l.b16 %v650
      %v701 = vunpack.c.l.b16 %v651
      %v702 = vunpack.c.l.b16 %v652
      %v703 = vunpack.c.l.b16 %v653
      %v704 = vunpack.c.l.b16 %v654
      %v705 = vunpack.c.l.b16 %v655
      %v706 = vunpack.c.l.b16 %v656
      %v707 = vunpack.c.l.b16 %v657
      %v708 = vunpack.c.l.b16 %v658
      %v709 = vunpack.c.l.b16 %v659
      %v710 = vunpack.c.l.b16 %v660
      %v711 = vunpack.c.l.b16 %v661
      %v712 = vunpack.c.l.b16 %v662
      %v713 = vunpack.c.l.b16 %v663
      %v714 = vpack.c.b16 %v699, %v698
      %v715 = vpack.c.b16 %v701, %v700
      %v716 = vpack.c.b16 %v703, %v702
      %v717 = vpack.c.b16 %v705, %v704
      %v718 = vpack.c.b16 %v707, %v706
      %v719 = vpack.c.b16 %v709, %v708
      %v720 = vpack.c.b16 %v711, %v710
      %v721 = vpack.c.b16 %v713, %v712
      %730 = vmatprep.subr.bf16.mxu0 0
      %731 = vmatpush1.bf16.msra.mxu0 %v714
      %732 = vmatprep.subr.bf16.mxu0 0
      %733 = vmatpush1.bf16.msra.mxu0 %v715
      %734 = vmatprep.subr.bf16.mxu0 0
      %735 = vmatpush1.bf16.msra.mxu0 %v716
      %736 = vmatprep.subr.bf16.mxu0 0
      %737 = vmatpush1.bf16.msra.mxu0 %v717
      %738 = vmatprep.subr.bf16.mxu0 0
      %739 = vmatpush1.bf16.msra.mxu0 %v718
      %740 = vmatprep.subr.bf16.mxu0 0
      %741 = vmatpush1.bf16.msra.mxu0 %v719
      %742 = vmatprep.subr.bf16.mxu0 0
      %743 = vmatpush1.bf16.msra.mxu0 %v720
      %744 = vmatprep.subr.bf16.mxu0 0
      %745 = vmatpush1.bf16.msra.mxu0 %v721
      %746 = vmatprep.subr.bf16.mxu0 0
      %747 = vmatpush1.bf16.msra.mxu0 0
      %748 = vmatprep.subr.bf16.mxu0 0
      %749 = vmatpush1.bf16.msra.mxu0 0
      %750 = vmatprep.subr.bf16.mxu0 0
      %751 = vmatpush1.bf16.msra.mxu0 0
      %752 = vmatprep.subr.bf16.mxu0 0
      %753 = vmatpush1.bf16.msra.mxu0 0
      %754 = vmatprep.subr.bf16.mxu0 0
      %755 = vmatpush1.bf16.msra.mxu0 0
      %756 = vmatprep.subr.bf16.mxu0 0
      %757 = vmatpush1.bf16.msra.mxu0 0
      %758 = vmatprep.subr.bf16.mxu0 0
      %759 = vmatpush1.bf16.msra.mxu0 0
      %760 = vmatprep.subr.bf16.mxu0 0
      %761 = vmatpush1.bf16.msra.mxu0 0
      %762 = vmatprep.mubr.bf16.mxu0 0
      %763 = vmatmul.mubr.bf16.gmra.mrb[0].mxu0 %v680
      %v764 = vpop.f32.mrb[0].mxu0
      %v765 = vadd.f32 0.0, %v764
      %v766 = vpop.f32.mrb[0].mxu0
      %v767 = vpop.f32.mrb[0].mxu0
      %v768 = vadd.f32 0.0, %v767
      %v769 = vpop.f32.mrb[0].mxu0
      %770 = vdwg.mxu0
      %v771 = vadd.f32 %v578, %v765
      %v772 = vadd.f32 %v581, %v768
      %s773 = scalar_lea.vmem %s219, 4
      %v774 = vld [vmem:[%s773] sm:$0x3]
      %v775 = vld [vmem:[%s773 + $0x4] sm:$0x3]
      %v776 = vld [vmem:[%s773 + $0x8] sm:$0x3]
      %v777 = vld [vmem:[%s773 + $0xc] sm:$0x3]
      %s778 = scalar_lea.vmem %s1, 192
      %v779 = vld [vmem:[%s778] sm:$0xf]
      %v780 = vld [vmem:[%s778 + $0x4] sm:$0xf]
      %v781 = vld [vmem:[%s778 + $0x8] sm:$0xf]
      %v782 = vld [vmem:[%s778 + $0xc] sm:$0xf]
      %v783 = vld [vmem:[%s778 + $0x10] sm:$0xf]
      %v784 = vld [vmem:[%s778 + $0x14] sm:$0xf]
      %v785 = vld [vmem:[%s778 + $0x18] sm:$0xf]
      %v786 = vld [vmem:[%s778 + $0x1c] sm:$0xf]
      %v787 = vld [vmem:[%s778 + $0x20] sm:$0xf]
      %v788 = vld [vmem:[%s778 + $0x24] sm:$0xf]
      %v789 = vld [vmem:[%s778 + $0x28] sm:$0xf]
      %v790 = vld [vmem:[%s778 + $0x2c] sm:$0xf]
      %v791 = vld [vmem:[%s778 + $0x30] sm:$0xf]
      %v792 = vld [vmem:[%s778 + $0x34] sm:$0xf]
      %v793 = vld [vmem:[%s778 + $0x38] sm:$0xf]
      %v794 = vld [vmem:[%s778 + $0x3c] sm:$0xf]
      %v799 = vcombine.low %v774, %v775
      %v800 = vcombine.low %v776, %v777
      %v802 = vunpack.c.l.s4 1983009808
      %v803 = vunpack.c.0.s8 %v802
      %v804 = vlaneseq
      %v805 = vshrl.u32 %v804, 7
      %v806 = vsub.s32 %v803, %v805
      %v807 = vrot.slane %v799, %v806
      %v809 = vunpack.c.l.s4 1983009808
      %v810 = vunpack.c.0.s8 %v809
      %v811 = vlaneseq
      %v812 = vshrl.u32 %v811, 7
      %v813 = vsub.s32 %v810, %v812
      %v814 = vrot.slane %v800, %v813
      %v815 = vcombine.low %v807, %v814
      %v833 = vunpack.c.l.b16 %v779
      %v834 = vunpack.c.l.b16 %v780
      %v835 = vunpack.c.l.b16 %v781
      %v836 = vunpack.c.l.b16 %v782
      %v837 = vunpack.c.l.b16 %v783
      %v838 = vunpack.c.l.b16 %v784
      %v839 = vunpack.c.l.b16 %v785
      %v840 = vunpack.c.l.b16 %v786
      %v841 = vunpack.c.l.b16 %v787
      %v842 = vunpack.c.l.b16 %v788
      %v843 = vunpack.c.l.b16 %v789
      %v844 = vunpack.c.l.b16 %v790
      %v845 = vunpack.c.l.b16 %v791
      %v846 = vunpack.c.l.b16 %v792
      %v847 = vunpack.c.l.b16 %v793
      %v848 = vunpack.c.l.b16 %v794
      %v849 = vpack.c.b16 %v834, %v833
      %v850 = vpack.c.b16 %v836, %v835
      %v851 = vpack.c.b16 %v838, %v837
      %v852 = vpack.c.b16 %v840, %v839
      %v853 = vpack.c.b16 %v842, %v841
      %v854 = vpack.c.b16 %v844, %v843
      %v855 = vpack.c.b16 %v846, %v845
      %v856 = vpack.c.b16 %v848, %v847
      %865 = vmatprep.subr.bf16.mxu0 0
      %866 = vmatpush1.bf16.msra.mxu0 %v849
      %867 = vmatprep.subr.bf16.mxu0 0
      %868 = vmatpush1.bf16.msra.mxu0 %v850
      %869 = vmatprep.subr.bf16.mxu0 0
      %870 = vmatpush1.bf16.msra.mxu0 %v851
      %871 = vmatprep.subr.bf16.mxu0 0
      %872 = vmatpush1.bf16.msra.mxu0 %v852
      %873 = vmatprep.subr.bf16.mxu0 0
      %874 = vmatpush1.bf16.msra.mxu0 %v853
      %875 = vmatprep.subr.bf16.mxu0 0
      %876 = vmatpush1.bf16.msra.mxu0 %v854
      %877 = vmatprep.subr.bf16.mxu0 0
      %878 = vmatpush1.bf16.msra.mxu0 %v855
      %879 = vmatprep.subr.bf16.mxu0 0
      %880 = vmatpush1.bf16.msra.mxu0 %v856
      %881 = vmatprep.subr.bf16.mxu0 0
      %882 = vmatpush1.bf16.msra.mxu0 0
      %883 = vmatprep.subr.bf16.mxu0 0
      %884 = vmatpush1.bf16.msra.mxu0 0
      %885 = vmatprep.subr.bf16.mxu0 0
      %886 = vmatpush1.bf16.msra.mxu0 0
      %887 = vmatprep.subr.bf16.mxu0 0
      %888 = vmatpush1.bf16.msra.mxu0 0
      %889 = vmatprep.subr.bf16.mxu0 0
      %890 = vmatpush1.bf16.msra.mxu0 0
      %891 = vmatprep.subr.bf16.mxu0 0
      %892 = vmatpush1.bf16.msra.mxu0 0
      %893 = vmatprep.subr.bf16.mxu0 0
      %894 = vmatpush1.bf16.msra.mxu0 0
      %895 = vmatprep.subr.bf16.mxu0 0
      %896 = vmatpush1.bf16.msra.mxu0 0
      %897 = vmatprep.mubr.bf16.mxu0 0
      %898 = vmatmul.mubr.bf16.gmra.mrb[0].mxu0 %v815
      %v899 = vpop.f32.mrb[0].mxu0
      %v900 = vadd.f32 0.0, %v899
      %v901 = vpop.f32.mrb[0].mxu0
      %v902 = vpop.f32.mrb[0].mxu0
      %v903 = vadd.f32 0.0, %v902
      %v904 = vpop.f32.mrb[0].mxu0
      %905 = vdwg.mxu0
      %v906 = vadd.f32 %v771, %v900
      %v907 = vadd.f32 %v772, %v903
      %v908 = vld [vmem:[%s773] sm:$0x7]
      %v909 = vld [vmem:[%s773 + $0x4] sm:$0x7]
      %v910 = vld [vmem:[%s773 + $0x8] sm:$0x7]
      %v911 = vld [vmem:[%s773 + $0xc] sm:$0x7]
      %v917 = vunpack.c.l.s4 1983009808
      %v918 = vunpack.c.0.s8 %v917
      %v919 = vlaneseq
      %v920 = vshrl.u32 %v919, 7
      %v921 = vsub.s32 %v918, %v920
      %v922 = vrot.slane %v908, %v921
      %v923 = vcombine.high %v922, %v922
      %v925 = vunpack.c.l.s4 1983009808
      %v926 = vunpack.c.0.s8 %v925
      %v927 = vlaneseq
      %v928 = vshrl.u32 %v927, 7
      %v929 = vsub.s32 %v926, %v928
      %v930 = vrot.slane %v909, %v929
      %v931 = vcombine.high %v930, %v930
      %v933 = vunpack.c.l.s4 1983009808
      %v934 = vunpack.c.0.s8 %v933
      %v935 = vlaneseq
      %v936 = vshrl.u32 %v935, 7
      %v937 = vsub.s32 %v934, %v936
      %v938 = vrot.slane %v910, %v937
      %v939 = vcombine.high %v938, %v938
      %v941 = vunpack.c.l.s4 1983009808
      %v942 = vunpack.c.0.s8 %v941
      %v943 = vlaneseq
      %v944 = vshrl.u32 %v943, 7
      %v945 = vsub.s32 %v942, %v944
      %v946 = vrot.slane %v911, %v945
      %v947 = vcombine.high %v946, %v946
      %v949 = vshrl.u32 %v922, 16
      %v951 = vrot.slane %v949, 6
      %v952 = vshll.u32 %v922, 16
      %v954 = vrot.slane %v952, 7
      %v955 = vor.u32 %v951, %v954
      %v956 = vrot.slane %v955, 2
      %v958 = vshll.u32 %v923, 16
      %v960 = vrot.slane %v958, 7
      %v961 = vsel %vm292, %v956, %v960
      %v963 = vshrl.u32 %v930, 16
      %v965 = vrot.slane %v963, 6
      %v966 = vshll.u32 %v930, 16
      %v968 = vrot.slane %v966, 7
      %v969 = vor.u32 %v965, %v968
      %v970 = vrot.slane %v969, 2
      %v972 = vshll.u32 %v931, 16
      %v974 = vrot.slane %v972, 7
      %v975 = vsel %vm292, %v970, %v974
      %v977 = vshrl.u32 %v938, 16
      %v979 = vrot.slane %v977, 6
      %v980 = vshll.u32 %v938, 16
      %v982 = vrot.slane %v980, 7
      %v983 = vor.u32 %v979, %v982
      %v984 = vrot.slane %v983, 2
      %v986 = vshll.u32 %v939, 16
      %v988 = vrot.slane %v986, 7
      %v989 = vsel %vm292, %v984, %v988
      %v991 = vshrl.u32 %v946, 16
      %v993 = vrot.slane %v991, 6
      %v994 = vshll.u32 %v946, 16
      %v996 = vrot.slane %v994, 7
      %v997 = vor.u32 %v993, %v996
      %v998 = vrot.slane %v997, 2
      %v1000 = vshll.u32 %v947, 16
      %v1002 = vrot.slane %v1000, 7
      %v1003 = vsel %vm292, %v998, %v1002
      %s1004 = scalar_lea.vmem %s1, 256
      %v1005 = vld [vmem:[%s1004] sm:$0xf]
      %v1006 = vld [vmem:[%s1004 + $0x4] sm:$0xf]
      %v1007 = vld [vmem:[%s1004 + $0x8] sm:$0xf]
      %v1008 = vld [vmem:[%s1004 + $0xc] sm:$0xf]
      %v1009 = vld [vmem:[%s1004 + $0x10] sm:$0xf]
      %v1010 = vld [vmem:[%s1004 + $0x14] sm:$0xf]
      %v1011 = vld [vmem:[%s1004 + $0x18] sm:$0xf]
      %v1012 = vld [vmem:[%s1004 + $0x1c] sm:$0xf]
      %v1013 = vld [vmem:[%s1004 + $0x20] sm:$0xf]
      %v1014 = vld [vmem:[%s1004 + $0x24] sm:$0xf]
      %v1015 = vld [vmem:[%s1004 + $0x28] sm:$0xf]
      %v1016 = vld [vmem:[%s1004 + $0x2c] sm:$0xf]
      %v1017 = vld [vmem:[%s1004 + $0x30] sm:$0xf]
      %v1018 = vld [vmem:[%s1004 + $0x34] sm:$0xf]
      %v1019 = vld [vmem:[%s1004 + $0x38] sm:$0xf]
      %v1020 = vld [vmem:[%s1004 + $0x3c] sm:$0xf]
      %v1021 = vcombine.low %v961, %v975
      %v1022 = vcombine.low %v989, %v1003
      %v1024 = vunpack.c.l.s4 1983009808
      %v1025 = vunpack.c.0.s8 %v1024
      %v1026 = vlaneseq
      %v1027 = vshrl.u32 %v1026, 7
      %v1028 = vsub.s32 %v1025, %v1027
      %v1029 = vrot.slane %v1021, %v1028
      %v1031 = vunpack.c.l.s4 1983009808
      %v1032 = vunpack.c.0.s8 %v1031
      %v1033 = vlaneseq
      %v1034 = vshrl.u32 %v1033, 7
      %v1035 = vsub.s32 %v1032, %v1034
      %v1036 = vrot.slane %v1022, %v1035
      %v1037 = vcombine.low %v1029, %v1036
      %v1055 = vunpack.c.l.b16 %v1005
      %v1056 = vunpack.c.l.b16 %v1006
      %v1057 = vunpack.c.l.b16 %v1007
      %v1058 = vunpack.c.l.b16 %v1008
      %v1059 = vunpack.c.l.b16 %v1009
      %v1060 = vunpack.c.l.b16 %v1010
      %v1061 = vunpack.c.l.b16 %v1011
      %v1062 = vunpack.c.l.b16 %v1012
      %v1063 = vunpack.c.l.b16 %v1013
      %v1064 = vunpack.c.l.b16 %v1014
      %v1065 = vunpack.c.l.b16 %v1015
      %v1066 = vunpack.c.l.b16 %v1016
      %v1067 = vunpack.c.l.b16 %v1017
      %v1068 = vunpack.c.l.b16 %v1018
      %v1069 = vunpack.c.l.b16 %v1019
      %v1070 = vunpack.c.l.b16 %v1020
      %v1071 = vpack.c.b16 %v1056, %v1055
      %v1072 = vpack.c.b16 %v1058, %v1057
      %v1073 = vpack.c.b16 %v1060, %v1059
      %v1074 = vpack.c.b16 %v1062, %v1061
      %v1075 = vpack.c.b16 %v1064, %v1063
      %v1076 = vpack.c.b16 %v1066, %v1065
      %v1077 = vpack.c.b16 %v1068, %v1067
      %v1078 = vpack.c.b16 %v1070, %v1069
      %1087 = vmatprep.subr.bf16.mxu0 0
      %1088 = vmatpush1.bf16.msra.mxu0 %v1071
      %1089 = vmatprep.subr.bf16.mxu0 0
      %1090 = vmatpush1.bf16.msra.mxu0 %v1072
      %1091 = vmatprep.subr.bf16.mxu0 0
      %1092 = vmatpush1.bf16.msra.mxu0 %v1073
      %1093 = vmatprep.subr.bf16.mxu0 0
      %1094 = vmatpush1.bf16.msra.mxu0 %v1074
      %1095 = vmatprep.subr.bf16.mxu0 0
      %1096 = vmatpush1.bf16.msra.mxu0 %v1075
      %1097 = vmatprep.subr.bf16.mxu0 0
      %1098 = vmatpush1.bf16.msra.mxu0 %v1076
      %1099 = vmatprep.subr.bf16.mxu0 0
      %1100 = vmatpush1.bf16.msra.mxu0 %v1077
      %1101 = vmatprep.subr.bf16.mxu0 0
      %1102 = vmatpush1.bf16.msra.mxu0 %v1078
      %1103 = vmatprep.subr.bf16.mxu0 0
      %1104 = vmatpush1.bf16.msra.mxu0 0
      %1105 = vmatprep.subr.bf16.mxu0 0
      %1106 = vmatpush1.bf16.msra.mxu0 0
      %1107 = vmatprep.subr.bf16.mxu0 0
      %1108 = vmatpush1.bf16.msra.mxu0 0
      %1109 = vmatprep.subr.bf16.mxu0 0
      %1110 = vmatpush1.bf16.msra.mxu0 0
      %1111 = vmatprep.subr.bf16.mxu0 0
      %1112 = vmatpush1.bf16.msra.mxu0 0
      %1113 = vmatprep.subr.bf16.mxu0 0
      %1114 = vmatpush1.bf16.msra.mxu0 0
      %1115 = vmatprep.subr.bf16.mxu0 0
      %1116 = vmatpush1.bf16.msra.mxu0 0
      %1117 = vmatprep.subr.bf16.mxu0 0
      %1118 = vmatpush1.bf16.msra.mxu0 0
      %1119 = vmatprep.mubr.bf16.mxu0 0
      %1120 = vmatmul.mubr.bf16.gmra.mrb[0].mxu0 %v1037
      %v1121 = vpop.f32.mrb[0].mxu0
      %v1122 = vadd.f32 0.0, %v1121
      %v1123 = vpop.f32.mrb[0].mxu0
      %v1124 = vpop.f32.mrb[0].mxu0
      %v1125 = vadd.f32 0.0, %v1124
      %v1126 = vpop.f32.mrb[0].mxu0
      %1127 = vdwg.mxu0
      %v1128 = vadd.f32 %v906, %v1122
      %v1129 = vadd.f32 %v907, %v1125
      %v1130 = vld [vmem:[%s773] sm:$0x6]
      %v1131 = vld [vmem:[%s773 + $0x4] sm:$0x6]
      %v1132 = vld [vmem:[%s773 + $0x8] sm:$0x6]
      %v1133 = vld [vmem:[%s773 + $0xc] sm:$0x6]
      %v1139 = vunpack.c.l.s4 1983009808
      %v1140 = vunpack.c.0.s8 %v1139
      %v1141 = vlaneseq
      %v1142 = vshrl.u32 %v1141, 7
      %v1143 = vsub.s32 %v1140, %v1142
      %v1144 = vrot.slane %v1130, %v1143
      %v1145 = vcombine.high %v1144, %v1144
      %v1147 = vunpack.c.l.s4 1983009808
      %v1148 = vunpack.c.0.s8 %v1147
      %v1149 = vlaneseq
      %v1150 = vshrl.u32 %v1149, 7
      %v1151 = vsub.s32 %v1148, %v1150
      %v1152 = vrot.slane %v1131, %v1151
      %v1153 = vcombine.high %v1152, %v1152
      %v1155 = vunpack.c.l.s4 1983009808
      %v1156 = vunpack.c.0.s8 %v1155
      %v1157 = vlaneseq
      %v1158 = vshrl.u32 %v1157, 7
      %v1159 = vsub.s32 %v1156, %v1158
      %v1160 = vrot.slane %v1132, %v1159
      %v1161 = vcombine.high %v1160, %v1160
      %v1163 = vunpack.c.l.s4 1983009808
      %v1164 = vunpack.c.0.s8 %v1163
      %v1165 = vlaneseq
      %v1166 = vshrl.u32 %v1165, 7
      %v1167 = vsub.s32 %v1164, %v1166
      %v1168 = vrot.slane %v1133, %v1167
      %v1169 = vcombine.high %v1168, %v1168
      %v1170 = vrot.slane %v1144, 7
      %v1171 = vrot.slane %v1170, 2
      %v1172 = vrot.slane %v1145, 7
      %v1173 = vsel %vm630, %v1171, %v1172
      %v1174 = vrot.slane %v1152, 7
      %v1175 = vrot.slane %v1174, 2
      %v1176 = vrot.slane %v1153, 7
      %v1177 = vsel %vm630, %v1175, %v1176
      %v1178 = vrot.slane %v1160, 7
      %v1179 = vrot.slane %v1178, 2
      %v1180 = vrot.slane %v1161, 7
      %v1181 = vsel %vm630, %v1179, %v1180
      %v1182 = vrot.slane %v1168, 7
      %v1183 = vrot.slane %v1182, 2
      %v1184 = vrot.slane %v1169, 7
      %v1185 = vsel %vm630, %v1183, %v1184
      %s1186 = scalar_lea.vmem %s1, 320
      %v1187 = vld [vmem:[%s1186] sm:$0xf]
      %v1188 = vld [vmem:[%s1186 + $0x4] sm:$0xf]
      %v1189 = vld [vmem:[%s1186 + $0x8] sm:$0xf]
      %v1190 = vld [vmem:[%s1186 + $0xc] sm:$0xf]
      %v1191 = vld [vmem:[%s1186 + $0x10] sm:$0xf]
      %v1192 = vld [vmem:[%s1186 + $0x14] sm:$0xf]
      %v1193 = vld [vmem:[%s1186 + $0x18] sm:$0xf]
      %v1194 = vld [vmem:[%s1186 + $0x1c] sm:$0xf]
      %v1195 = vld [vmem:[%s1186 + $0x20] sm:$0xf]
      %v1196 = vld [vmem:[%s1186 + $0x24] sm:$0xf]
      %v1197 = vld [vmem:[%s1186 + $0x28] sm:$0xf]
      %v1198 = vld [vmem:[%s1186 + $0x2c] sm:$0xf]
      %v1199 = vld [vmem:[%s1186 + $0x30] sm:$0xf]
      %v1200 = vld [vmem:[%s1186 + $0x34] sm:$0xf]
      %v1201 = vld [vmem:[%s1186 + $0x38] sm:$0xf]
      %v1202 = vld [vmem:[%s1186 + $0x3c] sm:$0xf]
      %v1203 = vcombine.low %v1173, %v1177
      %v1204 = vcombine.low %v1181, %v1185
      %v1206 = vunpack.c.l.s4 1983009808
      %v1207 = vunpack.c.0.s8 %v1206
      %v1208 = vlaneseq
      %v1209 = vshrl.u32 %v1208, 7
      %v1210 = vsub.s32 %v1207, %v1209
      %v1211 = vrot.slane %v1203, %v1210
      %v1213 = vunpack.c.l.s4 1983009808
      %v1214 = vunpack.c.0.s8 %v1213
      %v1215 = vlaneseq
      %v1216 = vshrl.u32 %v1215, 7
      %v1217 = vsub.s32 %v1214, %v1216
      %v1218 = vrot.slane %v1204, %v1217
      %v1219 = vcombine.low %v1211, %v1218
      %v1237 = vunpack.c.l.b16 %v1187
      %v1238 = vunpack.c.l.b16 %v1188
      %v1239 = vunpack.c.l.b16 %v1189
      %v1240 = vunpack.c.l.b16 %v1190
      %v1241 = vunpack.c.l.b16 %v1191
      %v1242 = vunpack.c.l.b16 %v1192
      %v1243 = vunpack.c.l.b16 %v1193
      %v1244 = vunpack.c.l.b16 %v1194
      %v1245 = vunpack.c.l.b16 %v1195
      %v1246 = vunpack.c.l.b16 %v1196
      %v1247 = vunpack.c.l.b16 %v1197
      %v1248 = vunpack.c.l.b16 %v1198
      %v1249 = vunpack.c.l.b16 %v1199
      %v1250 = vunpack.c.l.b16 %v1200
      %v1251 = vunpack.c.l.b16 %v1201
      %v1252 = vunpack.c.l.b16 %v1202
      %v1253 = vpack.c.b16 %v1238, %v1237
      %v1254 = vpack.c.b16 %v1240, %v1239
      %v1255 = vpack.c.b16 %v1242, %v1241
      %v1256 = vpack.c.b16 %v1244, %v1243
      %v1257 = vpack.c.b16 %v1246, %v1245
      %v1258 = vpack.c.b16 %v1248, %v1247
      %v1259 = vpack.c.b16 %v1250, %v1249
      %v1260 = vpack.c.b16 %v1252, %v1251
      %1269 = vmatprep.subr.bf16.mxu0 0
      %1270 = vmatpush1.bf16.msra.mxu0 %v1253
      %1271 = vmatprep.subr.bf16.mxu0 0
      %1272 = vmatpush1.bf16.msra.mxu0 %v1254
      %1273 = vmatprep.subr.bf16.mxu0 0
      %1274 = vmatpush1.bf16.msra.mxu0 %v1255
      %1275 = vmatprep.subr.bf16.mxu0 0
      %1276 = vmatpush1.bf16.msra.mxu0 %v1256
      %1277 = vmatprep.subr.bf16.mxu0 0
      %1278 = vmatpush1.bf16.msra.mxu0 %v1257
      %1279 = vmatprep.subr.bf16.mxu0 0
      %1280 = vmatpush1.bf16.msra.mxu0 %v1258
      %1281 = vmatprep.subr.bf16.mxu0 0
      %1282 = vmatpush1.bf16.msra.mxu0 %v1259
      %1283 = vmatprep.subr.bf16.mxu0 0
      %1284 = vmatpush1.bf16.msra.mxu0 %v1260
      %1285 = vmatprep.subr.bf16.mxu0 0
      %1286 = vmatpush1.bf16.msra.mxu0 0
      %1287 = vmatprep.subr.bf16.mxu0 0
      %1288 = vmatpush1.bf16.msra.mxu0 0
      %1289 = vmatprep.subr.bf16.mxu0 0
      %1290 = vmatpush1.bf16.msra.mxu0 0
      %1291 = vmatprep.subr.bf16.mxu0 0
      %1292 = vmatpush1.bf16.msra.mxu0 0
      %1293 = vmatprep.subr.bf16.mxu0 0
      %1294 = vmatpush1.bf16.msra.mxu0 0
      %1295 = vmatprep.subr.bf16.mxu0 0
      %1296 = vmatpush1.bf16.msra.mxu0 0
      %1297 = vmatprep.subr.bf16.mxu0 0
      %1298 = vmatpush1.bf16.msra.mxu0 0
      %1299 = vmatprep.subr.bf16.mxu0 0
      %1300 = vmatpush1.bf16.msra.mxu0 0
      %1301 = vmatprep.mubr.bf16.mxu0 0
      %1302 = vmatmul.mubr.bf16.gmra.mrb[0].mxu0 %v1219
      %v1303 = vpop.f32.mrb[0].mxu0
      %v1304 = vadd.f32 0.0, %v1303
      %v1305 = vpop.f32.mrb[0].mxu0
      %v1306 = vpop.f32.mrb[0].mxu0
      %v1307 = vadd.f32 0.0, %v1306
      %v1308 = vpop.f32.mrb[0].mxu0
      %1309 = vdwg.mxu0
      %v1310 = vadd.f32 %v1128, %v1304
      %v1311 = vadd.f32 %v1129, %v1307
      %s1312 = scalar_lea.vmem %s219, 8
      %v1313 = vld [vmem:[%s1312] sm:$0x3]
      %v1314 = vld [vmem:[%s1312 + $0x4] sm:$0x3]
      %v1315 = vld [vmem:[%s1312 + $0x8] sm:$0x3]
      %v1316 = vld [vmem:[%s1312 + $0xc] sm:$0x3]
      %s1317 = scalar_lea.vmem %s1, 384
      %v1318 = vld [vmem:[%s1317] sm:$0xf]
      %v1319 = vld [vmem:[%s1317 + $0x4] sm:$0xf]
      %v1320 = vld [vmem:[%s1317 + $0x8] sm:$0xf]
      %v1321 = vld [vmem:[%s1317 + $0xc] sm:$0xf]
      %v1322 = vld [vmem:[%s1317 + $0x10] sm:$0xf]
      %v1323 = vld [vmem:[%s1317 + $0x14] sm:$0xf]
      %v1324 = vld [vmem:[%s1317 + $0x18] sm:$0xf]
      %v1325 = vld [vmem:[%s1317 + $0x1c] sm:$0xf]
      %v1326 = vld [vmem:[%s1317 + $0x20] sm:$0xf]
      %v1327 = vld [vmem:[%s1317 + $0x24] sm:$0xf]
      %v1328 = vld [vmem:[%s1317 + $0x28] sm:$0xf]
      %v1329 = vld [vmem:[%s1317 + $0x2c] sm:$0xf]
      %v1330 = vld [vmem:[%s1317 + $0x30] sm:$0xf]
      %v1331 = vld [vmem:[%s1317 + $0x34] sm:$0xf]
      %v1332 = vld [vmem:[%s1317 + $0x38] sm:$0xf]
      %v1333 = vld [vmem:[%s1317 + $0x3c] sm:$0xf]
      %v1338 = vcombine.low %v1313, %v1314
      %v1339 = vcombine.low %v1315, %v1316
      %v1341 = vunpack.c.l.s4 1983009808
      %v1342 = vunpack.c.0.s8 %v1341
      %v1343 = vlaneseq
      %v1344 = vshrl.u32 %v1343, 7
      %v1345 = vsub.s32 %v1342, %v1344
      %v1346 = vrot.slane %v1338, %v1345
      %v1348 = vunpack.c.l.s4 1983009808
      %v1349 = vunpack.c.0.s8 %v1348
      %v1350 = vlaneseq
      %v1351 = vshrl.u32 %v1350, 7
      %v1352 = vsub.s32 %v1349, %v1351
      %v1353 = vrot.slane %v1339, %v1352
      %v1354 = vcombine.low %v1346, %v1353
      %v1372 = vunpack.c.l.b16 %v1318
      %v1373 = vunpack.c.l.b16 %v1319
      %v1374 = vunpack.c.l.b16 %v1320
      %v1375 = vunpack.c.l.b16 %v1321
      %v1376 = vunpack.c.l.b16 %v1322
      %v1377 = vunpack.c.l.b16 %v1323
      %v1378 = vunpack.c.l.b16 %v1324
      %v1379 = vunpack.c.l.b16 %v1325
      %v1380 = vunpack.c.l.b16 %v1326
      %v1381 = vunpack.c.l.b16 %v1327
      %v1382 = vunpack.c.l.b16 %v1328
      %v1383 = vunpack.c.l.b16 %v1329
      %v1384 = vunpack.c.l.b16 %v1330
      %v1385 = vunpack.c.l.b16 %v1331
      %v1386 = vunpack.c.l.b16 %v1332
      %v1387 = vunpack.c.l.b16 %v1333
      %v1388 = vpack.c.b16 %v1373, %v1372
      %v1389 = vpack.c.b16 %v1375, %v1374
      %v1390 = vpack.c.b16 %v1377, %v1376
      %v1391 = vpack.c.b16 %v1379, %v1378
      %v1392 = vpack.c.b16 %v1381, %v1380
      %v1393 = vpack.c.b16 %v1383, %v1382
      %v1394 = vpack.c.b16 %v1385, %v1384
      %v1395 = vpack.c.b16 %v1387, %v1386
      %1404 = vmatprep.subr.bf16.mxu0 0
      %1405 = vmatpush1.bf16.msra.mxu0 %v1388
      %1406 = vmatprep.subr.bf16.mxu0 0
      %1407 = vmatpush1.bf16.msra.mxu0 %v1389
      %1408 = vmatprep.subr.bf16.mxu0 0
      %1409 = vmatpush1.bf16.msra.mxu0 %v1390
      %1410 = vmatprep.subr.bf16.mxu0 0
      %1411 = vmatpush1.bf16.msra.mxu0 %v1391
      %1412 = vmatprep.subr.bf16.mxu0 0
      %1413 = vmatpush1.bf16.msra.mxu0 %v1392
      %1414 = vmatprep.subr.bf16.mxu0 0
      %1415 = vmatpush1.bf16.msra.mxu0 %v1393
      %1416 = vmatprep.subr.bf16.mxu0 0
      %1417 = vmatpush1.bf16.msra.mxu0 %v1394
      %1418 = vmatprep.subr.bf16.mxu0 0
      %1419 = vmatpush1.bf16.msra.mxu0 %v1395
      %1420 = vmatprep.subr.bf16.mxu0 0
      %1421 = vmatpush1.bf16.msra.mxu0 0
      %1422 = vmatprep.subr.bf16.mxu0 0
      %1423 = vmatpush1.bf16.msra.mxu0 0
      %1424 = vmatprep.subr.bf16.mxu0 0
      %1425 = vmatpush1.bf16.msra.mxu0 0
      %1426 = vmatprep.subr.bf16.mxu0 0
      %1427 = vmatpush1.bf16.msra.mxu0 0
      %1428 = vmatprep.subr.bf16.mxu0 0
      %1429 = vmatpush1.bf16.msra.mxu0 0
      %1430 = vmatprep.subr.bf16.mxu0 0
      %1431 = vmatpush1.bf16.msra.mxu0 0
      %1432 = vmatprep.subr.bf16.mxu0 0
      %1433 = vmatpush1.bf16.msra.mxu0 0
      %1434 = vmatprep.subr.bf16.mxu0 0
      %1435 = vmatpush1.bf16.msra.mxu0 0
      %1436 = vmatprep.mubr.bf16.mxu0 0
      %1437 = vmatmul.mubr.bf16.gmra.mrb[0].mxu0 %v1354
      %v1438 = vpop.f32.mrb[0].mxu0
      %v1439 = vadd.f32 0.0, %v1438
      %v1440 = vpop.f32.mrb[0].mxu0
      %v1441 = vpop.f32.mrb[0].mxu0
      %v1442 = vadd.f32 0.0, %v1441
      %v1443 = vpop.f32.mrb[0].mxu0
      %1444 = vdwg.mxu0
      %v1445 = vadd.f32 %v1310, %v1439
      %v1446 = vadd.f32 %v1311, %v1442
      %v1447 = vld [vmem:[%s1312] sm:$0x7]
      %v1448 = vld [vmem:[%s1312 + $0x4] sm:$0x7]
      %v1449 = vld [vmem:[%s1312 + $0x8] sm:$0x7]
      %v1450 = vld [vmem:[%s1312 + $0xc] sm:$0x7]
      %v1456 = vunpack.c.l.s4 1983009808
      %v1457 = vunpack.c.0.s8 %v1456
      %v1458 = vlaneseq
      %v1459 = vshrl.u32 %v1458, 7
      %v1460 = vsub.s32 %v1457, %v1459
      %v1461 = vrot.slane %v1447, %v1460
      %v1462 = vcombine.high %v1461, %v1461
      %v1464 = vunpack.c.l.s4 1983009808
      %v1465 = vunpack.c.0.s8 %v1464
      %v1466 = vlaneseq
      %v1467 = vshrl.u32 %v1466, 7
      %v1468 = vsub.s32 %v1465, %v1467
      %v1469 = vrot.slane %v1448, %v1468
      %v1470 = vcombine.high %v1469, %v1469
      %v1472 = vunpack.c.l.s4 1983009808
      %v1473 = vunpack.c.0.s8 %v1472
      %v1474 = vlaneseq
      %v1475 = vshrl.u32 %v1474, 7
      %v1476 = vsub.s32 %v1473, %v1475
      %v1477 = vrot.slane %v1449, %v1476
      %v1478 = vcombine.high %v1477, %v1477
      %v1480 = vunpack.c.l.s4 1983009808
      %v1481 = vunpack.c.0.s8 %v1480
      %v1482 = vlaneseq
      %v1483 = vshrl.u32 %v1482, 7
      %v1484 = vsub.s32 %v1481, %v1483
      %v1485 = vrot.slane %v1450, %v1484
      %v1486 = vcombine.high %v1485, %v1485
      %v1488 = vshrl.u32 %v1461, 16
      %v1490 = vrot.slane %v1488, 6
      %v1491 = vshll.u32 %v1461, 16
      %v1493 = vrot.slane %v1491, 7
      %v1494 = vor.u32 %v1490, %v1493
      %v1495 = vrot.slane %v1494, 2
      %v1497 = vshll.u32 %v1462, 16
      %v1499 = vrot.slane %v1497, 7
      %v1500 = vsel %vm292, %v1495, %v1499
      %v1502 = vshrl.u32 %v1469, 16
      %v1504 = vrot.slane %v1502, 6
      %v1505 = vshll.u32 %v1469, 16
      %v1507 = vrot.slane %v1505, 7
      %v1508 = vor.u32 %v1504, %v1507
      %v1509 = vrot.slane %v1508, 2
      %v1511 = vshll.u32 %v1470, 16
      %v1513 = vrot.slane %v1511, 7
      %v1514 = vsel %vm292, %v1509, %v1513
      %v1516 = vshrl.u32 %v1477, 16
      %v1518 = vrot.slane %v1516, 6
      %v1519 = vshll.u32 %v1477, 16
      %v1521 = vrot.slane %v1519, 7
      %v1522 = vor.u32 %v1518, %v1521
      %v1523 = vrot.slane %v1522, 2
      %v1525 = vshll.u32 %v1478, 16
      %v1527 = vrot.slane %v1525, 7
      %v1528 = vsel %vm292, %v1523, %v1527
      %v1530 = vshrl.u32 %v1485, 16
      %v1532 = vrot.slane %v1530, 6
      %v1533 = vshll.u32 %v1485, 16
      %v1535 = vrot.slane %v1533, 7
      %v1536 = vor.u32 %v1532, %v1535
      %v1537 = vrot.slane %v1536, 2
      %v1539 = vshll.u32 %v1486, 16
      %v1541 = vrot.slane %v1539, 7
      %v1542 = vsel %vm292, %v1537, %v1541
      %s1543 = scalar_lea.vmem %s1, 448
      %v1544 = vld [vmem:[%s1543] sm:$0xf]
      %v1545 = vld [vmem:[%s1543 + $0x4] sm:$0xf]
      %v1546 = vld [vmem:[%s1543 + $0x8] sm:$0xf]
      %v1547 = vld [vmem:[%s1543 + $0xc] sm:$0xf]
      %v1548 = vld [vmem:[%s1543 + $0x10] sm:$0xf]
      %v1549 = vld [vmem:[%s1543 + $0x14] sm:$0xf]
      %v1550 = vld [vmem:[%s1543 + $0x18] sm:$0xf]
      %v1551 = vld [vmem:[%s1543 + $0x1c] sm:$0xf]
      %v1552 = vld [vmem:[%s1543 + $0x20] sm:$0xf]
      %v1553 = vld [vmem:[%s1543 + $0x24] sm:$0xf]
      %v1554 = vld [vmem:[%s1543 + $0x28] sm:$0xf]
      %v1555 = vld [vmem:[%s1543 + $0x2c] sm:$0xf]
      %v1556 = vld [vmem:[%s1543 + $0x30] sm:$0xf]
      %v1557 = vld [vmem:[%s1543 + $0x34] sm:$0xf]
      %v1558 = vld [vmem:[%s1543 + $0x38] sm:$0xf]
      %v1559 = vld [vmem:[%s1543 + $0x3c] sm:$0xf]
      %v1560 = vcombine.low %v1500, %v1514
      %v1561 = vcombine.low %v1528, %v1542
      %v1563 = vunpack.c.l.s4 1983009808
      %v1564 = vunpack.c.0.s8 %v1563
      %v1565 = vlaneseq
      %v1566 = vshrl.u32 %v1565, 7
      %v1567 = vsub.s32 %v1564, %v1566
      %v1568 = vrot.slane %v1560, %v1567
      %v1570 = vunpack.c.l.s4 1983009808
      %v1571 = vunpack.c.0.s8 %v1570
      %v1572 = vlaneseq
      %v1573 = vshrl.u32 %v1572, 7
      %v1574 = vsub.s32 %v1571, %v1573
      %v1575 = vrot.slane %v1561, %v1574
      %v1576 = vcombine.low %v1568, %v1575
      %v1594 = vunpack.c.l.b16 %v1544
      %v1595 = vunpack.c.l.b16 %v1545
      %v1596 = vunpack.c.l.b16 %v1546
      %v1597 = vunpack.c.l.b16 %v1547
      %v1598 = vunpack.c.l.b16 %v1548
      %v1599 = vunpack.c.l.b16 %v1549
      %v1600 = vunpack.c.l.b16 %v1550
      %v1601 = vunpack.c.l.b16 %v1551
      %v1602 = vunpack.c.l.b16 %v1552
      %v1603 = vunpack.c.l.b16 %v1553
      %v1604 = vunpack.c.l.b16 %v1554
      %v1605 = vunpack.c.l.b16 %v1555
      %v1606 = vunpack.c.l.b16 %v1556
      %v1607 = vunpack.c.l.b16 %v1557
      %v1608 = vunpack.c.l.b16 %v1558
      %v1609 = vunpack.c.l.b16 %v1559
      %v1610 = vpack.c.b16 %v1595, %v1594
      %v1611 = vpack.c.b16 %v1597, %v1596
      %v1612 = vpack.c.b16 %v1599, %v1598
      %v1613 = vpack.c.b16 %v1601, %v1600
      %v1614 = vpack.c.b16 %v1603, %v1602
      %v1615 = vpack.c.b16 %v1605, %v1604
      %v1616 = vpack.c.b16 %v1607, %v1606
      %v1617 = vpack.c.b16 %v1609, %v1608
      %1626 = vmatprep.subr.bf16.mxu0 0
      %1627 = vmatpush1.bf16.msra.mxu0 %v1610
      %1628 = vmatprep.subr.bf16.mxu0 0
      %1629 = vmatpush1.bf16.msra.mxu0 %v1611
      %1630 = vmatprep.subr.bf16.mxu0 0
      %1631 = vmatpush1.bf16.msra.mxu0 %v1612
      %1632 = vmatprep.subr.bf16.mxu0 0
      %1633 = vmatpush1.bf16.msra.mxu0 %v1613
      %1634 = vmatprep.subr.bf16.mxu0 0
      %1635 = vmatpush1.bf16.msra.mxu0 %v1614
      %1636 = vmatprep.subr.bf16.mxu0 0
      %1637 = vmatpush1.bf16.msra.mxu0 %v1615
      %1638 = vmatprep.subr.bf16.mxu0 0
      %1639 = vmatpush1.bf16.msra.mxu0 %v1616
      %1640 = vmatprep.subr.bf16.mxu0 0
      %1641 = vmatpush1.bf16.msra.mxu0 %v1617
      %1642 = vmatprep.subr.bf16.mxu0 0
      %1643 = vmatpush1.bf16.msra.mxu0 0
      %1644 = vmatprep.subr.bf16.mxu0 0
      %1645 = vmatpush1.bf16.msra.mxu0 0
      %1646 = vmatprep.subr.bf16.mxu0 0
      %1647 = vmatpush1.bf16.msra.mxu0 0
      %1648 = vmatprep.subr.bf16.mxu0 0
      %1649 = vmatpush1.bf16.msra.mxu0 0
      %1650 = vmatprep.subr.bf16.mxu0 0
      %1651 = vmatpush1.bf16.msra.mxu0 0
      %1652 = vmatprep.subr.bf16.mxu0 0
      %1653 = vmatpush1.bf16.msra.mxu0 0
      %1654 = vmatprep.subr.bf16.mxu0 0
      %1655 = vmatpush1.bf16.msra.mxu0 0
      %1656 = vmatprep.subr.bf16.mxu0 0
      %1657 = vmatpush1.bf16.msra.mxu0 0
      %1658 = vmatprep.mubr.bf16.mxu0 0
      %1659 = vmatmul.mubr.bf16.gmra.mrb[0].mxu0 %v1576
      %v1660 = vpop.f32.mrb[0].mxu0
      %v1661 = vadd.f32 0.0, %v1660
      %v1662 = vpop.f32.mrb[0].mxu0
      %v1663 = vpop.f32.mrb[0].mxu0
      %v1664 = vadd.f32 0.0, %v1663
      %v1665 = vpop.f32.mrb[0].mxu0
      %1666 = vdwg.mxu0
      %v1667 = vadd.f32 %v1445, %v1661
      %v1668 = vadd.f32 %v1446, %v1664
      %v1669 = vld [vmem:[%s1312] sm:$0x6]
      %v1670 = vld [vmem:[%s1312 + $0x4] sm:$0x6]
      %v1671 = vld [vmem:[%s1312 + $0x8] sm:$0x6]
      %v1672 = vld [vmem:[%s1312 + $0xc] sm:$0x6]
      %v1678 = vunpack.c.l.s4 1983009808
      %v1679 = vunpack.c.0.s8 %v1678
      %v1680 = vlaneseq
      %v1681 = vshrl.u32 %v1680, 7
      %v1682 = vsub.s32 %v1679, %v1681
      %v1683 = vrot.slane %v1669, %v1682
      %v1684 = vcombine.high %v1683, %v1683
      %v1686 = vunpack.c.l.s4 1983009808
      %v1687 = vunpack.c.0.s8 %v1686
      %v1688 = vlaneseq
      %v1689 = vshrl.u32 %v1688, 7
      %v1690 = vsub.s32 %v1687, %v1689
      %v1691 = vrot.slane %v1670, %v1690
      %v1692 = vcombine.high %v1691, %v1691
      %v1694 = vunpack.c.l.s4 1983009808
      %v1695 = vunpack.c.0.s8 %v1694
      %v1696 = vlaneseq
      %v1697 = vshrl.u32 %v1696, 7
      %v1698 = vsub.s32 %v1695, %v1697
      %v1699 = vrot.slane %v1671, %v1698
      %v1700 = vcombine.high %v1699, %v1699
      %v1702 = vunpack.c.l.s4 1983009808
      %v1703 = vunpack.c.0.s8 %v1702
      %v1704 = vlaneseq
      %v1705 = vshrl.u32 %v1704, 7
      %v1706 = vsub.s32 %v1703, %v1705
      %v1707 = vrot.slane %v1672, %v1706
      %v1708 = vcombine.high %v1707, %v1707
      %v1709 = vrot.slane %v1683, 7
      %v1710 = vrot.slane %v1709, 2
      %v1711 = vrot.slane %v1684, 7
      %v1712 = vsel %vm630, %v1710, %v1711
      %v1713 = vrot.slane %v1691, 7
      %v1714 = vrot.slane %v1713, 2
      %v1715 = vrot.slane %v1692, 7
      %v1716 = vsel %vm630, %v1714, %v1715
      %v1717 = vrot.slane %v1699, 7
      %v1718 = vrot.slane %v1717, 2
      %v1719 = vrot.slane %v1700, 7
      %v1720 = vsel %vm630, %v1718, %v1719
      %v1721 = vrot.slane %v1707, 7
      %v1722 = vrot.slane %v1721, 2
      %v1723 = vrot.slane %v1708, 7
      %v1724 = vsel %vm630, %v1722, %v1723
      %s1725 = scalar_lea.vmem %s1, 512
      %v1726 = vld [vmem:[%s1725] sm:$0xf]
      %v1727 = vld [vmem:[%s1725 + $0x4] sm:$0xf]
      %v1728 = vld [vmem:[%s1725 + $0x8] sm:$0xf]
      %v1729 = vld [vmem:[%s1725 + $0xc] sm:$0xf]
      %v1730 = vld [vmem:[%s1725 + $0x10] sm:$0xf]
      %v1731 = vld [vmem:[%s1725 + $0x14] sm:$0xf]
      %v1732 = vld [vmem:[%s1725 + $0x18] sm:$0xf]
      %v1733 = vld [vmem:[%s1725 + $0x1c] sm:$0xf]
      %v1734 = vld [vmem:[%s1725 + $0x20] sm:$0xf]
      %v1735 = vld [vmem:[%s1725 + $0x24] sm:$0xf]
      %v1736 = vld [vmem:[%s1725 + $0x28] sm:$0xf]
      %v1737 = vld [vmem:[%s1725 + $0x2c] sm:$0xf]
      %v1738 = vld [vmem:[%s1725 + $0x30] sm:$0xf]
      %v1739 = vld [vmem:[%s1725 + $0x34] sm:$0xf]
      %v1740 = vld [vmem:[%s1725 + $0x38] sm:$0xf]
      %v1741 = vld [vmem:[%s1725 + $0x3c] sm:$0xf]
      %v1742 = vcombine.low %v1712, %v1716
      %v1743 = vcombine.low %v1720, %v1724
      %v1745 = vunpack.c.l.s4 1983009808
      %v1746 = vunpack.c.0.s8 %v1745
      %v1747 = vlaneseq
      %v1748 = vshrl.u32 %v1747, 7
      %v1749 = vsub.s32 %v1746, %v1748
      %v1750 = vrot.slane %v1742, %v1749
      %v1752 = vunpack.c.l.s4 1983009808
      %v1753 = vunpack.c.0.s8 %v1752
      %v1754 = vlaneseq
      %v1755 = vshrl.u32 %v1754, 7
      %v1756 = vsub.s32 %v1753, %v1755
      %v1757 = vrot.slane %v1743, %v1756
      %v1758 = vcombine.low %v1750, %v1757
      %v1776 = vunpack.c.l.b16 %v1726
      %v1777 = vunpack.c.l.b16 %v1727
      %v1778 = vunpack.c.l.b16 %v1728
      %v1779 = vunpack.c.l.b16 %v1729
      %v1780 = vunpack.c.l.b16 %v1730
      %v1781 = vunpack.c.l.b16 %v1731
      %v1782 = vunpack.c.l.b16 %v1732
      %v1783 = vunpack.c.l.b16 %v1733
      %v1784 = vunpack.c.l.b16 %v1734
      %v1785 = vunpack.c.l.b16 %v1735
      %v1786 = vunpack.c.l.b16 %v1736
      %v1787 = vunpack.c.l.b16 %v1737
      %v1788 = vunpack.c.l.b16 %v1738
      %v1789 = vunpack.c.l.b16 %v1739
      %v1790 = vunpack.c.l.b16 %v1740
      %v1791 = vunpack.c.l.b16 %v1741
      %v1792 = vpack.c.b16 %v1777, %v1776
      %v1793 = vpack.c.b16 %v1779, %v1778
      %v1794 = vpack.c.b16 %v1781, %v1780
      %v1795 = vpack.c.b16 %v1783, %v1782
      %v1796 = vpack.c.b16 %v1785, %v1784
      %v1797 = vpack.c.b16 %v1787, %v1786
      %v1798 = vpack.c.b16 %v1789, %v1788
      %v1799 = vpack.c.b16 %v1791, %v1790
      %1808 = vmatprep.subr.bf16.mxu0 0
      %1809 = vmatpush1.bf16.msra.mxu0 %v1792
      %1810 = vmatprep.subr.bf16.mxu0 0
      %1811 = vmatpush1.bf16.msra.mxu0 %v1793
      %1812 = vmatprep.subr.bf16.mxu0 0
      %1813 = vmatpush1.bf16.msra.mxu0 %v1794
      %1814 = vmatprep.subr.bf16.mxu0 0
      %1815 = vmatpush1.bf16.msra.mxu0 %v1795
      %1816 = vmatprep.subr.bf16.mxu0 0
      %1817 = vmatpush1.bf16.msra.mxu0 %v1796
      %1818 = vmatprep.subr.bf16.mxu0 0
      %1819 = vmatpush1.bf16.msra.mxu0 %v1797
      %1820 = vmatprep.subr.bf16.mxu0 0
      %1821 = vmatpush1.bf16.msra.mxu0 %v1798
      %1822 = vmatprep.subr.bf16.mxu0 0
      %1823 = vmatpush1.bf16.msra.mxu0 %v1799
      %1824 = vmatprep.subr.bf16.mxu0 0
      %1825 = vmatpush1.bf16.msra.mxu0 0
      %1826 = vmatprep.subr.bf16.mxu0 0
      %1827 = vmatpush1.bf16.msra.mxu0 0
      %1828 = vmatprep.subr.bf16.mxu0 0
      %1829 = vmatpush1.bf16.msra.mxu0 0
      %1830 = vmatprep.subr.bf16.mxu0 0
      %1831 = vmatpush1.bf16.msra.mxu0 0
      %1832 = vmatprep.subr.bf16.mxu0 0
      %1833 = vmatpush1.bf16.msra.mxu0 0
      %1834 = vmatprep.subr.bf16.mxu0 0
      %1835 = vmatpush1.bf16.msra.mxu0 0
      %1836 = vmatprep.subr.bf16.mxu0 0
      %1837 = vmatpush1.bf16.msra.mxu0 0
      %1838 = vmatprep.subr.bf16.mxu0 0
      %1839 = vmatpush1.bf16.msra.mxu0 0
      %1840 = vmatprep.mubr.bf16.mxu0 0
      %1841 = vmatmul.mubr.bf16.gmra.mrb[0].mxu0 %v1758
      %v1842 = vpop.f32.mrb[0].mxu0
      %v1843 = vadd.f32 0.0, %v1842
      %v1844 = vpop.f32.mrb[0].mxu0
      %v1845 = vpop.f32.mrb[0].mxu0
      %v1846 = vadd.f32 0.0, %v1845
      %v1847 = vpop.f32.mrb[0].mxu0
      %1848 = vdwg.mxu0
      %v1849 = vadd.f32 %v1667, %v1843
      %v1850 = vadd.f32 %v1668, %v1846
      %v1851 = vld [vmem:[%s2] sm:$0x1]
      %v1853 = vlaneseq
      %v1854 = vshrl.u32 %v1853, 7
      %v1855 = vsub.s32 0, %v1854
      %v1856 = vrot.slane %v1851, %v1855
      %v1858 = vadd.f32 %v1849, %v1856
      %v1859 = vadd.f32 %v1850, %v1856
      %v1860 = vmax.f32 %v1858, 0.0
      %v1861 = vmax.f32 %v1859, 0.0
      %v1862 = vpack.c.bf16 %v1861, %v1860
      %v1864 = vcombine.high %v1862, %v1862
      %v1866 = vunpack.c.l.s4 1983009808
      %v1867 = vunpack.c.0.s8 %v1866
      %v1868 = vlaneseq
      %v1869 = vshrl.u32 %v1868, 7
      %v1870 = vsub.s32 %v1867, %v1869
      %v1871 = vrot.slane %v1862, %v1870
      %v1873 = vunpack.c.l.s4 1983009808
      %v1874 = vunpack.c.0.s8 %v1873
      %v1875 = vlaneseq
      %v1876 = vshrl.u32 %v1875, 7
      %v1877 = vsub.s32 %v1874, %v1876
      %v1878 = vrot.slane %v1864, %v1877
      %v1879 = vcombine.high %v1871, %v1871
      %v1880 = vcombine.high %v1878, %v1878
      %1881 = vst [vmem:[#allocation2] sm:$0x7] 0
      %s1882 = scalar_lea.vmem [#allocation2], 20
      %1883 = vst [vmem:[%s1882] sm:$0x7] 0
      %v1885 = vunpack.c.l.s4 1983009808
      %v1886 = vunpack.c.0.s8 %v1885
      %v1887 = vlaneseq
      %v1888 = vshrl.u32 %v1887, 7
      %v1889 = vsub.s32 %v1886, %v1888
      %v1890 = vrot.slane %v1871, %v1889
      %v1892 = vunpack.c.l.s4 1983009808
      %v1893 = vunpack.c.0.s8 %v1892
      %v1894 = vlaneseq
      %v1895 = vshrl.u32 %v1894, 7
      %v1896 = vsub.s32 %v1893, %v1895
      %v1897 = vrot.slane %v1879, %v1896
      %v1899 = vunpack.c.l.s4 1983009808
      %v1900 = vunpack.c.0.s8 %v1899
      %v1901 = vlaneseq
      %v1902 = vshrl.u32 %v1901, 7
      %v1903 = vsub.s32 %v1900, %v1902
      %v1904 = vrot.slane %v1878, %v1903
      %v1906 = vunpack.c.l.s4 1983009808
      %v1907 = vunpack.c.0.s8 %v1906
      %v1908 = vlaneseq
      %v1909 = vshrl.u32 %v1908, 7
      %v1910 = vsub.s32 %v1907, %v1909
      %v1911 = vrot.slane %v1880, %v1910
      %v1913 = vshrl.u32 %v1890, 16
      %v1915 = vrot.slane %v1913, 7
      %v1916 = vshll.u32 %v1890, 16
      %v1918 = vor.u32 %v1915, %v1916
      %v1920 = vshrl.u32 %v1897, 16
      %v1922 = vrot.slane %v1920, 7
      %v1923 = vshll.u32 %v1897, 16
      %v1925 = vor.u32 %v1922, %v1923
      %v1927 = vshrl.u32 %v1904, 16
      %v1929 = vrot.slane %v1927, 7
      %v1930 = vshll.u32 %v1904, 16
      %v1932 = vor.u32 %v1929, %v1930
      %v1934 = vshrl.u32 %v1911, 16
      %v1936 = vrot.slane %v1934, 7
      %v1937 = vshll.u32 %v1911, 16
      %v1939 = vor.u32 %v1936, %v1937
      %vm1944 = vsmask.f32 256
      %vm1945 = vmand %vm624, %vm1944
      %v1946 = vsel %vm1945, 0, %v1918
      %v1947 = vsel %vm1945, 0, %v1925
      %v1948 = vsel %vm1945, 0, %v1932
      %v1949 = vsel %vm1945, 0, %v1939
      %vm1950 = vcmask 1042432
      %vm1951 = vsmask.f32 2304
      %vm1952 = vmand %vm1950, %vm1951
      %v1953 = vsel %vm1952, %v1946, 0
      %v1954 = vsel %vm1952, %v1947, 0
      %v1955 = vsel %vm1952, %v1948, 0
      %v1956 = vsel %vm1952, %v1949, 0
      %s1957 = scalar_lea.vmem [#allocation2], 4
      %1958 = vst [vmem:[%s1957] sm:$0x7] %v1953
      %1959 = vst [vmem:[%s1957 + $0x4] sm:$0x7] %v1954
      %1960 = vst [vmem:[%s1957 + $0x8] sm:$0x7] %v1955
      %1961 = vst [vmem:[%s1957 + $0xc] sm:$0x7] %v1956
      %v1962 = vld [vmem:[#allocation2] sm:$0x3]
      %v1963 = vld [vmem:[#allocation2 + $0x4] sm:$0x3]
      %v1964 = vld [vmem:[#allocation2 + $0x8] sm:$0x3]
      %v1965 = vld [vmem:[#allocation2 + $0xc] sm:$0x3]
      %v1966 = vld [vmem:[%s3] sm:$0xf]
      %v1967 = vld [vmem:[%s3 + $0x4] sm:$0xf]
      %v1968 = vld [vmem:[%s3 + $0x8] sm:$0xf]
      %v1969 = vld [vmem:[%s3 + $0xc] sm:$0xf]
      %v1970 = vld [vmem:[%s3 + $0x10] sm:$0xf]
      %v1971 = vld [vmem:[%s3 + $0x14] sm:$0xf]
      %v1972 = vld [vmem:[%s3 + $0x18] sm:$0xf]
      %v1973 = vld [vmem:[%s3 + $0x1c] sm:$0xf]
      %v1974 = vld [vmem:[%s3 + $0x20] sm:$0xf]
      %v1975 = vld [vmem:[%s3 + $0x24] sm:$0xf]
      %v1976 = vld [vmem:[%s3 + $0x28] sm:$0xf]
      %v1977 = vld [vmem:[%s3 + $0x2c] sm:$0xf]
      %v1978 = vld [vmem:[%s3 + $0x30] sm:$0xf]
      %v1979 = vld [vmem:[%s3 + $0x34] sm:$0xf]
      %v1980 = vld [vmem:[%s3 + $0x38] sm:$0xf]
      %v1981 = vld [vmem:[%s3 + $0x3c] sm:$0xf]
      %v1982 = vld [vmem:[#allocation2] sm:$0x7]
      %v1983 = vld [vmem:[#allocation2 + $0x4] sm:$0x7]
      %v1984 = vld [vmem:[#allocation2 + $0x8] sm:$0x7]
      %v1985 = vld [vmem:[#allocation2 + $0xc] sm:$0x7]
      %v1991 = vunpack.c.l.s4 1983009808
      %v1992 = vunpack.c.0.s8 %v1991
      %v1993 = vlaneseq
      %v1994 = vshrl.u32 %v1993, 7
      %v1995 = vsub.s32 %v1992, %v1994
      %v1996 = vrot.slane %v1982, %v1995
      %v1997 = vcombine.high %v1996, %v1996
      %v1999 = vunpack.c.l.s4 1983009808
      %v2000 = vunpack.c.0.s8 %v1999
      %v2001 = vlaneseq
      %v2002 = vshrl.u32 %v2001, 7
      %v2003 = vsub.s32 %v2000, %v2002
      %v2004 = vrot.slane %v1983, %v2003
      %v2005 = vcombine.high %v2004, %v2004
      %v2007 = vunpack.c.l.s4 1983009808
      %v2008 = vunpack.c.0.s8 %v2007
      %v2009 = vlaneseq
      %v2010 = vshrl.u32 %v2009, 7
      %v2011 = vsub.s32 %v2008, %v2010
      %v2012 = vrot.slane %v1984, %v2011
      %v2013 = vcombine.high %v2012, %v2012
      %v2015 = vunpack.c.l.s4 1983009808
      %v2016 = vunpack.c.0.s8 %v2015
      %v2017 = vlaneseq
      %v2018 = vshrl.u32 %v2017, 7
      %v2019 = vsub.s32 %v2016, %v2018
      %v2020 = vrot.slane %v1985, %v2019
      %v2021 = vcombine.high %v2020, %v2020
      %v2023 = vshrl.u32 %v1996, 16
      %v2025 = vrot.slane %v2023, 6
      %v2026 = vshll.u32 %v1996, 16
      %v2028 = vrot.slane %v2026, 7
      %v2029 = vor.u32 %v2025, %v2028
      %v2030 = vrot.slane %v2029, 2
      %v2032 = vshll.u32 %v1997, 16
      %v2034 = vrot.slane %v2032, 7
      %v2035 = vsel %vm292, %v2030, %v2034
      %v2037 = vshrl.u32 %v2004, 16
      %v2039 = vrot.slane %v2037, 6
      %v2040 = vshll.u32 %v2004, 16
      %v2042 = vrot.slane %v2040, 7
      %v2043 = vor.u32 %v2039, %v2042
      %v2044 = vrot.slane %v2043, 2
      %v2046 = vshll.u32 %v2005, 16
      %v2048 = vrot.slane %v2046, 7
      %v2049 = vsel %vm292, %v2044, %v2048
      %v2051 = vshrl.u32 %v2012, 16
      %v2053 = vrot.slane %v2051, 6
      %v2054 = vshll.u32 %v2012, 16
      %v2056 = vrot.slane %v2054, 7
      %v2057 = vor.u32 %v2053, %v2056
      %v2058 = vrot.slane %v2057, 2
      %v2060 = vshll.u32 %v2013, 16
      %v2062 = vrot.slane %v2060, 7
      %v2063 = vsel %vm292, %v2058, %v2062
      %v2065 = vshrl.u32 %v2020, 16
      %v2067 = vrot.slane %v2065, 6
      %v2068 = vshll.u32 %v2020, 16
      %v2070 = vrot.slane %v2068, 7
      %v2071 = vor.u32 %v2067, %v2070
      %v2072 = vrot.slane %v2071, 2
      %v2074 = vshll.u32 %v2021, 16
      %v2076 = vrot.slane %v2074, 7
      %v2077 = vsel %vm292, %v2072, %v2076
      %s2078 = scalar_lea.vmem %s3, 64
      %v2079 = vld [vmem:[%s2078] sm:$0xf]
      %v2080 = vld [vmem:[%s2078 + $0x4] sm:$0xf]
      %v2081 = vld [vmem:[%s2078 + $0x8] sm:$0xf]
      %v2082 = vld [vmem:[%s2078 + $0xc] sm:$0xf]
      %v2083 = vld [vmem:[%s2078 + $0x10] sm:$0xf]
      %v2084 = vld [vmem:[%s2078 + $0x14] sm:$0xf]
      %v2085 = vld [vmem:[%s2078 + $0x18] sm:$0xf]
      %v2086 = vld [vmem:[%s2078 + $0x1c] sm:$0xf]
      %v2087 = vld [vmem:[%s2078 + $0x20] sm:$0xf]
      %v2088 = vld [vmem:[%s2078 + $0x24] sm:$0xf]
      %v2089 = vld [vmem:[%s2078 + $0x28] sm:$0xf]
      %v2090 = vld [vmem:[%s2078 + $0x2c] sm:$0xf]
      %v2091 = vld [vmem:[%s2078 + $0x30] sm:$0xf]
      %v2092 = vld [vmem:[%s2078 + $0x34] sm:$0xf]
      %v2093 = vld [vmem:[%s2078 + $0x38] sm:$0xf]
      %v2094 = vld [vmem:[%s2078 + $0x3c] sm:$0xf]
      %v2095 = vcombine.low %v2035, %v2049
      %v2096 = vcombine.low %v2063, %v2077
      %v2098 = vunpack.c.l.s4 1983009808
      %v2099 = vunpack.c.0.s8 %v2098
      %v2100 = vlaneseq
      %v2101 = vshrl.u32 %v2100, 7
      %v2102 = vsub.s32 %v2099, %v2101
      %v2103 = vrot.slane %v2095, %v2102
      %v2105 = vunpack.c.l.s4 1983009808
      %v2106 = vunpack.c.0.s8 %v2105
      %v2107 = vlaneseq
      %v2108 = vshrl.u32 %v2107, 7
      %v2109 = vsub.s32 %v2106, %v2108
      %v2110 = vrot.slane %v2096, %v2109
      %v2111 = vcombine.low %v2103, %v2110
      %v2129 = vunpack.c.l.b16 %v2079
      %v2130 = vunpack.c.l.b16 %v2080
      %v2131 = vunpack.c.l.b16 %v2081
      %v2132 = vunpack.c.l.b16 %v2082
      %v2133 = vunpack.c.l.b16 %v2083
      %v2134 = vunpack.c.l.b16 %v2084
      %v2135 = vunpack.c.l.b16 %v2085
      %v2136 = vunpack.c.l.b16 %v2086
      %v2137 = vunpack.c.l.b16 %v2087
      %v2138 = vunpack.c.l.b16 %v2088
      %v2139 = vunpack.c.l.b16 %v2089
      %v2140 = vunpack.c.l.b16 %v2090
      %v2141 = vunpack.c.l.b16 %v2091
      %v2142 = vunpack.c.l.b16 %v2092
      %v2143 = vunpack.c.l.b16 %v2093
      %v2144 = vunpack.c.l.b16 %v2094
      %v2145 = vpack.c.b16 %v2130, %v2129
      %v2146 = vpack.c.b16 %v2132, %v2131
      %v2147 = vpack.c.b16 %v2134, %v2133
      %v2148 = vpack.c.b16 %v2136, %v2135
      %v2149 = vpack.c.b16 %v2138, %v2137
      %v2150 = vpack.c.b16 %v2140, %v2139
      %v2151 = vpack.c.b16 %v2142, %v2141
      %v2152 = vpack.c.b16 %v2144, %v2143
      %2161 = vmatprep.subr.bf16.mxu0 0
      %2162 = vmatpush1.bf16.msra.mxu0 %v2145
      %2163 = vmatprep.subr.bf16.mxu0 0
      %2164 = vmatpush1.bf16.msra.mxu0 %v2146
      %2165 = vmatprep.subr.bf16.mxu0 0
      %2166 = vmatpush1.bf16.msra.mxu0 %v2147
      %2167 = vmatprep.subr.bf16.mxu0 0
      %2168 = vmatpush1.bf16.msra.mxu0 %v2148
      %2169 = vmatprep.subr.bf16.mxu0 0
      %2170 = vmatpush1.bf16.msra.mxu0 %v2149
      %2171 = vmatprep.subr.bf16.mxu0 0
      %2172 = vmatpush1.bf16.msra.mxu0 %v2150
      %2173 = vmatprep.subr.bf16.mxu0 0
      %2174 = vmatpush1.bf16.msra.mxu0 %v2151
      %2175 = vmatprep.subr.bf16.mxu0 0
      %2176 = vmatpush1.bf16.msra.mxu0 %v2152
      %2177 = vmatprep.subr.bf16.mxu0 0
      %2178 = vmatpush1.bf16.msra.mxu0 0
      %2179 = vmatprep.subr.bf16.mxu0 0
      %2180 = vmatpush1.bf16.msra.mxu0 0
      %2181 = vmatprep.subr.bf16.mxu0 0
      %2182 = vmatpush1.bf16.msra.mxu0 0
      %2183 = vmatprep.subr.bf16.mxu0 0
      %2184 = vmatpush1.bf16.msra.mxu0 0
      %2185 = vmatprep.subr.bf16.mxu0 0
      %2186 = vmatpush1.bf16.msra.mxu0 0
      %2187 = vmatprep.subr.bf16.mxu0 0
      %2188 = vmatpush1.bf16.msra.mxu0 0
      %2189 = vmatprep.subr.bf16.mxu0 0
      %2190 = vmatpush1.bf16.msra.mxu0 0
      %2191 = vmatprep.subr.bf16.mxu0 0
      %2192 = vmatpush1.bf16.msra.mxu0 0
      %2193 = vmatprep.mubr.bf16.mxu0 0
      %2194 = vmatmul.mubr.bf16.gmra.mrb[0].mxu0 %v2111
      %v2195 = vpop.f32.mrb[0].mxu0
      %v2196 = vadd.f32 0.0, %v2195
      %v2197 = vpop.f32.mrb[0].mxu0
      %v2198 = vpop.f32.mrb[0].mxu0
      %v2199 = vadd.f32 0.0, %v2198
      %v2200 = vpop.f32.mrb[0].mxu0
      %2201 = vdwg.mxu0
      %v2206 = vcombine.low %v1962, %v1963
      %v2207 = vcombine.low %v1964, %v1965
      %v2209 = vunpack.c.l.s4 1983009808
      %v2210 = vunpack.c.0.s8 %v2209
      %v2211 = vlaneseq
      %v2212 = vshrl.u32 %v2211, 7
      %v2213 = vsub.s32 %v2210, %v2212
      %v2214 = vrot.slane %v2206, %v2213
      %v2216 = vunpack.c.l.s4 1983009808
      %v2217 = vunpack.c.0.s8 %v2216
      %v2218 = vlaneseq
      %v2219 = vshrl.u32 %v2218, 7
      %v2220 = vsub.s32 %v2217, %v2219
      %v2221 = vrot.slane %v2207, %v2220
      %v2222 = vcombine.low %v2214, %v2221
      %v2240 = vunpack.c.l.b16 %v1966
      %v2241 = vunpack.c.l.b16 %v1967
      %v2242 = vunpack.c.l.b16 %v1968
      %v2243 = vunpack.c.l.b16 %v1969
      %v2244 = vunpack.c.l.b16 %v1970
      %v2245 = vunpack.c.l.b16 %v1971
      %v2246 = vunpack.c.l.b16 %v1972
      %v2247 = vunpack.c.l.b16 %v1973
      %v2248 = vunpack.c.l.b16 %v1974
      %v2249 = vunpack.c.l.b16 %v1975
      %v2250 = vunpack.c.l.b16 %v1976
      %v2251 = vunpack.c.l.b16 %v1977
      %v2252 = vunpack.c.l.b16 %v1978
      %v2253 = vunpack.c.l.b16 %v1979
      %v2254 = vunpack.c.l.b16 %v1980
      %v2255 = vunpack.c.l.b16 %v1981
      %v2256 = vpack.c.b16 %v2241, %v2240
      %v2257 = vpack.c.b16 %v2243, %v2242
      %v2258 = vpack.c.b16 %v2245, %v2244
      %v2259 = vpack.c.b16 %v2247, %v2246
      %v2260 = vpack.c.b16 %v2249, %v2248
      %v2261 = vpack.c.b16 %v2251, %v2250
      %v2262 = vpack.c.b16 %v2253, %v2252
      %v2263 = vpack.c.b16 %v2255, %v2254
      %2272 = vmatprep.subr.bf16.mxu0 0
      %2273 = vmatpush1.bf16.msra.mxu0 %v2256
      %2274 = vmatprep.subr.bf16.mxu0 0
      %2275 = vmatpush1.bf16.msra.mxu0 %v2257
      %2276 = vmatprep.subr.bf16.mxu0 0
      %2277 = vmatpush1.bf16.msra.mxu0 %v2258
      %2278 = vmatprep.subr.bf16.mxu0 0
      %2279 = vmatpush1.bf16.msra.mxu0 %v2259
      %2280 = vmatprep.subr.bf16.mxu0 0
      %2281 = vmatpush1.bf16.msra.mxu0 %v2260
      %2282 = vmatprep.subr.bf16.mxu0 0
      %2283 = vmatpush1.bf16.msra.mxu0 %v2261
      %2284 = vmatprep.subr.bf16.mxu0 0
      %2285 = vmatpush1.bf16.msra.mxu0 %v2262
      %2286 = vmatprep.subr.bf16.mxu0 0
      %2287 = vmatpush1.bf16.msra.mxu0 %v2263
      %2288 = vmatprep.subr.bf16.mxu0 0
      %2289 = vmatpush1.bf16.msra.mxu0 0
      %2290 = vmatprep.subr.bf16.mxu0 0
      %2291 = vmatpush1.bf16.msra.mxu0 0
      %2292 = vmatprep.subr.bf16.mxu0 0
      %2293 = vmatpush1.bf16.msra.mxu0 0
      %2294 = vmatprep.subr.bf16.mxu0 0
      %2295 = vmatpush1.bf16.msra.mxu0 0
      %2296 = vmatprep.subr.bf16.mxu0 0
      %2297 = vmatpush1.bf16.msra.mxu0 0
      %2298 = vmatprep.subr.bf16.mxu0 0
      %2299 = vmatpush1.bf16.msra.mxu0 0
      %2300 = vmatprep.subr.bf16.mxu0 0
      %2301 = vmatpush1.bf16.msra.mxu0 0
      %2302 = vmatprep.subr.bf16.mxu0 0
      %2303 = vmatpush1.bf16.msra.mxu0 0
      %2304 = vmatprep.mubr.bf16.mxu0 0
      %2305 = vmatmul.mubr.bf16.gmra.mrb[0].mxu0 %v2222
      %v2306 = vpop.f32.mrb[0].mxu0
      %v2307 = vadd.f32 %v2196, %v2306
      %v2308 = vpop.f32.mrb[0].mxu0
      %v2309 = vpop.f32.mrb[0].mxu0
      %v2310 = vadd.f32 %v2199, %v2309
      %v2311 = vpop.f32.mrb[0].mxu0
      %2312 = vdwg.mxu0
      %v2313 = vld [vmem:[#allocation2] sm:$0x6]
      %v2314 = vld [vmem:[#allocation2 + $0x4] sm:$0x6]
      %v2315 = vld [vmem:[#allocation2 + $0x8] sm:$0x6]
      %v2316 = vld [vmem:[#allocation2 + $0xc] sm:$0x6]
      %v2322 = vunpack.c.l.s4 1983009808
      %v2323 = vunpack.c.0.s8 %v2322
      %v2324 = vlaneseq
      %v2325 = vshrl.u32 %v2324, 7
      %v2326 = vsub.s32 %v2323, %v2325
      %v2327 = vrot.slane %v2313, %v2326
      %v2328 = vcombine.high %v2327, %v2327
      %v2330 = vunpack.c.l.s4 1983009808
      %v2331 = vunpack.c.0.s8 %v2330
      %v2332 = vlaneseq
      %v2333 = vshrl.u32 %v2332, 7
      %v2334 = vsub.s32 %v2331, %v2333
      %v2335 = vrot.slane %v2314, %v2334
      %v2336 = vcombine.high %v2335, %v2335
      %v2338 = vunpack.c.l.s4 1983009808
      %v2339 = vunpack.c.0.s8 %v2338
      %v2340 = vlaneseq
      %v2341 = vshrl.u32 %v2340, 7
      %v2342 = vsub.s32 %v2339, %v2341
      %v2343 = vrot.slane %v2315, %v2342
      %v2344 = vcombine.high %v2343, %v2343
      %v2346 = vunpack.c.l.s4 1983009808
      %v2347 = vunpack.c.0.s8 %v2346
      %v2348 = vlaneseq
      %v2349 = vshrl.u32 %v2348, 7
      %v2350 = vsub.s32 %v2347, %v2349
      %v2351 = vrot.slane %v2316, %v2350
      %v2352 = vcombine.high %v2351, %v2351
      %v2353 = vrot.slane %v2327, 7
      %v2354 = vrot.slane %v2353, 2
      %v2355 = vrot.slane %v2328, 7
      %v2356 = vsel %vm630, %v2354, %v2355
      %v2357 = vrot.slane %v2335, 7
      %v2358 = vrot.slane %v2357, 2
      %v2359 = vrot.slane %v2336, 7
      %v2360 = vsel %vm630, %v2358, %v2359
      %v2361 = vrot.slane %v2343, 7
      %v2362 = vrot.slane %v2361, 2
      %v2363 = vrot.slane %v2344, 7
      %v2364 = vsel %vm630, %v2362, %v2363
      %v2365 = vrot.slane %v2351, 7
      %v2366 = vrot.slane %v2365, 2
      %v2367 = vrot.slane %v2352, 7
      %v2368 = vsel %vm630, %v2366, %v2367
      %s2369 = scalar_lea.vmem %s3, 128
      %v2370 = vld [vmem:[%s2369] sm:$0xf]
      %v2371 = vld [vmem:[%s2369 + $0x4] sm:$0xf]
      %v2372 = vld [vmem:[%s2369 + $0x8] sm:$0xf]
      %v2373 = vld [vmem:[%s2369 + $0xc] sm:$0xf]
      %v2374 = vld [vmem:[%s2369 + $0x10] sm:$0xf]
      %v2375 = vld [vmem:[%s2369 + $0x14] sm:$0xf]
      %v2376 = vld [vmem:[%s2369 + $0x18] sm:$0xf]
      %v2377 = vld [vmem:[%s2369 + $0x1c] sm:$0xf]
      %v2378 = vld [vmem:[%s2369 + $0x20] sm:$0xf]
      %v2379 = vld [vmem:[%s2369 + $0x24] sm:$0xf]
      %v2380 = vld [vmem:[%s2369 + $0x28] sm:$0xf]
      %v2381 = vld [vmem:[%s2369 + $0x2c] sm:$0xf]
      %v2382 = vld [vmem:[%s2369 + $0x30] sm:$0xf]
      %v2383 = vld [vmem:[%s2369 + $0x34] sm:$0xf]
      %v2384 = vld [vmem:[%s2369 + $0x38] sm:$0xf]
      %v2385 = vld [vmem:[%s2369 + $0x3c] sm:$0xf]
      %v2386 = vcombine.low %v2356, %v2360
      %v2387 = vcombine.low %v2364, %v2368
      %v2389 = vunpack.c.l.s4 1983009808
      %v2390 = vunpack.c.0.s8 %v2389
      %v2391 = vlaneseq
      %v2392 = vshrl.u32 %v2391, 7
      %v2393 = vsub.s32 %v2390, %v2392
      %v2394 = vrot.slane %v2386, %v2393
      %v2396 = vunpack.c.l.s4 1983009808
      %v2397 = vunpack.c.0.s8 %v2396
      %v2398 = vlaneseq
      %v2399 = vshrl.u32 %v2398, 7
      %v2400 = vsub.s32 %v2397, %v2399
      %v2401 = vrot.slane %v2387, %v2400
      %v2402 = vcombine.low %v2394, %v2401
      %v2420 = vunpack.c.l.b16 %v2370
      %v2421 = vunpack.c.l.b16 %v2371
      %v2422 = vunpack.c.l.b16 %v2372
      %v2423 = vunpack.c.l.b16 %v2373
      %v2424 = vunpack.c.l.b16 %v2374
      %v2425 = vunpack.c.l.b16 %v2375
      %v2426 = vunpack.c.l.b16 %v2376
      %v2427 = vunpack.c.l.b16 %v2377
      %v2428 = vunpack.c.l.b16 %v2378
      %v2429 = vunpack.c.l.b16 %v2379
      %v2430 = vunpack.c.l.b16 %v2380
      %v2431 = vunpack.c.l.b16 %v2381
      %v2432 = vunpack.c.l.b16 %v2382
      %v2433 = vunpack.c.l.b16 %v2383
      %v2434 = vunpack.c.l.b16 %v2384
      %v2435 = vunpack.c.l.b16 %v2385
      %v2436 = vpack.c.b16 %v2421, %v2420
      %v2437 = vpack.c.b16 %v2423, %v2422
      %v2438 = vpack.c.b16 %v2425, %v2424
      %v2439 = vpack.c.b16 %v2427, %v2426
      %v2440 = vpack.c.b16 %v2429, %v2428
      %v2441 = vpack.c.b16 %v2431, %v2430
      %v2442 = vpack.c.b16 %v2433, %v2432
      %v2443 = vpack.c.b16 %v2435, %v2434
      %2452 = vmatprep.subr.bf16.mxu0 0
      %2453 = vmatpush1.bf16.msra.mxu0 %v2436
      %2454 = vmatprep.subr.bf16.mxu0 0
      %2455 = vmatpush1.bf16.msra.mxu0 %v2437
      %2456 = vmatprep.subr.bf16.mxu0 0
      %2457 = vmatpush1.bf16.msra.mxu0 %v2438
      %2458 = vmatprep.subr.bf16.mxu0 0
      %2459 = vmatpush1.bf16.msra.mxu0 %v2439
      %2460 = vmatprep.subr.bf16.mxu0 0
      %2461 = vmatpush1.bf16.msra.mxu0 %v2440
      %2462 = vmatprep.subr.bf16.mxu0 0
      %2463 = vmatpush1.bf16.msra.mxu0 %v2441
      %2464 = vmatprep.subr.bf16.mxu0 0
      %2465 = vmatpush1.bf16.msra.mxu0 %v2442
      %2466 = vmatprep.subr.bf16.mxu0 0
      %2467 = vmatpush1.bf16.msra.mxu0 %v2443
      %2468 = vmatprep.subr.bf16.mxu0 0
      %2469 = vmatpush1.bf16.msra.mxu0 0
      %2470 = vmatprep.subr.bf16.mxu0 0
      %2471 = vmatpush1.bf16.msra.mxu0 0
      %2472 = vmatprep.subr.bf16.mxu0 0
      %2473 = vmatpush1.bf16.msra.mxu0 0
      %2474 = vmatprep.subr.bf16.mxu0 0
      %2475 = vmatpush1.bf16.msra.mxu0 0
      %2476 = vmatprep.subr.bf16.mxu0 0
      %2477 = vmatpush1.bf16.msra.mxu0 0
      %2478 = vmatprep.subr.bf16.mxu0 0
      %2479 = vmatpush1.bf16.msra.mxu0 0
      %2480 = vmatprep.subr.bf16.mxu0 0
      %2481 = vmatpush1.bf16.msra.mxu0 0
      %2482 = vmatprep.subr.bf16.mxu0 0
      %2483 = vmatpush1.bf16.msra.mxu0 0
      %2484 = vmatprep.mubr.bf16.mxu0 0
      %2485 = vmatmul.mubr.bf16.gmra.mrb[0].mxu0 %v2402
      %v2486 = vpop.f32.mrb[0].mxu0
      %v2487 = vadd.f32 0.0, %v2486
      %v2488 = vpop.f32.mrb[0].mxu0
      %v2489 = vpop.f32.mrb[0].mxu0
      %v2490 = vadd.f32 0.0, %v2489
      %v2491 = vpop.f32.mrb[0].mxu0
      %2492 = vdwg.mxu0
      %v2493 = vadd.f32 %v2307, %v2487
      %v2494 = vadd.f32 %v2310, %v2490
      %v2495 = vld [vmem:[%s1957] sm:$0x3]
      %v2496 = vld [vmem:[%s1957 + $0x4] sm:$0x3]
      %v2497 = vld [vmem:[%s1957 + $0x8] sm:$0x3]
      %v2498 = vld [vmem:[%s1957 + $0xc] sm:$0x3]
      %s2499 = scalar_lea.vmem %s3, 192
      %v2500 = vld [vmem:[%s2499] sm:$0xf]
      %v2501 = vld [vmem:[%s2499 + $0x4] sm:$0xf]
      %v2502 = vld [vmem:[%s2499 + $0x8] sm:$0xf]
      %v2503 = vld [vmem:[%s2499 + $0xc] sm:$0xf]
      %v2504 = vld [vmem:[%s2499 + $0x10] sm:$0xf]
      %v2505 = vld [vmem:[%s2499 + $0x14] sm:$0xf]
      %v2506 = vld [vmem:[%s2499 + $0x18] sm:$0xf]
      %v2507 = vld [vmem:[%s2499 + $0x1c] sm:$0xf]
      %v2508 = vld [vmem:[%s2499 + $0x20] sm:$0xf]
      %v2509 = vld [vmem:[%s2499 + $0x24] sm:$0xf]
      %v2510 = vld [vmem:[%s2499 + $0x28] sm:$0xf]
      %v2511 = vld [vmem:[%s2499 + $0x2c] sm:$0xf]
      %v2512 = vld [vmem:[%s2499 + $0x30] sm:$0xf]
      %v2513 = vld [vmem:[%s2499 + $0x34] sm:$0xf]
      %v2514 = vld [vmem:[%s2499 + $0x38] sm:$0xf]
      %v2515 = vld [vmem:[%s2499 + $0x3c] sm:$0xf]
      %v2520 = vcombine.low %v2495, %v2496
      %v2521 = vcombine.low %v2497, %v2498
      %v2523 = vunpack.c.l.s4 1983009808
      %v2524 = vunpack.c.0.s8 %v2523
      %v2525 = vlaneseq
      %v2526 = vshrl.u32 %v2525, 7
      %v2527 = vsub.s32 %v2524, %v2526
      %v2528 = vrot.slane %v2520, %v2527
      %v2530 = vunpack.c.l.s4 1983009808
      %v2531 = vunpack.c.0.s8 %v2530
      %v2532 = vlaneseq
      %v2533 = vshrl.u32 %v2532, 7
      %v2534 = vsub.s32 %v2531, %v2533
      %v2535 = vrot.slane %v2521, %v2534
      %v2536 = vcombine.low %v2528, %v2535
      %v2554 = vunpack.c.l.b16 %v2500
      %v2555 = vunpack.c.l.b16 %v2501
      %v2556 = vunpack.c.l.b16 %v2502
      %v2557 = vunpack.c.l.b16 %v2503
      %v2558 = vunpack.c.l.b16 %v2504
      %v2559 = vunpack.c.l.b16 %v2505
      %v2560 = vunpack.c.l.b16 %v2506
      %v2561 = vunpack.c.l.b16 %v2507
      %v2562 = vunpack.c.l.b16 %v2508
      %v2563 = vunpack.c.l.b16 %v2509
      %v2564 = vunpack.c.l.b16 %v2510
      %v2565 = vunpack.c.l.b16 %v2511
      %v2566 = vunpack.c.l.b16 %v2512
      %v2567 = vunpack.c.l.b16 %v2513
      %v2568 = vunpack.c.l.b16 %v2514
      %v2569 = vunpack.c.l.b16 %v2515
      %v2570 = vpack.c.b16 %v2555, %v2554
      %v2571 = vpack.c.b16 %v2557, %v2556
      %v2572 = vpack.c.b16 %v2559, %v2558
      %v2573 = vpack.c.b16 %v2561, %v2560
      %v2574 = vpack.c.b16 %v2563, %v2562
      %v2575 = vpack.c.b16 %v2565, %v2564
      %v2576 = vpack.c.b16 %v2567, %v2566
      %v2577 = vpack.c.b16 %v2569, %v2568
      %2586 = vmatprep.subr.bf16.mxu0 0
      %2587 = vmatpush1.bf16.msra.mxu0 %v2570
      %2588 = vmatprep.subr.bf16.mxu0 0
      %2589 = vmatpush1.bf16.msra.mxu0 %v2571
      %2590 = vmatprep.subr.bf16.mxu0 0
      %2591 = vmatpush1.bf16.msra.mxu0 %v2572
      %2592 = vmatprep.subr.bf16.mxu0 0
      %2593 = vmatpush1.bf16.msra.mxu0 %v2573
      %2594 = vmatprep.subr.bf16.mxu0 0
      %2595 = vmatpush1.bf16.msra.mxu0 %v2574
      %2596 = vmatprep.subr.bf16.mxu0 0
      %2597 = vmatpush1.bf16.msra.mxu0 %v2575
      %2598 = vmatprep.subr.bf16.mxu0 0
      %2599 = vmatpush1.bf16.msra.mxu0 %v2576
      %2600 = vmatprep.subr.bf16.mxu0 0
      %2601 = vmatpush1.bf16.msra.mxu0 %v2577
      %2602 = vmatprep.subr.bf16.mxu0 0
      %2603 = vmatpush1.bf16.msra.mxu0 0
      %2604 = vmatprep.subr.bf16.mxu0 0
      %2605 = vmatpush1.bf16.msra.mxu0 0
      %2606 = vmatprep.subr.bf16.mxu0 0
      %2607 = vmatpush1.bf16.msra.mxu0 0
      %2608 = vmatprep.subr.bf16.mxu0 0
      %2609 = vmatpush1.bf16.msra.mxu0 0
      %2610 = vmatprep.subr.bf16.mxu0 0
      %2611 = vmatpush1.bf16.msra.mxu0 0
      %2612 = vmatprep.subr.bf16.mxu0 0
      %2613 = vmatpush1.bf16.msra.mxu0 0
      %2614 = vmatprep.subr.bf16.mxu0 0
      %2615 = vmatpush1.bf16.msra.mxu0 0
      %2616 = vmatprep.subr.bf16.mxu0 0
      %2617 = vmatpush1.bf16.msra.mxu0 0
      %2618 = vmatprep.mubr.bf16.mxu0 0
      %2619 = vmatmul.mubr.bf16.gmra.mrb[0].mxu0 %v2536
      %v2620 = vpop.f32.mrb[0].mxu0
      %v2621 = vadd.f32 0.0, %v2620
      %v2622 = vpop.f32.mrb[0].mxu0
      %v2623 = vpop.f32.mrb[0].mxu0
      %v2624 = vadd.f32 0.0, %v2623
      %v2625 = vpop.f32.mrb[0].mxu0
      %2626 = vdwg.mxu0
      %v2627 = vadd.f32 %v2493, %v2621
      %v2628 = vadd.f32 %v2494, %v2624
      %v2629 = vld [vmem:[%s1957] sm:$0x7]
      %v2630 = vld [vmem:[%s1957 + $0x4] sm:$0x7]
      %v2631 = vld [vmem:[%s1957 + $0x8] sm:$0x7]
      %v2632 = vld [vmem:[%s1957 + $0xc] sm:$0x7]
      %v2638 = vunpack.c.l.s4 1983009808
      %v2639 = vunpack.c.0.s8 %v2638
      %v2640 = vlaneseq
      %v2641 = vshrl.u32 %v2640, 7
      %v2642 = vsub.s32 %v2639, %v2641
      %v2643 = vrot.slane %v2629, %v2642
      %v2644 = vcombine.high %v2643, %v2643
      %v2646 = vunpack.c.l.s4 1983009808
      %v2647 = vunpack.c.0.s8 %v2646
      %v2648 = vlaneseq
      %v2649 = vshrl.u32 %v2648, 7
      %v2650 = vsub.s32 %v2647, %v2649
      %v2651 = vrot.slane %v2630, %v2650
      %v2652 = vcombine.high %v2651, %v2651
      %v2654 = vunpack.c.l.s4 1983009808
      %v2655 = vunpack.c.0.s8 %v2654
      %v2656 = vlaneseq
      %v2657 = vshrl.u32 %v2656, 7
      %v2658 = vsub.s32 %v2655, %v2657
      %v2659 = vrot.slane %v2631, %v2658
      %v2660 = vcombine.high %v2659, %v2659
      %v2662 = vunpack.c.l.s4 1983009808
      %v2663 = vunpack.c.0.s8 %v2662
      %v2664 = vlaneseq
      %v2665 = vshrl.u32 %v2664, 7
      %v2666 = vsub.s32 %v2663, %v2665
      %v2667 = vrot.slane %v2632, %v2666
      %v2668 = vcombine.high %v2667, %v2667
      %v2670 = vshrl.u32 %v2643, 16
      %v2672 = vrot.slane %v2670, 6
      %v2673 = vshll.u32 %v2643, 16
      %v2675 = vrot.slane %v2673, 7
      %v2676 = vor.u32 %v2672, %v2675
      %v2677 = vrot.slane %v2676, 2
      %v2679 = vshll.u32 %v2644, 16
      %v2681 = vrot.slane %v2679, 7
      %v2682 = vsel %vm292, %v2677, %v2681
      %v2684 = vshrl.u32 %v2651, 16
      %v2686 = vrot.slane %v2684, 6
      %v2687 = vshll.u32 %v2651, 16
      %v2689 = vrot.slane %v2687, 7
      %v2690 = vor.u32 %v2686, %v2689
      %v2691 = vrot.slane %v2690, 2
      %v2693 = vshll.u32 %v2652, 16
      %v2695 = vrot.slane %v2693, 7
      %v2696 = vsel %vm292, %v2691, %v2695
      %v2698 = vshrl.u32 %v2659, 16
      %v2700 = vrot.slane %v2698, 6
      %v2701 = vshll.u32 %v2659, 16
      %v2703 = vrot.slane %v2701, 7
      %v2704 = vor.u32 %v2700, %v2703
      %v2705 = vrot.slane %v2704, 2
      %v2707 = vshll.u32 %v2660, 16
      %v2709 = vrot.slane %v2707, 7
      %v2710 = vsel %vm292, %v2705, %v2709
      %v2712 = vshrl.u32 %v2667, 16
      %v2714 = vrot.slane %v2712, 6
      %v2715 = vshll.u32 %v2667, 16
      %v2717 = vrot.slane %v2715, 7
      %v2718 = vor.u32 %v2714, %v2717
      %v2719 = vrot.slane %v2718, 2
      %v2721 = vshll.u32 %v2668, 16
      %v2723 = vrot.slane %v2721, 7
      %v2724 = vsel %vm292, %v2719, %v2723
      %s2725 = scalar_lea.vmem %s3, 256
      %v2726 = vld [vmem:[%s2725] sm:$0xf]
      %v2727 = vld [vmem:[%s2725 + $0x4] sm:$0xf]
      %v2728 = vld [vmem:[%s2725 + $0x8] sm:$0xf]
      %v2729 = vld [vmem:[%s2725 + $0xc] sm:$0xf]
      %v2730 = vld [vmem:[%s2725 + $0x10] sm:$0xf]
      %v2731 = vld [vmem:[%s2725 + $0x14] sm:$0xf]
      %v2732 = vld [vmem:[%s2725 + $0x18] sm:$0xf]
      %v2733 = vld [vmem:[%s2725 + $0x1c] sm:$0xf]
      %v2734 = vld [vmem:[%s2725 + $0x20] sm:$0xf]
      %v2735 = vld [vmem:[%s2725 + $0x24] sm:$0xf]
      %v2736 = vld [vmem:[%s2725 + $0x28] sm:$0xf]
      %v2737 = vld [vmem:[%s2725 + $0x2c] sm:$0xf]
      %v2738 = vld [vmem:[%s2725 + $0x30] sm:$0xf]
      %v2739 = vld [vmem:[%s2725 + $0x34] sm:$0xf]
      %v2740 = vld [vmem:[%s2725 + $0x38] sm:$0xf]
      %v2741 = vld [vmem:[%s2725 + $0x3c] sm:$0xf]
      %v2742 = vcombine.low %v2682, %v2696
      %v2743 = vcombine.low %v2710, %v2724
      %v2745 = vunpack.c.l.s4 1983009808
      %v2746 = vunpack.c.0.s8 %v2745
      %v2747 = vlaneseq
      %v2748 = vshrl.u32 %v2747, 7
      %v2749 = vsub.s32 %v2746, %v2748
      %v2750 = vrot.slane %v2742, %v2749
      %v2752 = vunpack.c.l.s4 1983009808
      %v2753 = vunpack.c.0.s8 %v2752
      %v2754 = vlaneseq
      %v2755 = vshrl.u32 %v2754, 7
      %v2756 = vsub.s32 %v2753, %v2755
      %v2757 = vrot.slane %v2743, %v2756
      %v2758 = vcombine.low %v2750, %v2757
      %v2776 = vunpack.c.l.b16 %v2726
      %v2777 = vunpack.c.l.b16 %v2727
      %v2778 = vunpack.c.l.b16 %v2728
      %v2779 = vunpack.c.l.b16 %v2729
      %v2780 = vunpack.c.l.b16 %v2730
      %v2781 = vunpack.c.l.b16 %v2731
      %v2782 = vunpack.c.l.b16 %v2732
      %v2783 = vunpack.c.l.b16 %v2733
      %v2784 = vunpack.c.l.b16 %v2734
      %v2785 = vunpack.c.l.b16 %v2735
      %v2786 = vunpack.c.l.b16 %v2736
      %v2787 = vunpack.c.l.b16 %v2737
      %v2788 = vunpack.c.l.b16 %v2738
      %v2789 = vunpack.c.l.b16 %v2739
      %v2790 = vunpack.c.l.b16 %v2740
      %v2791 = vunpack.c.l.b16 %v2741
      %v2792 = vpack.c.b16 %v2777, %v2776
      %v2793 = vpack.c.b16 %v2779, %v2778
      %v2794 = vpack.c.b16 %v2781, %v2780
      %v2795 = vpack.c.b16 %v2783, %v2782
      %v2796 = vpack.c.b16 %v2785, %v2784
      %v2797 = vpack.c.b16 %v2787, %v2786
      %v2798 = vpack.c.b16 %v2789, %v2788
      %v2799 = vpack.c.b16 %v2791, %v2790
      %2808 = vmatprep.subr.bf16.mxu0 0
      %2809 = vmatpush1.bf16.msra.mxu0 %v2792
      %2810 = vmatprep.subr.bf16.mxu0 0
      %2811 = vmatpush1.bf16.msra.mxu0 %v2793
      %2812 = vmatprep.subr.bf16.mxu0 0
      %2813 = vmatpush1.bf16.msra.mxu0 %v2794
      %2814 = vmatprep.subr.bf16.mxu0 0
      %2815 = vmatpush1.bf16.msra.mxu0 %v2795
      %2816 = vmatprep.subr.bf16.mxu0 0
      %2817 = vmatpush1.bf16.msra.mxu0 %v2796
      %2818 = vmatprep.subr.bf16.mxu0 0
      %2819 = vmatpush1.bf16.msra.mxu0 %v2797
      %2820 = vmatprep.subr.bf16.mxu0 0
      %2821 = vmatpush1.bf16.msra.mxu0 %v2798
      %2822 = vmatprep.subr.bf16.mxu0 0
      %2823 = vmatpush1.bf16.msra.mxu0 %v2799
      %2824 = vmatprep.subr.bf16.mxu0 0
      %2825 = vmatpush1.bf16.msra.mxu0 0
      %2826 = vmatprep.subr.bf16.mxu0 0
      %2827 = vmatpush1.bf16.msra.mxu0 0
      %2828 = vmatprep.subr.bf16.mxu0 0
      %2829 = vmatpush1.bf16.msra.mxu0 0
      %2830 = vmatprep.subr.bf16.mxu0 0
      %2831 = vmatpush1.bf16.msra.mxu0 0
      %2832 = vmatprep.subr.bf16.mxu0 0
      %2833 = vmatpush1.bf16.msra.mxu0 0
      %2834 = vmatprep.subr.bf16.mxu0 0
      %2835 = vmatpush1.bf16.msra.mxu0 0
      %2836 = vmatprep.subr.bf16.mxu0 0
      %2837 = vmatpush1.bf16.msra.mxu0 0
      %2838 = vmatprep.subr.bf16.mxu0 0
      %2839 = vmatpush1.bf16.msra.mxu0 0
      %2840 = vmatprep.mubr.bf16.mxu0 0
      %2841 = vmatmul.mubr.bf16.gmra.mrb[0].mxu0 %v2758
      %v2842 = vpop.f32.mrb[0].mxu0
      %v2843 = vadd.f32 0.0, %v2842
      %v2844 = vpop.f32.mrb[0].mxu0
      %v2845 = vpop.f32.mrb[0].mxu0
      %v2846 = vadd.f32 0.0, %v2845
      %v2847 = vpop.f32.mrb[0].mxu0
      %2848 = vdwg.mxu0
      %v2849 = vadd.f32 %v2627, %v2843
      %v2850 = vadd.f32 %v2628, %v2846
      %v2851 = vld [vmem:[%s1957] sm:$0x6]
      %v2852 = vld [vmem:[%s1957 + $0x4] sm:$0x6]
      %v2853 = vld [vmem:[%s1957 + $0x8] sm:$0x6]
      %v2854 = vld [vmem:[%s1957 + $0xc] sm:$0x6]
      %v2860 = vunpack.c.l.s4 1983009808
      %v2861 = vunpack.c.0.s8 %v2860
      %v2862 = vlaneseq
      %v2863 = vshrl.u32 %v2862, 7
      %v2864 = vsub.s32 %v2861, %v2863
      %v2865 = vrot.slane %v2851, %v2864
      %v2866 = vcombine.high %v2865, %v2865
      %v2868 = vunpack.c.l.s4 1983009808
      %v2869 = vunpack.c.0.s8 %v2868
      %v2870 = vlaneseq
      %v2871 = vshrl.u32 %v2870, 7
      %v2872 = vsub.s32 %v2869, %v2871
      %v2873 = vrot.slane %v2852, %v2872
      %v2874 = vcombine.high %v2873, %v2873
      %v2876 = vunpack.c.l.s4 1983009808
      %v2877 = vunpack.c.0.s8 %v2876
      %v2878 = vlaneseq
      %v2879 = vshrl.u32 %v2878, 7
      %v2880 = vsub.s32 %v2877, %v2879
      %v2881 = vrot.slane %v2853, %v2880
      %v2882 = vcombine.high %v2881, %v2881
      %v2884 = vunpack.c.l.s4 1983009808
      %v2885 = vunpack.c.0.s8 %v2884
      %v2886 = vlaneseq
      %v2887 = vshrl.u32 %v2886, 7
      %v2888 = vsub.s32 %v2885, %v2887
      %v2889 = vrot.slane %v2854, %v2888
      %v2890 = vcombine.high %v2889, %v2889
      %v2891 = vrot.slane %v2865, 7
      %v2892 = vrot.slane %v2891, 2
      %v2893 = vrot.slane %v2866, 7
      %v2894 = vsel %vm630, %v2892, %v2893
      %v2895 = vrot.slane %v2873, 7
      %v2896 = vrot.slane %v2895, 2
      %v2897 = vrot.slane %v2874, 7
      %v2898 = vsel %vm630, %v2896, %v2897
      %v2899 = vrot.slane %v2881, 7
      %v2900 = vrot.slane %v2899, 2
      %v2901 = vrot.slane %v2882, 7
      %v2902 = vsel %vm630, %v2900, %v2901
      %v2903 = vrot.slane %v2889, 7
      %v2904 = vrot.slane %v2903, 2
      %v2905 = vrot.slane %v2890, 7
      %v2906 = vsel %vm630, %v2904, %v2905
      %s2907 = scalar_lea.vmem %s3, 320
      %v2908 = vld [vmem:[%s2907] sm:$0xf]
      %v2909 = vld [vmem:[%s2907 + $0x4] sm:$0xf]
      %v2910 = vld [vmem:[%s2907 + $0x8] sm:$0xf]
      %v2911 = vld [vmem:[%s2907 + $0xc] sm:$0xf]
      %v2912 = vld [vmem:[%s2907 + $0x10] sm:$0xf]
      %v2913 = vld [vmem:[%s2907 + $0x14] sm:$0xf]
      %v2914 = vld [vmem:[%s2907 + $0x18] sm:$0xf]
      %v2915 = vld [vmem:[%s2907 + $0x1c] sm:$0xf]
      %v2916 = vld [vmem:[%s2907 + $0x20] sm:$0xf]
      %v2917 = vld [vmem:[%s2907 + $0x24] sm:$0xf]
      %v2918 = vld [vmem:[%s2907 + $0x28] sm:$0xf]
      %v2919 = vld [vmem:[%s2907 + $0x2c] sm:$0xf]
      %v2920 = vld [vmem:[%s2907 + $0x30] sm:$0xf]
      %v2921 = vld [vmem:[%s2907 + $0x34] sm:$0xf]
      %v2922 = vld [vmem:[%s2907 + $0x38] sm:$0xf]
      %v2923 = vld [vmem:[%s2907 + $0x3c] sm:$0xf]
      %v2924 = vcombine.low %v2894, %v2898
      %v2925 = vcombine.low %v2902, %v2906
      %v2927 = vunpack.c.l.s4 1983009808
      %v2928 = vunpack.c.0.s8 %v2927
      %v2929 = vlaneseq
      %v2930 = vshrl.u32 %v2929, 7
      %v2931 = vsub.s32 %v2928, %v2930
      %v2932 = vrot.slane %v2924, %v2931
      %v2934 = vunpack.c.l.s4 1983009808
      %v2935 = vunpack.c.0.s8 %v2934
      %v2936 = vlaneseq
      %v2937 = vshrl.u32 %v2936, 7
      %v2938 = vsub.s32 %v2935, %v2937
      %v2939 = vrot.slane %v2925, %v2938
      %v2940 = vcombine.low %v2932, %v2939
      %v2958 = vunpack.c.l.b16 %v2908
      %v2959 = vunpack.c.l.b16 %v2909
      %v2960 = vunpack.c.l.b16 %v2910
      %v2961 = vunpack.c.l.b16 %v2911
      %v2962 = vunpack.c.l.b16 %v2912
      %v2963 = vunpack.c.l.b16 %v2913
      %v2964 = vunpack.c.l.b16 %v2914
      %v2965 = vunpack.c.l.b16 %v2915
      %v2966 = vunpack.c.l.b16 %v2916
      %v2967 = vunpack.c.l.b16 %v2917
      %v2968 = vunpack.c.l.b16 %v2918
      %v2969 = vunpack.c.l.b16 %v2919
      %v2970 = vunpack.c.l.b16 %v2920
      %v2971 = vunpack.c.l.b16 %v2921
      %v2972 = vunpack.c.l.b16 %v2922
      %v2973 = vunpack.c.l.b16 %v2923
      %v2974 = vpack.c.b16 %v2959, %v2958
      %v2975 = vpack.c.b16 %v2961, %v2960
      %v2976 = vpack.c.b16 %v2963, %v2962
      %v2977 = vpack.c.b16 %v2965, %v2964
      %v2978 = vpack.c.b16 %v2967, %v2966
      %v2979 = vpack.c.b16 %v2969, %v2968
      %v2980 = vpack.c.b16 %v2971, %v2970
      %v2981 = vpack.c.b16 %v2973, %v2972
      %2990 = vmatprep.subr.bf16.mxu0 0
      %2991 = vmatpush1.bf16.msra.mxu0 %v2974
      %2992 = vmatprep.subr.bf16.mxu0 0
      %2993 = vmatpush1.bf16.msra.mxu0 %v2975
      %2994 = vmatprep.subr.bf16.mxu0 0
      %2995 = vmatpush1.bf16.msra.mxu0 %v2976
      %2996 = vmatprep.subr.bf16.mxu0 0
      %2997 = vmatpush1.bf16.msra.mxu0 %v2977
      %2998 = vmatprep.subr.bf16.mxu0 0
      %2999 = vmatpush1.bf16.msra.mxu0 %v2978
      %3000 = vmatprep.subr.bf16.mxu0 0
      %3001 = vmatpush1.bf16.msra.mxu0 %v2979
      %3002 = vmatprep.subr.bf16.mxu0 0
      %3003 = vmatpush1.bf16.msra.mxu0 %v2980
      %3004 = vmatprep.subr.bf16.mxu0 0
      %3005 = vmatpush1.bf16.msra.mxu0 %v2981
      %3006 = vmatprep.subr.bf16.mxu0 0
      %3007 = vmatpush1.bf16.msra.mxu0 0
      %3008 = vmatprep.subr.bf16.mxu0 0
      %3009 = vmatpush1.bf16.msra.mxu0 0
      %3010 = vmatprep.subr.bf16.mxu0 0
      %3011 = vmatpush1.bf16.msra.mxu0 0
      %3012 = vmatprep.subr.bf16.mxu0 0
      %3013 = vmatpush1.bf16.msra.mxu0 0
      %3014 = vmatprep.subr.bf16.mxu0 0
      %3015 = vmatpush1.bf16.msra.mxu0 0
      %3016 = vmatprep.subr.bf16.mxu0 0
      %3017 = vmatpush1.bf16.msra.mxu0 0
      %3018 = vmatprep.subr.bf16.mxu0 0
      %3019 = vmatpush1.bf16.msra.mxu0 0
      %3020 = vmatprep.subr.bf16.mxu0 0
      %3021 = vmatpush1.bf16.msra.mxu0 0
      %3022 = vmatprep.mubr.bf16.mxu0 0
      %3023 = vmatmul.mubr.bf16.gmra.mrb[0].mxu0 %v2940
      %v3024 = vpop.f32.mrb[0].mxu0
      %v3025 = vadd.f32 0.0, %v3024
      %v3026 = vpop.f32.mrb[0].mxu0
      %v3027 = vpop.f32.mrb[0].mxu0
      %v3028 = vadd.f32 0.0, %v3027
      %v3029 = vpop.f32.mrb[0].mxu0
      %3030 = vdwg.mxu0
      %v3031 = vadd.f32 %v2849, %v3025
      %v3032 = vadd.f32 %v2850, %v3028
      %s3033 = scalar_lea.vmem [#allocation2], 8
      %v3034 = vld [vmem:[%s3033] sm:$0x3]
      %v3035 = vld [vmem:[%s3033 + $0x4] sm:$0x3]
      %v3036 = vld [vmem:[%s3033 + $0x8] sm:$0x3]
      %v3037 = vld [vmem:[%s3033 + $0xc] sm:$0x3]
      %s3038 = scalar_lea.vmem %s3, 384
      %v3039 = vld [vmem:[%s3038] sm:$0xf]
      %v3040 = vld [vmem:[%s3038 + $0x4] sm:$0xf]
      %v3041 = vld [vmem:[%s3038 + $0x8] sm:$0xf]
      %v3042 = vld [vmem:[%s3038 + $0xc] sm:$0xf]
      %v3043 = vld [vmem:[%s3038 + $0x10] sm:$0xf]
      %v3044 = vld [vmem:[%s3038 + $0x14] sm:$0xf]
      %v3045 = vld [vmem:[%s3038 + $0x18] sm:$0xf]
      %v3046 = vld [vmem:[%s3038 + $0x1c] sm:$0xf]
      %v3047 = vld [vmem:[%s3038 + $0x20] sm:$0xf]
      %v3048 = vld [vmem:[%s3038 + $0x24] sm:$0xf]
      %v3049 = vld [vmem:[%s3038 + $0x28] sm:$0xf]
      %v3050 = vld [vmem:[%s3038 + $0x2c] sm:$0xf]
      %v3051 = vld [vmem:[%s3038 + $0x30] sm:$0xf]
      %v3052 = vld [vmem:[%s3038 + $0x34] sm:$0xf]
      %v3053 = vld [vmem:[%s3038 + $0x38] sm:$0xf]
      %v3054 = vld [vmem:[%s3038 + $0x3c] sm:$0xf]
      %v3059 = vcombine.low %v3034, %v3035
      %v3060 = vcombine.low %v3036, %v3037
      %v3062 = vunpack.c.l.s4 1983009808
      %v3063 = vunpack.c.0.s8 %v3062
      %v3064 = vlaneseq
      %v3065 = vshrl.u32 %v3064, 7
      %v3066 = vsub.s32 %v3063, %v3065
      %v3067 = vrot.slane %v3059, %v3066
      %v3069 = vunpack.c.l.s4 1983009808
      %v3070 = vunpack.c.0.s8 %v3069
      %v3071 = vlaneseq
      %v3072 = vshrl.u32 %v3071, 7
      %v3073 = vsub.s32 %v3070, %v3072
      %v3074 = vrot.slane %v3060, %v3073
      %v3075 = vcombine.low %v3067, %v3074
      %v3093 = vunpack.c.l.b16 %v3039
      %v3094 = vunpack.c.l.b16 %v3040
      %v3095 = vunpack.c.l.b16 %v3041
      %v3096 = vunpack.c.l.b16 %v3042
      %v3097 = vunpack.c.l.b16 %v3043
      %v3098 = vunpack.c.l.b16 %v3044
      %v3099 = vunpack.c.l.b16 %v3045
      %v3100 = vunpack.c.l.b16 %v3046
      %v3101 = vunpack.c.l.b16 %v3047
      %v3102 = vunpack.c.l.b16 %v3048
      %v3103 = vunpack.c.l.b16 %v3049
      %v3104 = vunpack.c.l.b16 %v3050
      %v3105 = vunpack.c.l.b16 %v3051
      %v3106 = vunpack.c.l.b16 %v3052
      %v3107 = vunpack.c.l.b16 %v3053
      %v3108 = vunpack.c.l.b16 %v3054
      %v3109 = vpack.c.b16 %v3094, %v3093
      %v3110 = vpack.c.b16 %v3096, %v3095
      %v3111 = vpack.c.b16 %v3098, %v3097
      %v3112 = vpack.c.b16 %v3100, %v3099
      %v3113 = vpack.c.b16 %v3102, %v3101
      %v3114 = vpack.c.b16 %v3104, %v3103
      %v3115 = vpack.c.b16 %v3106, %v3105
      %v3116 = vpack.c.b16 %v3108, %v3107
      %3125 = vmatprep.subr.bf16.mxu0 0
      %3126 = vmatpush1.bf16.msra.mxu0 %v3109
      %3127 = vmatprep.subr.bf16.mxu0 0
      %3128 = vmatpush1.bf16.msra.mxu0 %v3110
      %3129 = vmatprep.subr.bf16.mxu0 0
      %3130 = vmatpush1.bf16.msra.mxu0 %v3111
      %3131 = vmatprep.subr.bf16.mxu0 0
      %3132 = vmatpush1.bf16.msra.mxu0 %v3112
      %3133 = vmatprep.subr.bf16.mxu0 0
      %3134 = vmatpush1.bf16.msra.mxu0 %v3113
      %3135 = vmatprep.subr.bf16.mxu0 0
      %3136 = vmatpush1.bf16.msra.mxu0 %v3114
      %3137 = vmatprep.subr.bf16.mxu0 0
      %3138 = vmatpush1.bf16.msra.mxu0 %v3115
      %3139 = vmatprep.subr.bf16.mxu0 0
      %3140 = vmatpush1.bf16.msra.mxu0 %v3116
      %3141 = vmatprep.subr.bf16.mxu0 0
      %3142 = vmatpush1.bf16.msra.mxu0 0
      %3143 = vmatprep.subr.bf16.mxu0 0
      %3144 = vmatpush1.bf16.msra.mxu0 0
      %3145 = vmatprep.subr.bf16.mxu0 0
      %3146 = vmatpush1.bf16.msra.mxu0 0
      %3147 = vmatprep.subr.bf16.mxu0 0
      %3148 = vmatpush1.bf16.msra.mxu0 0
      %3149 = vmatprep.subr.bf16.mxu0 0
      %3150 = vmatpush1.bf16.msra.mxu0 0
      %3151 = vmatprep.subr.bf16.mxu0 0
      %3152 = vmatpush1.bf16.msra.mxu0 0
      %3153 = vmatprep.subr.bf16.mxu0 0
      %3154 = vmatpush1.bf16.msra.mxu0 0
      %3155 = vmatprep.subr.bf16.mxu0 0
      %3156 = vmatpush1.bf16.msra.mxu0 0
      %3157 = vmatprep.mubr.bf16.mxu0 0
      %3158 = vmatmul.mubr.bf16.gmra.mrb[0].mxu0 %v3075
      %v3159 = vpop.f32.mrb[0].mxu0
      %v3160 = vadd.f32 0.0, %v3159
      %v3161 = vpop.f32.mrb[0].mxu0
      %v3162 = vpop.f32.mrb[0].mxu0
      %v3163 = vadd.f32 0.0, %v3162
      %v3164 = vpop.f32.mrb[0].mxu0
      %3165 = vdwg.mxu0
      %v3166 = vadd.f32 %v3031, %v3160
      %v3167 = vadd.f32 %v3032, %v3163
      %v3168 = vld [vmem:[%s3033] sm:$0x7]
      %v3169 = vld [vmem:[%s3033 + $0x4] sm:$0x7]
      %v3170 = vld [vmem:[%s3033 + $0x8] sm:$0x7]
      %v3171 = vld [vmem:[%s3033 + $0xc] sm:$0x7]
      %v3177 = vunpack.c.l.s4 1983009808
      %v3178 = vunpack.c.0.s8 %v3177
      %v3179 = vlaneseq
      %v3180 = vshrl.u32 %v3179, 7
      %v3181 = vsub.s32 %v3178, %v3180
      %v3182 = vrot.slane %v3168, %v3181
      %v3183 = vcombine.high %v3182, %v3182
      %v3185 = vunpack.c.l.s4 1983009808
      %v3186 = vunpack.c.0.s8 %v3185
      %v3187 = vlaneseq
      %v3188 = vshrl.u32 %v3187, 7
      %v3189 = vsub.s32 %v3186, %v3188
      %v3190 = vrot.slane %v3169, %v3189
      %v3191 = vcombine.high %v3190, %v3190
      %v3193 = vunpack.c.l.s4 1983009808
      %v3194 = vunpack.c.0.s8 %v3193
      %v3195 = vlaneseq
      %v3196 = vshrl.u32 %v3195, 7
      %v3197 = vsub.s32 %v3194, %v3196
      %v3198 = vrot.slane %v3170, %v3197
      %v3199 = vcombine.high %v3198, %v3198
      %v3201 = vunpack.c.l.s4 1983009808
      %v3202 = vunpack.c.0.s8 %v3201
      %v3203 = vlaneseq
      %v3204 = vshrl.u32 %v3203, 7
      %v3205 = vsub.s32 %v3202, %v3204
      %v3206 = vrot.slane %v3171, %v3205
      %v3207 = vcombine.high %v3206, %v3206
      %v3209 = vshrl.u32 %v3182, 16
      %v3211 = vrot.slane %v3209, 6
      %v3212 = vshll.u32 %v3182, 16
      %v3214 = vrot.slane %v3212, 7
      %v3215 = vor.u32 %v3211, %v3214
      %v3216 = vrot.slane %v3215, 2
      %v3218 = vshll.u32 %v3183, 16
      %v3220 = vrot.slane %v3218, 7
      %v3221 = vsel %vm292, %v3216, %v3220
      %v3223 = vshrl.u32 %v3190, 16
      %v3225 = vrot.slane %v3223, 6
      %v3226 = vshll.u32 %v3190, 16
      %v3228 = vrot.slane %v3226, 7
      %v3229 = vor.u32 %v3225, %v3228
      %v3230 = vrot.slane %v3229, 2
      %v3232 = vshll.u32 %v3191, 16
      %v3234 = vrot.slane %v3232, 7
      %v3235 = vsel %vm292, %v3230, %v3234
      %v3237 = vshrl.u32 %v3198, 16
      %v3239 = vrot.slane %v3237, 6
      %v3240 = vshll.u32 %v3198, 16
      %v3242 = vrot.slane %v3240, 7
      %v3243 = vor.u32 %v3239, %v3242
      %v3244 = vrot.slane %v3243, 2
      %v3246 = vshll.u32 %v3199, 16
      %v3248 = vrot.slane %v3246, 7
      %v3249 = vsel %vm292, %v3244, %v3248
      %v3251 = vshrl.u32 %v3206, 16
      %v3253 = vrot.slane %v3251, 6
      %v3254 = vshll.u32 %v3206, 16
      %v3256 = vrot.slane %v3254, 7
      %v3257 = vor.u32 %v3253, %v3256
      %v3258 = vrot.slane %v3257, 2
      %v3260 = vshll.u32 %v3207, 16
      %v3262 = vrot.slane %v3260, 7
      %v3263 = vsel %vm292, %v3258, %v3262
      %s3264 = scalar_lea.vmem %s3, 448
      %v3265 = vld [vmem:[%s3264] sm:$0xf]
      %v3266 = vld [vmem:[%s3264 + $0x4] sm:$0xf]
      %v3267 = vld [vmem:[%s3264 + $0x8] sm:$0xf]
      %v3268 = vld [vmem:[%s3264 + $0xc] sm:$0xf]
      %v3269 = vld [vmem:[%s3264 + $0x10] sm:$0xf]
      %v3270 = vld [vmem:[%s3264 + $0x14] sm:$0xf]
      %v3271 = vld [vmem:[%s3264 + $0x18] sm:$0xf]
      %v3272 = vld [vmem:[%s3264 + $0x1c] sm:$0xf]
      %v3273 = vld [vmem:[%s3264 + $0x20] sm:$0xf]
      %v3274 = vld [vmem:[%s3264 + $0x24] sm:$0xf]
      %v3275 = vld [vmem:[%s3264 + $0x28] sm:$0xf]
      %v3276 = vld [vmem:[%s3264 + $0x2c] sm:$0xf]
      %v3277 = vld [vmem:[%s3264 + $0x30] sm:$0xf]
      %v3278 = vld [vmem:[%s3264 + $0x34] sm:$0xf]
      %v3279 = vld [vmem:[%s3264 + $0x38] sm:$0xf]
      %v3280 = vld [vmem:[%s3264 + $0x3c] sm:$0xf]
      %v3281 = vcombine.low %v3221, %v3235
      %v3282 = vcombine.low %v3249, %v3263
      %v3284 = vunpack.c.l.s4 1983009808
      %v3285 = vunpack.c.0.s8 %v3284
      %v3286 = vlaneseq
      %v3287 = vshrl.u32 %v3286, 7
      %v3288 = vsub.s32 %v3285, %v3287
      %v3289 = vrot.slane %v3281, %v3288
      %v3291 = vunpack.c.l.s4 1983009808
      %v3292 = vunpack.c.0.s8 %v3291
      %v3293 = vlaneseq
      %v3294 = vshrl.u32 %v3293, 7
      %v3295 = vsub.s32 %v3292, %v3294
      %v3296 = vrot.slane %v3282, %v3295
      %v3297 = vcombine.low %v3289, %v3296
      %v3315 = vunpack.c.l.b16 %v3265
      %v3316 = vunpack.c.l.b16 %v3266
      %v3317 = vunpack.c.l.b16 %v3267
      %v3318 = vunpack.c.l.b16 %v3268
      %v3319 = vunpack.c.l.b16 %v3269
      %v3320 = vunpack.c.l.b16 %v3270
      %v3321 = vunpack.c.l.b16 %v3271
      %v3322 = vunpack.c.l.b16 %v3272
      %v3323 = vunpack.c.l.b16 %v3273
      %v3324 = vunpack.c.l.b16 %v3274
      %v3325 = vunpack.c.l.b16 %v3275
      %v3326 = vunpack.c.l.b16 %v3276
      %v3327 = vunpack.c.l.b16 %v3277
      %v3328 = vunpack.c.l.b16 %v3278
      %v3329 = vunpack.c.l.b16 %v3279
      %v3330 = vunpack.c.l.b16 %v3280
      %v3331 = vpack.c.b16 %v3316, %v3315
      %v3332 = vpack.c.b16 %v3318, %v3317
      %v3333 = vpack.c.b16 %v3320, %v3319
      %v3334 = vpack.c.b16 %v3322, %v3321
      %v3335 = vpack.c.b16 %v3324, %v3323
      %v3336 = vpack.c.b16 %v3326, %v3325
      %v3337 = vpack.c.b16 %v3328, %v3327
      %v3338 = vpack.c.b16 %v3330, %v3329
      %3347 = vmatprep.subr.bf16.mxu0 0
      %3348 = vmatpush1.bf16.msra.mxu0 %v3331
      %3349 = vmatprep.subr.bf16.mxu0 0
      %3350 = vmatpush1.bf16.msra.mxu0 %v3332
      %3351 = vmatprep.subr.bf16.mxu0 0
      %3352 = vmatpush1.bf16.msra.mxu0 %v3333
      %3353 = vmatprep.subr.bf16.mxu0 0
      %3354 = vmatpush1.bf16.msra.mxu0 %v3334
      %3355 = vmatprep.subr.bf16.mxu0 0
      %3356 = vmatpush1.bf16.msra.mxu0 %v3335
      %3357 = vmatprep.subr.bf16.mxu0 0
      %3358 = vmatpush1.bf16.msra.mxu0 %v3336
      %3359 = vmatprep.subr.bf16.mxu0 0
      %3360 = vmatpush1.bf16.msra.mxu0 %v3337
      %3361 = vmatprep.subr.bf16.mxu0 0
      %3362 = vmatpush1.bf16.msra.mxu0 %v3338
      %3363 = vmatprep.subr.bf16.mxu0 0
      %3364 = vmatpush1.bf16.msra.mxu0 0
      %3365 = vmatprep.subr.bf16.mxu0 0
      %3366 = vmatpush1.bf16.msra.mxu0 0
      %3367 = vmatprep.subr.bf16.mxu0 0
      %3368 = vmatpush1.bf16.msra.mxu0 0
      %3369 = vmatprep.subr.bf16.mxu0 0
      %3370 = vmatpush1.bf16.msra.mxu0 0
      %3371 = vmatprep.subr.bf16.mxu0 0
      %3372 = vmatpush1.bf16.msra.mxu0 0
      %3373 = vmatprep.subr.bf16.mxu0 0
      %3374 = vmatpush1.bf16.msra.mxu0 0
      %3375 = vmatprep.subr.bf16.mxu0 0
      %3376 = vmatpush1.bf16.msra.mxu0 0
      %3377 = vmatprep.subr.bf16.mxu0 0
      %3378 = vmatpush1.bf16.msra.mxu0 0
      %3379 = vmatprep.mubr.bf16.mxu0 0
      %3380 = vmatmul.mubr.bf16.gmra.mrb[0].mxu0 %v3297
      %v3381 = vpop.f32.mrb[0].mxu0
      %v3382 = vadd.f32 0.0, %v3381
      %v3383 = vpop.f32.mrb[0].mxu0
      %v3384 = vpop.f32.mrb[0].mxu0
      %v3385 = vadd.f32 0.0, %v3384
      %v3386 = vpop.f32.mrb[0].mxu0
      %3387 = vdwg.mxu0
      %v3388 = vadd.f32 %v3166, %v3382
      %v3389 = vadd.f32 %v3167, %v3385
      %v3390 = vld [vmem:[%s3033] sm:$0x6]
      %v3391 = vld [vmem:[%s3033 + $0x4] sm:$0x6]
      %v3392 = vld [vmem:[%s3033 + $0x8] sm:$0x6]
      %v3393 = vld [vmem:[%s3033 + $0xc] sm:$0x6]
      %v3399 = vunpack.c.l.s4 1983009808
      %v3400 = vunpack.c.0.s8 %v3399
      %v3401 = vlaneseq
      %v3402 = vshrl.u32 %v3401, 7
      %v3403 = vsub.s32 %v3400, %v3402
      %v3404 = vrot.slane %v3390, %v3403
      %v3405 = vcombine.high %v3404, %v3404
      %v3407 = vunpack.c.l.s4 1983009808
      %v3408 = vunpack.c.0.s8 %v3407
      %v3409 = vlaneseq
      %v3410 = vshrl.u32 %v3409, 7
      %v3411 = vsub.s32 %v3408, %v3410
      %v3412 = vrot.slane %v3391, %v3411
      %v3413 = vcombine.high %v3412, %v3412
      %v3415 = vunpack.c.l.s4 1983009808
      %v3416 = vunpack.c.0.s8 %v3415
      %v3417 = vlaneseq
      %v3418 = vshrl.u32 %v3417, 7
      %v3419 = vsub.s32 %v3416, %v3418
      %v3420 = vrot.slane %v3392, %v3419
      %v3421 = vcombine.high %v3420, %v3420
      %v3423 = vunpack.c.l.s4 1983009808
      %v3424 = vunpack.c.0.s8 %v3423
      %v3425 = vlaneseq
      %v3426 = vshrl.u32 %v3425, 7
      %v3427 = vsub.s32 %v3424, %v3426
      %v3428 = vrot.slane %v3393, %v3427
      %v3429 = vcombine.high %v3428, %v3428
      %v3430 = vrot.slane %v3404, 7
      %v3431 = vrot.slane %v3430, 2
      %v3432 = vrot.slane %v3405, 7
      %v3433 = vsel %vm630, %v3431, %v3432
      %v3434 = vrot.slane %v3412, 7
      %v3435 = vrot.slane %v3434, 2
      %v3436 = vrot.slane %v3413, 7
      %v3437 = vsel %vm630, %v3435, %v3436
      %v3438 = vrot.slane %v3420, 7
      %v3439 = vrot.slane %v3438, 2
      %v3440 = vrot.slane %v3421, 7
      %v3441 = vsel %vm630, %v3439, %v3440
      %v3442 = vrot.slane %v3428, 7
      %v3443 = vrot.slane %v3442, 2
      %v3444 = vrot.slane %v3429, 7
      %v3445 = vsel %vm630, %v3443, %v3444
      %s3446 = scalar_lea.vmem %s3, 512
      %v3447 = vld [vmem:[%s3446] sm:$0xf]
      %v3448 = vld [vmem:[%s3446 + $0x4] sm:$0xf]
      %v3449 = vld [vmem:[%s3446 + $0x8] sm:$0xf]
      %v3450 = vld [vmem:[%s3446 + $0xc] sm:$0xf]
      %v3451 = vld [vmem:[%s3446 + $0x10] sm:$0xf]
      %v3452 = vld [vmem:[%s3446 + $0x14] sm:$0xf]
      %v3453 = vld [vmem:[%s3446 + $0x18] sm:$0xf]
      %v3454 = vld [vmem:[%s3446 + $0x1c] sm:$0xf]
      %v3455 = vld [vmem:[%s3446 + $0x20] sm:$0xf]
      %v3456 = vld [vmem:[%s3446 + $0x24] sm:$0xf]
      %v3457 = vld [vmem:[%s3446 + $0x28] sm:$0xf]
      %v3458 = vld [vmem:[%s3446 + $0x2c] sm:$0xf]
      %v3459 = vld [vmem:[%s3446 + $0x30] sm:$0xf]
      %v3460 = vld [vmem:[%s3446 + $0x34] sm:$0xf]
      %v3461 = vld [vmem:[%s3446 + $0x38] sm:$0xf]
      %v3462 = vld [vmem:[%s3446 + $0x3c] sm:$0xf]
      %v3463 = vcombine.low %v3433, %v3437
      %v3464 = vcombine.low %v3441, %v3445
      %v3466 = vunpack.c.l.s4 1983009808
      %v3467 = vunpack.c.0.s8 %v3466
      %v3468 = vlaneseq
      %v3469 = vshrl.u32 %v3468, 7
      %v3470 = vsub.s32 %v3467, %v3469
      %v3471 = vrot.slane %v3463, %v3470
      %v3473 = vunpack.c.l.s4 1983009808
      %v3474 = vunpack.c.0.s8 %v3473
      %v3475 = vlaneseq
      %v3476 = vshrl.u32 %v3475, 7
      %v3477 = vsub.s32 %v3474, %v3476
      %v3478 = vrot.slane %v3464, %v3477
      %v3479 = vcombine.low %v3471, %v3478
      %v3497 = vunpack.c.l.b16 %v3447
      %v3498 = vunpack.c.l.b16 %v3448
      %v3499 = vunpack.c.l.b16 %v3449
      %v3500 = vunpack.c.l.b16 %v3450
      %v3501 = vunpack.c.l.b16 %v3451
      %v3502 = vunpack.c.l.b16 %v3452
      %v3503 = vunpack.c.l.b16 %v3453
      %v3504 = vunpack.c.l.b16 %v3454
      %v3505 = vunpack.c.l.b16 %v3455
      %v3506 = vunpack.c.l.b16 %v3456
      %v3507 = vunpack.c.l.b16 %v3457
      %v3508 = vunpack.c.l.b16 %v3458
      %v3509 = vunpack.c.l.b16 %v3459
      %v3510 = vunpack.c.l.b16 %v3460
      %v3511 = vunpack.c.l.b16 %v3461
      %v3512 = vunpack.c.l.b16 %v3462
      %v3513 = vpack.c.b16 %v3498, %v3497
      %v3514 = vpack.c.b16 %v3500, %v3499
      %v3515 = vpack.c.b16 %v3502, %v3501
      %v3516 = vpack.c.b16 %v3504, %v3503
      %v3517 = vpack.c.b16 %v3506, %v3505
      %v3518 = vpack.c.b16 %v3508, %v3507
      %v3519 = vpack.c.b16 %v3510, %v3509
      %v3520 = vpack.c.b16 %v3512, %v3511
      %3529 = vmatprep.subr.bf16.mxu0 0
      %3530 = vmatpush1.bf16.msra.mxu0 %v3513
      %3531 = vmatprep.subr.bf16.mxu0 0
      %3532 = vmatpush1.bf16.msra.mxu0 %v3514
      %3533 = vmatprep.subr.bf16.mxu0 0
      %3534 = vmatpush1.bf16.msra.mxu0 %v3515
      %3535 = vmatprep.subr.bf16.mxu0 0
      %3536 = vmatpush1.bf16.msra.mxu0 %v3516
      %3537 = vmatprep.subr.bf16.mxu0 0
      %3538 = vmatpush1.bf16.msra.mxu0 %v3517
      %3539 = vmatprep.subr.bf16.mxu0 0
      %3540 = vmatpush1.bf16.msra.mxu0 %v3518
      %3541 = vmatprep.subr.bf16.mxu0 0
      %3542 = vmatpush1.bf16.msra.mxu0 %v3519
      %3543 = vmatprep.subr.bf16.mxu0 0
      %3544 = vmatpush1.bf16.msra.mxu0 %v3520
      %3545 = vmatprep.subr.bf16.mxu0 0
      %3546 = vmatpush1.bf16.msra.mxu0 0
      %3547 = vmatprep.subr.bf16.mxu0 0
      %3548 = vmatpush1.bf16.msra.mxu0 0
      %3549 = vmatprep.subr.bf16.mxu0 0
      %3550 = vmatpush1.bf16.msra.mxu0 0
      %3551 = vmatprep.subr.bf16.mxu0 0
      %3552 = vmatpush1.bf16.msra.mxu0 0
      %3553 = vmatprep.subr.bf16.mxu0 0
      %3554 = vmatpush1.bf16.msra.mxu0 0
      %3555 = vmatprep.subr.bf16.mxu0 0
      %3556 = vmatpush1.bf16.msra.mxu0 0
      %3557 = vmatprep.subr.bf16.mxu0 0
      %3558 = vmatpush1.bf16.msra.mxu0 0
      %3559 = vmatprep.subr.bf16.mxu0 0
      %3560 = vmatpush1.bf16.msra.mxu0 0
      %3561 = vmatprep.mubr.bf16.mxu0 0
      %3562 = vmatmul.mubr.bf16.gmra.mrb[0].mxu0 %v3479
      %v3563 = vpop.f32.mrb[0].mxu0
      %v3564 = vadd.f32 0.0, %v3563
      %v3565 = vpop.f32.mrb[0].mxu0
      %v3566 = vpop.f32.mrb[0].mxu0
      %v3567 = vadd.f32 0.0, %v3566
      %v3568 = vpop.f32.mrb[0].mxu0
      %3569 = vdwg.mxu0
      %v3570 = vadd.f32 %v3388, %v3564
      %v3571 = vadd.f32 %v3389, %v3567
      %v3572 = vld [vmem:[%s773] sm:$0x7]
      %v3573 = vld [vmem:[%s773 + $0x4] sm:$0x7]
      %v3574 = vld [vmem:[%s773 + $0x8] sm:$0x7]
      %v3575 = vld [vmem:[%s773 + $0xc] sm:$0x7]
      %v3581 = vunpack.c.l.s4 1983009808
      %v3582 = vunpack.c.0.s8 %v3581
      %v3583 = vlaneseq
      %v3584 = vshrl.u32 %v3583, 7
      %v3585 = vsub.s32 %v3582, %v3584
      %v3586 = vrot.slane %v3572, %v3585
      %v3587 = vcombine.high %v3586, %v3586
      %v3589 = vunpack.c.l.s4 1983009808
      %v3590 = vunpack.c.0.s8 %v3589
      %v3591 = vlaneseq
      %v3592 = vshrl.u32 %v3591, 7
      %v3593 = vsub.s32 %v3590, %v3592
      %v3594 = vrot.slane %v3573, %v3593
      %v3595 = vcombine.high %v3594, %v3594
      %v3597 = vunpack.c.l.s4 1983009808
      %v3598 = vunpack.c.0.s8 %v3597
      %v3599 = vlaneseq
      %v3600 = vshrl.u32 %v3599, 7
      %v3601 = vsub.s32 %v3598, %v3600
      %v3602 = vrot.slane %v3574, %v3601
      %v3603 = vcombine.high %v3602, %v3602
      %v3605 = vunpack.c.l.s4 1983009808
      %v3606 = vunpack.c.0.s8 %v3605
      %v3607 = vlaneseq
      %v3608 = vshrl.u32 %v3607, 7
      %v3609 = vsub.s32 %v3606, %v3608
      %v3610 = vrot.slane %v3575, %v3609
      %v3611 = vcombine.high %v3610, %v3610
      %v3613 = vshrl.u32 %v3586, 16
      %v3615 = vrot.slane %v3613, 6
      %v3616 = vshll.u32 %v3586, 16
      %v3618 = vrot.slane %v3616, 7
      %v3619 = vor.u32 %v3615, %v3618
      %v3620 = vrot.slane %v3619, 2
      %v3622 = vshll.u32 %v3587, 16
      %v3624 = vrot.slane %v3622, 7
      %v3625 = vsel %vm292, %v3620, %v3624
      %v3627 = vshrl.u32 %v3594, 16
      %v3629 = vrot.slane %v3627, 6
      %v3630 = vshll.u32 %v3594, 16
      %v3632 = vrot.slane %v3630, 7
      %v3633 = vor.u32 %v3629, %v3632
      %v3634 = vrot.slane %v3633, 2
      %v3636 = vshll.u32 %v3595, 16
      %v3638 = vrot.slane %v3636, 7
      %v3639 = vsel %vm292, %v3634, %v3638
      %v3641 = vshrl.u32 %v3602, 16
      %v3643 = vrot.slane %v3641, 6
      %v3644 = vshll.u32 %v3602, 16
      %v3646 = vrot.slane %v3644, 7
      %v3647 = vor.u32 %v3643, %v3646
      %v3648 = vrot.slane %v3647, 2
      %v3650 = vshll.u32 %v3603, 16
      %v3652 = vrot.slane %v3650, 7
      %v3653 = vsel %vm292, %v3648, %v3652
      %v3655 = vshrl.u32 %v3610, 16
      %v3657 = vrot.slane %v3655, 6
      %v3658 = vshll.u32 %v3610, 16
      %v3660 = vrot.slane %v3658, 7
      %v3661 = vor.u32 %v3657, %v3660
      %v3662 = vrot.slane %v3661, 2
      %v3664 = vshll.u32 %v3611, 16
      %v3666 = vrot.slane %v3664, 7
      %v3667 = vsel %vm292, %v3662, %v3666
      %v3672 = vunpack.c.l.bf16 %v3625
      %v3673 = vunpack.c.l.bf16 %v3639
      %v3674 = vunpack.c.l.bf16 %v3653
      %v3675 = vunpack.c.l.bf16 %v3667
      %v3676 = vld [vmem:[%s4] sm:$0x1]
      %v3678 = vlaneseq
      %v3679 = vshrl.u32 %v3678, 7
      %v3680 = vsub.s32 0, %v3679
      %v3681 = vrot.slane %v3676, %v3680
      %v3683 = vadd.f32 %v3570, %v3681
      %v3684 = vadd.f32 %v3571, %v3681
      %v3689 = vcombine.low %v3672, %v3673
      %v3690 = vcombine.low %v3674, %v3675
      %v3693 = vadd.f32 %v3683, %v3689
      %v3694 = vadd.f32 %v3684, %v3690
      %v3695 = vmax.f32 %v3693, 0.0
      %v3696 = vmax.f32 %v3694, 0.0
      %v3697 = vpack.c.bf16 %v3696, %v3695
      %v3699 = vcombine.high %v3697, %v3697
      %v3701 = vunpack.c.l.s4 1983009808
      %v3702 = vunpack.c.0.s8 %v3701
      %v3703 = vlaneseq
      %v3704 = vshrl.u32 %v3703, 7
      %v3705 = vsub.s32 %v3702, %v3704
      %v3706 = vrot.slane %v3697, %v3705
      %v3708 = vunpack.c.l.s4 1983009808
      %v3709 = vunpack.c.0.s8 %v3708
      %v3710 = vlaneseq
      %v3711 = vshrl.u32 %v3710, 7
      %v3712 = vsub.s32 %v3709, %v3711
      %v3713 = vrot.slane %v3699, %v3712
      %v3714 = vcombine.high %v3706, %v3706
      %v3715 = vcombine.high %v3713, %v3713
      %3716 = vst [vmem:[%s224] sm:$0x7] 0
      %s3717 = scalar_lea.vmem %s224, 20
      %3718 = vst [vmem:[%s3717] sm:$0x7] 0
      %v3720 = vunpack.c.l.s4 1983009808
      %v3721 = vunpack.c.0.s8 %v3720
      %v3722 = vlaneseq
      %v3723 = vshrl.u32 %v3722, 7
      %v3724 = vsub.s32 %v3721, %v3723
      %v3725 = vrot.slane %v3706, %v3724
      %v3727 = vunpack.c.l.s4 1983009808
      %v3728 = vunpack.c.0.s8 %v3727
      %v3729 = vlaneseq
      %v3730 = vshrl.u32 %v3729, 7
      %v3731 = vsub.s32 %v3728, %v3730
      %v3732 = vrot.slane %v3714, %v3731
      %v3734 = vunpack.c.l.s4 1983009808
      %v3735 = vunpack.c.0.s8 %v3734
      %v3736 = vlaneseq
      %v3737 = vshrl.u32 %v3736, 7
      %v3738 = vsub.s32 %v3735, %v3737
      %v3739 = vrot.slane %v3713, %v3738
      %v3741 = vunpack.c.l.s4 1983009808
      %v3742 = vunpack.c.0.s8 %v3741
      %v3743 = vlaneseq
      %v3744 = vshrl.u32 %v3743, 7
      %v3745 = vsub.s32 %v3742, %v3744
      %v3746 = vrot.slane %v3715, %v3745
      %v3748 = vshrl.u32 %v3725, 16
      %v3750 = vrot.slane %v3748, 7
      %v3751 = vshll.u32 %v3725, 16
      %v3753 = vor.u32 %v3750, %v3751
      %v3755 = vshrl.u32 %v3732, 16
      %v3757 = vrot.slane %v3755, 7
      %v3758 = vshll.u32 %v3732, 16
      %v3760 = vor.u32 %v3757, %v3758
      %v3762 = vshrl.u32 %v3739, 16
      %v3764 = vrot.slane %v3762, 7
      %v3765 = vshll.u32 %v3739, 16
      %v3767 = vor.u32 %v3764, %v3765
      %v3769 = vshrl.u32 %v3746, 16
      %v3771 = vrot.slane %v3769, 7
      %v3772 = vshll.u32 %v3746, 16
      %v3774 = vor.u32 %v3771, %v3772
      %v3779 = vsel %vm1945, 0, %v3753
      %v3780 = vsel %vm1945, 0, %v3760
      %v3781 = vsel %vm1945, 0, %v3767
      %v3782 = vsel %vm1945, 0, %v3774
      %v3783 = vsel %vm1952, %v3779, 0
      %v3784 = vsel %vm1952, %v3780, 0
      %v3785 = vsel %vm1952, %v3781, 0
      %v3786 = vsel %vm1952, %v3782, 0
      %s3787 = scalar_lea.vmem %s224, 4
      %3788 = vst [vmem:[%s3787] sm:$0x7] %v3783
      %3789 = vst [vmem:[%s3787 + $0x4] sm:$0x7] %v3784
      %3790 = vst [vmem:[%s3787 + $0x8] sm:$0x7] %v3785
      %3791 = vst [vmem:[%s3787 + $0xc] sm:$0x7] %v3786
      %p3792 = scmp.lt.s32.totalorder %s16, 1
      %s3793 = scalar_select %p3792, %s16, 1
      %s3794 = smul.addr %s3793, 6
      %s3795 = smul.addr %s3794, 4
      %s3796 = scalar_lea.vmem %s5, %s3795
      // Predicated region
      $region41: #{feature_extractor_forward.4} parent=39 // pred_check
        %p3797 = pneg %p144
      $region42: #{feature_extractor_forward.4} parent=39 // pred_check_branch
        %3799 = sbr.rel (%p3797) target = $region44
      $region43: #{feature_extractor_forward.4} parent=39 // pred_region
        _
      $region44: #{feature_extractor_forward.4} parent=39 // pred_fallthru
        _
    $region40: #{feature_extractor_forward.4} parent=5 // pred_fallthru
      _
    %p3800 = scmp.le.s32.totalorder 2, %s11
    // Predicated region
    $region45: #{feature_extractor_forward.4} parent=5 // pred_check
      %p3801 = pneg %p3800
    $region46: #{feature_extractor_forward.4} parent=5 // pred_check_branch
      %3803 = sbr.rel (%p3801) target = $region48
    $region47: #{feature_extractor_forward.4} parent=5 // pred_region
      %s3804 = ssub.s32 %s11, 2
      // Predicated region
      $region49: #{feature_extractor_forward.4} parent=47 // pred_check
        %p3805 = pneg %p150
      $region50: #{feature_extractor_forward.4} parent=47 // pred_check_branch
        %3807 = sbr.rel (%p3805) target = $region52
      $region51: #{feature_extractor_forward.4} parent=47 // pred_region
        %p3808 = scmp.lt.s32.totalorder %s17, 1
        %s3809 = scalar_select %p3808, %s17, 1
        %s3810 = smul.addr %s3809, 6
        %s3811 = smul.addr %s3810, 4
        %s3812 = scalar_lea.vmem %s5, %s3811
      $region52: #{feature_extractor_forward.4} parent=47 // pred_fallthru
        _
    $region48: #{feature_extractor_forward.4} parent=5 // pred_fallthru
      _
  $region6: #{feature_extractor_forward.4} parent=0 // loop_footer
    %s15 = sadd.s32 1, %s11
  $region7: #{feature_extractor_forward.4} parent=0 // loop_footer_branch
    %10 = sbr.rel target = $region3
  $region8: #{feature_extractor_forward.4} parent=0 // loop_exit
    _

</llo_original>
